<compile_context>
chip_gen: v7x
topology: tpu7x:2x2x1
jax: 0.10.0
libtpu: 0.0.40
codegen_flags: <defaults>
</compile_context>

<pallas_src>
import math

import jax
import jax.numpy as jnp
from jax.experimental import pallas as pl
from jax.experimental.pallas import tpu as pltpu

_EPS = 1e-5


def _vmem_limit_bytes():
    """Generation-aware VMEM budget: ~3/4 of physical, capped at 100 MiB."""
    try:
        cap = pltpu.get_tpu_info().vmem_capacity_bytes
    except Exception:
        cap = 64 * 1024 * 1024  # conservative fallback
    return int(min(cap * 3 // 4, 100 * 1024 * 1024))


def _compiler_params():
    return pltpu.CompilerParams(
        dimension_semantics=("parallel",),
        vmem_limit_bytes=_vmem_limit_bytes(),
    )


# ---------------------------------------------------------------------------
# Pallas kernels
# ---------------------------------------------------------------------------
def _conv_stats_kernel(p_ref, w_ref, y_ref, stat_ref):
    """3x3 conv for one image + per-channel partial BN statistics.

    p_ref:    (1, (H+2)*W, 3*Cp) bf16 -- W-window patches, rows flattened
    w_ref:    (3, 3*Cp, Cp)      bf16 -- one (3Cp, Cp) GEMM per kernel row dy
    y_ref:    (1, H*W, Cp)       bf16 -- conv output (pre-BN), lane-dense
    stat_ref: (1, 2, Cp)         f32  -- [sum, centered sum of squares]
    """
    rows = y_ref.shape[1]                    # H*W
    wdim = (p_ref.shape[1] - rows) // 2      # W  ((H+2)*W - H*W = 2W)
    cp = w_ref.shape[-1]

    acc = jnp.zeros((rows, cp), jnp.float32)
    for dy in range(3):                      # static, unrolled
        lhs = p_ref[0, pl.ds(dy * wdim, rows), :]          # free row-range slice
        acc = acc + jnp.dot(lhs, w_ref[dy], preferred_element_type=jnp.float32)

    # bf16 store halves the biggest HBM stream; stats stay f32 (from f32 acc).
    y_ref[0] = acc.astype(y_ref.dtype)

    s1 = jnp.sum(acc, axis=0, keepdims=True)               # (1, Cp)
    mb = s1 * (1.0 / rows)                                  # per-block mean
    d = acc - mb
    ss = jnp.sum(d * d, axis=0, keepdims=True)              # centered sum-sq
    stat_ref[0] = jnp.concatenate([s1, ss], axis=0)


def _bn_relu_kernel(y_ref, s_ref, t_ref, o_ref):
    """o = relu(y * scale + shift); bf16 in / bf16 out, f32 math, lane-dense."""
    y = y_ref[...].astype(jnp.float32) * s_ref[...] + t_ref[...]
    o_ref[...] = jnp.maximum(y, 0.0).astype(o_ref.dtype)


def _bn_res_relu_kernel(y_ref, r_ref, s_ref, t_ref, o_ref):
    """o = relu(residual + (y * scale + shift)); lane-dense f32 output."""
    y = y_ref[...].astype(jnp.float32) * s_ref[...] + t_ref[...]
    o_ref[...] = jnp.maximum(r_ref[...].astype(jnp.float32) + y, 0.0).astype(o_ref.dtype)


# ---------------------------------------------------------------------------
# pallas_call wrappers
# ---------------------------------------------------------------------------
def _conv_stats(patches, w_rows, n, hw, cpad):
    """Gridded over batch; emits bf16 conv output rows + per-block f32 stats."""
    _, prow, k = patches.shape
    return pl.pallas_call(
        _conv_stats_kernel,
        out_shape=(
            jax.ShapeDtypeStruct((n, hw, cpad), jnp.bfloat16),
            jax.ShapeDtypeStruct((n, 2, cpad), jnp.float32),
        ),
        grid=(n,),
        in_specs=[
            pl.BlockSpec((1, prow, k), lambda i: (i, 0, 0)),
            pl.BlockSpec((3, k, cpad), lambda i: (0, 0, 0)),   # grid-invariant weights
        ],
        out_specs=(
            pl.BlockSpec((1, hw, cpad), lambda i: (i, 0, 0)),
            pl.BlockSpec((1, 2, cpad), lambda i: (i, 0, 0)),
        ),
        compiler_params=_compiler_params(),
    )(patches, w_rows)
    # TODO(synk): for large feature maps (e.g. 56x56x128 on v7x's 64 MiB VMEM),
    # add an H-tiled grid axis with a 2-row halo instead of whole-image blocks.
    # TODO(synk): build the 3x W-window in VMEM from the plain padded image to
    # remove the 3x patch materialization in HBM entirely.


def _bn_relu(y_rows, scale, shift, tm=1024):
    m, cpad = y_rows.shape
    tm = min(tm, m)
    return pl.pallas_call(
        _bn_relu_kernel,
        out_shape=jax.ShapeDtypeStruct((m, cpad), jnp.bfloat16),
        grid=(pl.cdiv(m, tm),),
        in_specs=[
            pl.BlockSpec((tm, cpad), lambda i: (i, 0)),
            pl.BlockSpec((1, cpad), lambda i: (0, 0)),
            pl.BlockSpec((1, cpad), lambda i: (0, 0)),
        ],
        out_specs=pl.BlockSpec((tm, cpad), lambda i: (i, 0)),   # lane-dense
        compiler_params=_compiler_params(),
    )(y_rows, scale.reshape(1, -1), shift.reshape(1, -1))


def _bn_res_relu(y_rows, res, scale, shift, tm=1024):
    m, cpad = y_rows.shape
    tm = min(tm, m)
    return pl.pallas_call(
        _bn_res_relu_kernel,
        out_shape=jax.ShapeDtypeStruct((m, cpad), jnp.float32),
        grid=(pl.cdiv(m, tm),),
        in_specs=[
            pl.BlockSpec((tm, cpad), lambda i: (i, 0)),
            pl.BlockSpec((tm, cpad), lambda i: (i, 0)),
            pl.BlockSpec((1, cpad), lambda i: (0, 0)),
            pl.BlockSpec((1, cpad), lambda i: (0, 0)),
        ],
        out_specs=pl.BlockSpec((tm, cpad), lambda i: (i, 0)),   # lane-dense
        compiler_params=_compiler_params(),
    )(y_rows, res, scale.reshape(1, -1), shift.reshape(1, -1))


# ---------------------------------------------------------------------------
# Plain-JAX glue: layout prep, stat folding, parameter init
# ---------------------------------------------------------------------------
def _w_patches_flat(img):
    """(N,H,W,Cp) -> (N, (H+2)*W, 3Cp): p[n, hp*W+x, kw*Cp+c] = img_pad[n, hp, x+kw, c]."""
    n, h, w, cp = img.shape
    xp = jnp.pad(img, ((0, 0), (1, 1), (1, 1), (0, 0)))
    cols = [xp[:, :, kw:kw + w, :] for kw in range(3)]
    p = jnp.concatenate(cols, axis=-1)                  # (N, H+2, W, 3Cp)
    return p.reshape(n, (h + 2) * w, 3 * cp)


def _conv_weight_rows(w_oihw, cpad):
    """PyTorch (O, I, 3, 3) -> (3, 3*Cpad, Cpad) bf16, matching the patch order."""
    o, i, kh, kw = w_oihw.shape
    wt = jnp.transpose(w_oihw, (2, 3, 1, 0))            # (kh, kw, I, O)
    wt = jnp.pad(wt, ((0, 0), (0, 0), (0, cpad - i), (0, cpad - o)))
    return wt.reshape(kh, kw * cpad, cpad).astype(jnp.bfloat16)


def _fold_bn(stats, gamma_pad, beta_pad, hw_per_block, total):
    """Combine per-block [sum, centered sum-sq] and fold training-mode BN."""
    s1 = stats[:, 0, :]                                  # (Nblk, Cp)
    ss = stats[:, 1, :]
    mean = jnp.sum(s1, axis=0) / total
    mb = s1 / hw_per_block                               # per-block means
    var = (jnp.sum(ss, axis=0)
           + hw_per_block * jnp.sum((mb - mean) ** 2, axis=0)) / total
    var = jnp.maximum(var, 0.0)                          # biased variance (training BN)
    scale = gamma_pad * jax.lax.rsqrt(var + _EPS)
    shift = beta_pad - mean * scale
    return scale, shift
    # TODO(synk): running_mean/running_var updates (PyTorch module state) are
    # not tracked; the forward output in training mode does not depend on them.


def init_restnet_basic_block_params(key, in_channels, out_channels, k=3):
    """Deterministic params with PyTorch-default-style init."""
    k1, k2, k3, k4 = jax.random.split(key, 4)
    b1 = 1.0 / math.sqrt(in_channels * k * k)
    b2 = 1.0 / math.sqrt(out_channels * k * k)
    return {
        "w1": jax.random.uniform(k1, (out_channels, in_channels, k, k), jnp.float32, -b1, b1),
        # conv biases are kept for parameter fidelity but are cancelled exactly
        # by training-mode BatchNorm's mean subtraction, so the kernels skip them.
        "b1": jax.random.uniform(k2, (out_channels,), jnp.float32, -b1, b1),
        "gamma1": jnp.ones((out_channels,), jnp.float32),
        "beta1": jnp.zeros((out_channels,), jnp.float32),
        "w2": jax.random.uniform(k3, (out_channels, out_channels, k, k), jnp.float32, -b2, b2),
        "b2": jax.random.uniform(k4, (out_channels,), jnp.float32, -b2, b2),
        "gamma2": jnp.ones((out_channels,), jnp.float32),
        "beta2": jnp.zeros((out_channels,), jnp.float32),
    }


# ---------------------------------------------------------------------------
# Forward pass (mirrors RestNetBasicBlock.forward, training-mode BN)
# ---------------------------------------------------------------------------
def restnet_basic_block(x_nchw, params, stride=1):
    n, c_in, h, w = x_nchw.shape
    c_out = params["w1"].shape[0]
    # Residual `x + output` requires stride == 1 and Cin == Cout (as in PyTorch).
    assert stride == 1 and c_in == c_out, "residual path requires stride=1, Cin==Cout"

    cpad = ((c_out + 127) // 128) * 128
    hw = h * w
    m = n * hw

    # NHWC, channel-padded to Cpad, bf16 — used for conv1 patches AND the residual.
    # (Padded channels are zero; gamma/beta padding keeps them zero end-to-end.)
    x_nhwc = jnp.transpose(x_nchw, (0, 2, 3, 1))
    x_pc = jnp.pad(x_nhwc, ((0, 0), (0, 0), (0, 0), (0, cpad - c_in))).astype(jnp.bfloat16)
    # TODO(synk): if this block runs inside a larger NHWC network, drop the
    # NCHW<->NHWC transposes at entry/exit and keep the Cpad layout end-to-end.

    g1 = jnp.pad(params["gamma1"], (0, cpad - c_out))
    be1 = jnp.pad(params["beta1"], (0, cpad - c_out))
    g2 = jnp.pad(params["gamma2"], (0, cpad - c_out))
    be2 = jnp.pad(params["beta2"], (0, cpad - c_out))

    w1 = _conv_weight_rows(params["w1"], cpad)           # (3, 3Cpad, Cpad) bf16
    w2 = _conv_weight_rows(params["w2"], cpad)

    # ---- conv1 (bf16 MXU, f32 accum) + partial BN stats ----
    p1 = _w_patches_flat(x_pc)                           # (N, (H+2)W, 3Cpad) bf16
    y1c, st1 = _conv_stats(p1, w1, n, hw, cpad)
    sc1, sh1 = _fold_bn(st1, g1, be1, hw, m)
    # ---- bn1 + relu: lane-dense bf16 (M, Cpad) that feeds conv2 directly ----
    a1 = _bn_relu(y1c.reshape(m, cpad), sc1, sh1)

    # ---- conv2 + partial BN stats ----
    p2 = _w_patches_flat(a1.reshape(n, h, w, cpad))
    y2c, st2 = _conv_stats(p2, w2, n, hw, cpad)
    sc2, sh2 = _fold_bn(st2, g2, be2, hw, m)
    # ---- bn2 + residual + relu (lane-dense Cpad output, pad dropped below) ----
    out = _bn_res_relu(y2c.reshape(m, cpad), x_pc.reshape(m, cpad), sc2, sh2)

    out = out[:, :c_out].reshape(n, h, w, c_out)
    return jnp.transpose(out, (0, 3, 1, 2))              # back to NCHW


# ---------------------------------------------------------------------------
# Reference (jax.lax conv) for a tolerance check, mimicking the bf16 casts
# ---------------------------------------------------------------------------
def _reference_forward(x, params):
    xb = x.astype(jnp.bfloat16).astype(jnp.float32)

    def conv(inp, wgt, bias):
        out = jax.lax.conv_general_dilated(
            inp.astype(jnp.bfloat16), wgt.astype(jnp.bfloat16),
            window_strides=(1, 1), padding=((1, 1), (1, 1)),
            dimension_numbers=("NCHW", "OIHW", "NCHW"),
            preferred_element_type=jnp.float32)
        return out + bias.reshape(1, -1, 1, 1)

    def bn(y, gamma, beta):
        mean = jnp.mean(y, axis=(0, 2, 3), keepdims=True)
        var = jnp.mean((y - mean) ** 2, axis=(0, 2, 3), keepdims=True)
        return ((y - mean) * jax.lax.rsqrt(var + _EPS)
                * gamma.reshape(1, -1, 1, 1) + beta.reshape(1, -1, 1, 1))

    y = conv(xb, params["w1"], params["b1"])
    y = jnp.maximum(bn(y, params["gamma1"], params["beta1"]), 0.0)
    y = y.astype(jnp.bfloat16).astype(jnp.float32)       # kernel stores a1 in bf16
    y = conv(y, params["w2"], params["b2"])
    y = bn(y, params["gamma2"], params["beta2"])
    return jnp.maximum(xb + y, 0.0)


if __name__ == "__main__":
    key = jax.random.PRNGKey(0)
    k_x, k_p = jax.random.split(key)

    N, C, H, W = 2, 8, 16, 16
    x = jax.random.normal(k_x, (N, C, H, W), jnp.float32)   # NCHW, like PyTorch
    params = init_restnet_basic_block_params(k_p, in_channels=C, out_channels=C)

    fwd = jax.jit(restnet_basic_block, static_argnames=("stride",))
    out = jax.block_until_ready(fwd(x, params, stride=1))

    assert out.shape == (N, C, H, W), out.shape
    assert bool(jnp.all(jnp.isfinite(out)))
    assert bool(jnp.all(out >= 0.0))                      # ReLU output

    ref = _reference_forward(x, params)
    err = float(jnp.max(jnp.abs(out - ref)))
    assert err < 0.15, f"max |out - ref| = {err}"         # bf16-level tolerance

    print("KERNEL_OK")
</pallas_src>

<mosaic_0001>
module attributes {stable_mosaic.version = 11 : i64} {
  func.func @_conv_stats_kernel(%arg0: i32, %arg1: memref<1x288x384xbf16, #tpu.memory_space<vmem>>, %arg2: memref<3x384x128xbf16, #tpu.memory_space<vmem>>, %arg3: memref<1x256x128xbf16, #tpu.memory_space<vmem>>, %arg4: memref<1x2x128xf32, #tpu.memory_space<vmem>>) attributes {dimension_semantics = [#tpu.dimension_semantics<parallel>], iteration_bounds = array<i64: 2>, scalar_prefetch = 0 : i64, scratch_operands = 0 : i64, tpu.core_type = #tpu.core_type<tc>, window_params = [{transform_indices = @transform_0, window_bounds = array<i64: 1, 288, 384>}, {pipeline_mode = #tpu.pipeline_mode<synchronous>, transform_indices = @transform_1, window_bounds = array<i64: 3, 384, 128>}, {transform_indices = @transform_2, window_bounds = array<i64: 1, 256, 128>}, {transform_indices = @transform_3, window_bounds = array<i64: 1, 2, 128>}]} {
    %cst = arith.constant 0.000000e+00 : f32
    %0 = vector.broadcast %cst : f32 to vector<256x128xf32>
    %c0 = arith.constant 0 : index
    %c0_0 = arith.constant 0 : index
    %c0_1 = arith.constant 0 : index
    %1 = vector.load %arg1[%c0, %c0_0, %c0_1] : memref<1x288x384xbf16, #tpu.memory_space<vmem>>, vector<1x256x384xbf16>
    %2 = vector.shape_cast %1 : vector<1x256x384xbf16> to vector<256x384xbf16>
    %c0_2 = arith.constant 0 : index
    %c0_3 = arith.constant 0 : index
    %c0_4 = arith.constant 0 : index
    %3 = vector.load %arg2[%c0_2, %c0_3, %c0_4] : memref<3x384x128xbf16, #tpu.memory_space<vmem>>, vector<1x384x128xbf16>
    %4 = vector.shape_cast %3 : vector<1x384x128xbf16> to vector<384x128xbf16>
    %cst_5 = arith.constant dense<0.000000e+00> : vector<256x128xf32>
    %5 = tpu.matmul %2, %4, %cst_5 {dimension_numbers = #tpu.dot_dimension_numbers<[1], [0], [0], [1], [0, 0, 1, 1], [], []>} : vector<256x384xbf16>, vector<384x128xbf16>, vector<256x128xf32> -> vector<256x128xf32>
    %6 = arith.addf %0, %5 : vector<256x128xf32>
    %c0_6 = arith.constant 0 : index
    %c16 = arith.constant 16 : index
    %c0_7 = arith.constant 0 : index
    %7 = vector.load %arg1[%c0_6, %c16, %c0_7] : memref<1x288x384xbf16, #tpu.memory_space<vmem>>, vector<1x256x384xbf16>
    %8 = vector.shape_cast %7 : vector<1x256x384xbf16> to vector<256x384xbf16>
    %c1 = arith.constant 1 : index
    %c0_8 = arith.constant 0 : index
    %c0_9 = arith.constant 0 : index
    %9 = vector.load %arg2[%c1, %c0_8, %c0_9] : memref<3x384x128xbf16, #tpu.memory_space<vmem>>, vector<1x384x128xbf16>
    %10 = vector.shape_cast %9 : vector<1x384x128xbf16> to vector<384x128xbf16>
    %cst_10 = arith.constant dense<0.000000e+00> : vector<256x128xf32>
    %11 = tpu.matmul %8, %10, %cst_10 {dimension_numbers = #tpu.dot_dimension_numbers<[1], [0], [0], [1], [0, 0, 1, 1], [], []>} : vector<256x384xbf16>, vector<384x128xbf16>, vector<256x128xf32> -> vector<256x128xf32>
    %12 = arith.addf %6, %11 : vector<256x128xf32>
    %c0_11 = arith.constant 0 : index
    %c32 = arith.constant 32 : index
    %c0_12 = arith.constant 0 : index
    %13 = vector.load %arg1[%c0_11, %c32, %c0_12] : memref<1x288x384xbf16, #tpu.memory_space<vmem>>, vector<1x256x384xbf16>
    %14 = vector.shape_cast %13 : vector<1x256x384xbf16> to vector<256x384xbf16>
    %c2 = arith.constant 2 : index
    %c0_13 = arith.constant 0 : index
    %c0_14 = arith.constant 0 : index
    %15 = vector.load %arg2[%c2, %c0_13, %c0_14] : memref<3x384x128xbf16, #tpu.memory_space<vmem>>, vector<1x384x128xbf16>
    %16 = vector.shape_cast %15 : vector<1x384x128xbf16> to vector<384x128xbf16>
    %cst_15 = arith.constant dense<0.000000e+00> : vector<256x128xf32>
    %17 = tpu.matmul %14, %16, %cst_15 {dimension_numbers = #tpu.dot_dimension_numbers<[1], [0], [0], [1], [0, 0, 1, 1], [], []>} : vector<256x384xbf16>, vector<384x128xbf16>, vector<256x128xf32> -> vector<256x128xf32>
    %18 = arith.addf %12, %17 : vector<256x128xf32>
    %19 = arith.truncf %18 : vector<256x128xf32> to vector<256x128xbf16>
    %c0_16 = arith.constant 0 : index
    %c0_17 = arith.constant 0 : index
    %c0_18 = arith.constant 0 : index
    %20 = vector.load %arg3[%c0_16, %c0_17, %c0_18] : memref<1x256x128xbf16, #tpu.memory_space<vmem>>, vector<1x256x128xbf16>
    %21 = vector.shape_cast %20 : vector<1x256x128xbf16> to vector<256x128xbf16>
    %22 = vector.shape_cast %19 : vector<256x128xbf16> to vector<1x256x128xbf16>
    tpu.vector_store %arg3[%c0_16, %c0_17, %c0_18], %22 {strides = array<i32>} : memref<1x256x128xbf16, #tpu.memory_space<vmem>>, vector<1x256x128xbf16>,
    %cst_19 = arith.constant dense<0.000000e+00> : vector<128xf32>
    %23 = vector.multi_reduction <add>, %18, %cst_19 [0] : vector<256x128xf32> to vector<128xf32>
    %24 = vector.shape_cast %23 : vector<128xf32> to vector<1x128xf32>
    %cst_20 = arith.constant 3.906250e-03 : f32
    %25 = vector.broadcast %cst_20 : f32 to vector<1x128xf32>
    %26 = arith.mulf %24, %25 : vector<1x128xf32>
    %27 = vector.broadcast %26 : vector<1x128xf32> to vector<256x128xf32>
    %28 = arith.subf %18, %27 : vector<256x128xf32>
    %29 = arith.mulf %28, %28 : vector<256x128xf32>
    %cst_21 = arith.constant dense<0.000000e+00> : vector<128xf32>
    %30 = vector.multi_reduction <add>, %29, %cst_21 [0] : vector<256x128xf32> to vector<128xf32>
    %31 = vector.shape_cast %30 : vector<128xf32> to vector<1x128xf32>
    %32 = tpu.concatenate %24, %31 in 0 : vector<1x128xf32>, vector<1x128xf32> -> vector<2x128xf32>
    %c0_22 = arith.constant 0 : index
    %c0_23 = arith.constant 0 : index
    %c0_24 = arith.constant 0 : index
    %33 = vector.load %arg4[%c0_22, %c0_23, %c0_24] : memref<1x2x128xf32, #tpu.memory_space<vmem>>, vector<1x2x128xf32>
    %34 = vector.shape_cast %33 : vector<1x2x128xf32> to vector<2x128xf32>
    %35 = vector.shape_cast %32 : vector<2x128xf32> to vector<1x2x128xf32>
    tpu.vector_store %arg4[%c0_22, %c0_23, %c0_24], %35 {strides = array<i32>} : memref<1x2x128xf32, #tpu.memory_space<vmem>>, vector<1x2x128xf32>,
    return
  }
  func.func @transform_0(%arg0: i32) -> (i32, i32, i32) {
    %c0_i32 = arith.constant 0 : i32
    %c0_i32_0 = arith.constant 0 : i32
    %c0_i32_1 = arith.constant 0 : i32
    return %arg0, %c0_i32, %c0_i32_0 : i32, i32, i32
  }
  func.func @transform_1(%arg0: i32) -> (i32, i32, i32) {
    %c0_i32 = arith.constant 0 : i32
    %c0_i32_0 = arith.constant 0 : i32
    %c0_i32_1 = arith.constant 0 : i32
    %c0_i32_2 = arith.constant 0 : i32
    return %c0_i32, %c0_i32_0, %c0_i32_1 : i32, i32, i32
  }
  func.func @transform_2(%arg0: i32) -> (i32, i32, i32) {
    %c0_i32 = arith.constant 0 : i32
    %c0_i32_0 = arith.constant 0 : i32
    %c0_i32_1 = arith.constant 0 : i32
    return %arg0, %c0_i32, %c0_i32_0 : i32, i32, i32
  }
  func.func @transform_3(%arg0: i32) -> (i32, i32, i32) {
    %c0_i32 = arith.constant 0 : i32
    %c0_i32_0 = arith.constant 0 : i32
    %c0_i32_1 = arith.constant 0 : i32
    return %arg0, %c0_i32, %c0_i32_0 : i32, i32, i32
  }
}

module attributes {stable_mosaic.version = 11 : i64} {
  func.func @_bn_relu_kernel(%arg0: i32, %arg1: memref<512x128xbf16, #tpu.memory_space<vmem>>, %arg2: memref<1x128xf32, #tpu.memory_space<vmem>>, %arg3: memref<1x128xf32, #tpu.memory_space<vmem>>, %arg4: memref<512x128xbf16, #tpu.memory_space<vmem>>) attributes {dimension_semantics = [#tpu.dimension_semantics<parallel>], iteration_bounds = array<i64: 1>, scalar_prefetch = 0 : i64, scratch_operands = 0 : i64, tpu.core_type = #tpu.core_type<tc>, window_params = [{transform_indices = @transform_0, window_bounds = array<i64: 512, 128>}, {pipeline_mode = #tpu.pipeline_mode<synchronous>, transform_indices = @transform_1, window_bounds = array<i64: 1, 128>}, {pipeline_mode = #tpu.pipeline_mode<synchronous>, transform_indices = @transform_2, window_bounds = array<i64: 1, 128>}, {transform_indices = @transform_3, window_bounds = array<i64: 512, 128>}]} {
    %c0 = arith.constant 0 : index
    %c0_0 = arith.constant 0 : index
    %0 = vector.load %arg1[%c0, %c0_0] : memref<512x128xbf16, #tpu.memory_space<vmem>>, vector<512x128xbf16>
    %1 = arith.extf %0 : vector<512x128xbf16> to vector<512x128xf32>
    %c0_1 = arith.constant 0 : index
    %c0_2 = arith.constant 0 : index
    %2 = vector.load %arg2[%c0_1, %c0_2] : memref<1x128xf32, #tpu.memory_space<vmem>>, vector<1x128xf32>
    %3 = vector.broadcast %2 : vector<1x128xf32> to vector<512x128xf32>
    %4 = arith.mulf %1, %3 : vector<512x128xf32>
    %c0_3 = arith.constant 0 : index
    %c0_4 = arith.constant 0 : index
    %5 = vector.load %arg3[%c0_3, %c0_4] : memref<1x128xf32, #tpu.memory_space<vmem>>, vector<1x128xf32>
    %6 = vector.broadcast %5 : vector<1x128xf32> to vector<512x128xf32>
    %7 = arith.addf %4, %6 : vector<512x128xf32>
    %cst = arith.constant 0.000000e+00 : f32
    %8 = vector.broadcast %cst : f32 to vector<512x128xf32>
    %9 = arith.maximumf %7, %8 : vector<512x128xf32>
    %10 = arith.truncf %9 : vector<512x128xf32> to vector<512x128xbf16>
    %c0_5 = arith.constant 0 : index
    %c0_6 = arith.constant 0 : index
    %11 = vector.load %arg4[%c0_5, %c0_6] : memref<512x128xbf16, #tpu.memory_space<vmem>>, vector<512x128xbf16>
    tpu.vector_store %arg4[%c0_5, %c0_6], %10 {strides = array<i32>} : memref<512x128xbf16, #tpu.memory_space<vmem>>, vector<512x128xbf16>,
    return
  }
  func.func @transform_0(%arg0: i32) -> (i32, i32) {
    %c0_i32 = arith.constant 0 : i32
    %c0_i32_0 = arith.constant 0 : i32
    return %arg0, %c0_i32 : i32, i32
  }
  func.func @transform_1(%arg0: i32) -> (i32, i32) {
    %c0_i32 = arith.constant 0 : i32
    %c0_i32_0 = arith.constant 0 : i32
    %c0_i32_1 = arith.constant 0 : i32
    return %c0_i32, %c0_i32_0 : i32, i32
  }
  func.func @transform_2(%arg0: i32) -> (i32, i32) {
    %c0_i32 = arith.constant 0 : i32
    %c0_i32_0 = arith.constant 0 : i32
    %c0_i32_1 = arith.constant 0 : i32
    return %c0_i32, %c0_i32_0 : i32, i32
  }
  func.func @transform_3(%arg0: i32) -> (i32, i32) {
    %c0_i32 = arith.constant 0 : i32
    %c0_i32_0 = arith.constant 0 : i32
    return %arg0, %c0_i32 : i32, i32
  }
}

module attributes {stable_mosaic.version = 11 : i64} {
  func.func @_bn_res_relu_kernel(%arg0: i32, %arg1: memref<512x128xbf16, #tpu.memory_space<vmem>>, %arg2: memref<512x128xbf16, #tpu.memory_space<vmem>>, %arg3: memref<1x128xf32, #tpu.memory_space<vmem>>, %arg4: memref<1x128xf32, #tpu.memory_space<vmem>>, %arg5: memref<512x128xf32, #tpu.memory_space<vmem>>) attributes {dimension_semantics = [#tpu.dimension_semantics<parallel>], iteration_bounds = array<i64: 1>, scalar_prefetch = 0 : i64, scratch_operands = 0 : i64, tpu.core_type = #tpu.core_type<tc>, window_params = [{transform_indices = @transform_0, window_bounds = array<i64: 512, 128>}, {transform_indices = @transform_1, window_bounds = array<i64: 512, 128>}, {pipeline_mode = #tpu.pipeline_mode<synchronous>, transform_indices = @transform_2, window_bounds = array<i64: 1, 128>}, {pipeline_mode = #tpu.pipeline_mode<synchronous>, transform_indices = @transform_3, window_bounds = array<i64: 1, 128>}, {transform_indices = @transform_4, window_bounds = array<i64: 512, 128>}]} {
    %c0 = arith.constant 0 : index
    %c0_0 = arith.constant 0 : index
    %0 = vector.load %arg1[%c0, %c0_0] : memref<512x128xbf16, #tpu.memory_space<vmem>>, vector<512x128xbf16>
    %1 = arith.extf %0 : vector<512x128xbf16> to vector<512x128xf32>
    %c0_1 = arith.constant 0 : index
    %c0_2 = arith.constant 0 : index
    %2 = vector.load %arg3[%c0_1, %c0_2] : memref<1x128xf32, #tpu.memory_space<vmem>>, vector<1x128xf32>
    %3 = vector.broadcast %2 : vector<1x128xf32> to vector<512x128xf32>
    %4 = arith.mulf %1, %3 : vector<512x128xf32>
    %c0_3 = arith.constant 0 : index
    %c0_4 = arith.constant 0 : index
    %5 = vector.load %arg4[%c0_3, %c0_4] : memref<1x128xf32, #tpu.memory_space<vmem>>, vector<1x128xf32>
    %6 = vector.broadcast %5 : vector<1x128xf32> to vector<512x128xf32>
    %7 = arith.addf %4, %6 : vector<512x128xf32>
    %c0_5 = arith.constant 0 : index
    %c0_6 = arith.constant 0 : index
    %8 = vector.load %arg2[%c0_5, %c0_6] : memref<512x128xbf16, #tpu.memory_space<vmem>>, vector<512x128xbf16>
    %9 = arith.extf %8 : vector<512x128xbf16> to vector<512x128xf32>
    %10 = arith.addf %9, %7 : vector<512x128xf32>
    %cst = arith.constant 0.000000e+00 : f32
    %11 = vector.broadcast %cst : f32 to vector<512x128xf32>
    %12 = arith.maximumf %10, %11 : vector<512x128xf32>
    %c0_7 = arith.constant 0 : index
    %c0_8 = arith.constant 0 : index
    %13 = vector.load %arg5[%c0_7, %c0_8] : memref<512x128xf32, #tpu.memory_space<vmem>>, vector<512x128xf32>
    tpu.vector_store %arg5[%c0_7, %c0_8], %12 {strides = array<i32>} : memref<512x128xf32, #tpu.memory_space<vmem>>, vector<512x128xf32>,
    return
  }
  func.func @transform_0(%arg0: i32) -> (i32, i32) {
    %c0_i32 = arith.constant 0 : i32
    %c0_i32_0 = arith.constant 0 : i32
    return %arg0, %c0_i32 : i32, i32
  }
  func.func @transform_1(%arg0: i32) -> (i32, i32) {
    %c0_i32 = arith.constant 0 : i32
    %c0_i32_0 = arith.constant 0 : i32
    return %arg0, %c0_i32 : i32, i32
  }
  func.func @transform_2(%arg0: i32) -> (i32, i32) {
    %c0_i32 = arith.constant 0 : i32
    %c0_i32_0 = arith.constant 0 : i32
    %c0_i32_1 = arith.constant 0 : i32
    return %c0_i32, %c0_i32_0 : i32, i32
  }
  func.func @transform_3(%arg0: i32) -> (i32, i32) {
    %c0_i32 = arith.constant 0 : i32
    %c0_i32_0 = arith.constant 0 : i32
    %c0_i32_1 = arith.constant 0 : i32
    return %c0_i32, %c0_i32_0 : i32, i32
  }
  func.func @transform_4(%arg0: i32) -> (i32, i32) {
    %c0_i32 = arith.constant 0 : i32
    %c0_i32_0 = arith.constant 0 : i32
    return %arg0, %c0_i32 : i32, i32
  }
}

</mosaic_0001>

<llo_original>
// kernel: restnet_basic_block.5
$region0: #{restnet_basic_block.5}
  #allocation0 [shape = 'u32[]', space=smem, size = 0x4, offset = 0x4, fixed_abs, tag = 'smem constant byte address 0x4 - core index']
  #allocation1 [shape = 'u32[144,128]{1,0:T(1,128)}', space=vmem, size = 0x12000, scoped, tag = 'internal scratch']
  %s0 = inlined_call_operand.vmem [shape: bf16[512,128], index: 0, kind: input, shape index: {}]
  %s1 = inlined_call_operand.vmem [shape: f32[1,128], index: 1, kind: input, shape index: {}]
  %s2 = inlined_call_operand.vmem [shape: f32[1,128], index: 2, kind: input, shape index: {}]
  %s3 = inlined_call_operand.vmem [shape: bf16[512,128], index: 3, kind: output, shape index: {}]
  %s4 = sld [smem:[#allocation0]]
  $region22: #{restnet_basic_block.5} parent=0
    _
  %s6 = ssub.s32 1, %s4
  %s7 = scalar_select 0, %s6, %s4
  // Predicated region
  $region2: #{restnet_basic_block.5} parent=0 // pred_check
    _
  $region3: #{restnet_basic_block.5} parent=0 // pred_check_branch
    %9 = sbr.rel (0) target = $region5
  $region4: #{restnet_basic_block.5} parent=0 // pred_region
    _
  $region5: #{restnet_basic_block.5} parent=0 // pred_fallthru
    _
  // Predicated region
  $region6: #{restnet_basic_block.5} parent=0 // pred_check
    _
  $region7: #{restnet_basic_block.5} parent=0 // pred_check_branch
    %11 = sbr.rel (0) target = $region9
  $region8: #{restnet_basic_block.5} parent=0 // pred_region
    _
  $region9: #{restnet_basic_block.5} parent=0 // pred_fallthru
    _
  // Predicated region
  $region10: #{restnet_basic_block.5} parent=0 // pred_check
    _
  $region11: #{restnet_basic_block.5} parent=0 // pred_check_branch
    %13 = sbr.rel (0) target = $region13
  $region12: #{restnet_basic_block.5} parent=0 // pred_region
    _
  $region13: #{restnet_basic_block.5} parent=0 // pred_fallthru
    _
  %v14 = vld [vmem:[%s0] sm:$0xf]
  %v15 = vld [vmem:[%s0 + $0x4] sm:$0xf]
  %v16 = vld [vmem:[%s0 + $0x8] sm:$0xf]
  %v17 = vld [vmem:[%s0 + $0xc] sm:$0xf]
  %v18 = vld [vmem:[%s0 + $0x10] sm:$0xf]
  %v19 = vld [vmem:[%s0 + $0x14] sm:$0xf]
  %v20 = vld [vmem:[%s0 + $0x18] sm:$0xf]
  %v21 = vld [vmem:[%s0 + $0x1c] sm:$0xf]
  %v22 = vld [vmem:[%s0 + $0x20] sm:$0xf]
  %v23 = vld [vmem:[%s0 + $0x24] sm:$0xf]
  %v24 = vld [vmem:[%s0 + $0x28] sm:$0xf]
  %v25 = vld [vmem:[%s0 + $0x2c] sm:$0xf]
  %v26 = vld [vmem:[%s0 + $0x30] sm:$0xf]
  %v27 = vld [vmem:[%s0 + $0x34] sm:$0xf]
  %v28 = vld [vmem:[%s0 + $0x38] sm:$0xf]
  %v29 = vld [vmem:[%s0 + $0x3c] sm:$0xf]
  %v30 = vld [vmem:[%s0 + $0x40] sm:$0xf]
  %v31 = vld [vmem:[%s0 + $0x44] sm:$0xf]
  %v32 = vld [vmem:[%s0 + $0x48] sm:$0xf]
  %v33 = vld [vmem:[%s0 + $0x4c] sm:$0xf]
  %v34 = vld [vmem:[%s0 + $0x50] sm:$0xf]
  %v35 = vld [vmem:[%s0 + $0x54] sm:$0xf]
  %v36 = vld [vmem:[%s0 + $0x58] sm:$0xf]
  %v37 = vld [vmem:[%s0 + $0x5c] sm:$0xf]
  %v38 = vld [vmem:[%s0 + $0x60] sm:$0xf]
  %v39 = vld [vmem:[%s0 + $0x64] sm:$0xf]
  %v40 = vld [vmem:[%s0 + $0x68] sm:$0xf]
  %v41 = vld [vmem:[%s0 + $0x6c] sm:$0xf]
  %v42 = vld [vmem:[%s0 + $0x70] sm:$0xf]
  %v43 = vld [vmem:[%s0 + $0x74] sm:$0xf]
  %v44 = vld [vmem:[%s0 + $0x78] sm:$0xf]
  %v45 = vld [vmem:[%s0 + $0x7c] sm:$0xf]
  %v46 = vld [vmem:[%s0 + $0x80] sm:$0xf]
  %v47 = vld [vmem:[%s0 + $0x84] sm:$0xf]
  %v48 = vld [vmem:[%s0 + $0x88] sm:$0xf]
  %v49 = vld [vmem:[%s0 + $0x8c] sm:$0xf]
  %v50 = vld [vmem:[%s0 + $0x90] sm:$0xf]
  %v51 = vld [vmem:[%s0 + $0x94] sm:$0xf]
  %v52 = vld [vmem:[%s0 + $0x98] sm:$0xf]
  %v53 = vld [vmem:[%s0 + $0x9c] sm:$0xf]
  %v54 = vld [vmem:[%s0 + $0xa0] sm:$0xf]
  %v55 = vld [vmem:[%s0 + $0xa4] sm:$0xf]
  %v56 = vld [vmem:[%s0 + $0xa8] sm:$0xf]
  %v57 = vld [vmem:[%s0 + $0xac] sm:$0xf]
  %v58 = vld [vmem:[%s0 + $0xb0] sm:$0xf]
  %v59 = vld [vmem:[%s0 + $0xb4] sm:$0xf]
  %v60 = vld [vmem:[%s0 + $0xb8] sm:$0xf]
  %v61 = vld [vmem:[%s0 + $0xbc] sm:$0xf]
  %v62 = vld [vmem:[%s0 + $0xc0] sm:$0xf]
  %v63 = vld [vmem:[%s0 + $0xc4] sm:$0xf]
  %v64 = vld [vmem:[%s0 + $0xc8] sm:$0xf]
  %v65 = vld [vmem:[%s0 + $0xcc] sm:$0xf]
  %v66 = vld [vmem:[%s0 + $0xd0] sm:$0xf]
  %v67 = vld [vmem:[%s0 + $0xd4] sm:$0xf]
  %v68 = vld [vmem:[%s0 + $0xd8] sm:$0xf]
  %v69 = vld [vmem:[%s0 + $0xdc] sm:$0xf]
  %v70 = vld [vmem:[%s0 + $0xe0] sm:$0xf]
  %v71 = vld [vmem:[%s0 + $0xe4] sm:$0xf]
  %v72 = vld [vmem:[%s0 + $0xe8] sm:$0xf]
  %v73 = vld [vmem:[%s0 + $0xec] sm:$0xf]
  %v74 = vld [vmem:[%s0 + $0xf0] sm:$0xf]
  %v75 = vld [vmem:[%s0 + $0xf4] sm:$0xf]
  %v76 = vld [vmem:[%s0 + $0xf8] sm:$0xf]
  %v77 = vld [vmem:[%s0 + $0xfc] sm:$0xf]
  %v78 = vunpack.c.l.bf16 %v14
  %v79 = vunpack.c.l.bf16 %v15
  %v80 = vunpack.c.l.bf16 %v16
  %v81 = vunpack.c.l.bf16 %v17
  %v82 = vunpack.c.l.bf16 %v18
  %v83 = vunpack.c.l.bf16 %v19
  %v84 = vunpack.c.l.bf16 %v20
  %v85 = vunpack.c.l.bf16 %v21
  %v86 = vunpack.c.l.bf16 %v22
  %v87 = vunpack.c.l.bf16 %v23
  %v88 = vunpack.c.l.bf16 %v24
  %v89 = vunpack.c.l.bf16 %v25
  %v90 = vunpack.c.l.bf16 %v26
  %v91 = vunpack.c.l.bf16 %v27
  %v92 = vunpack.c.l.bf16 %v28
  %v93 = vunpack.c.l.bf16 %v29
  %v94 = vunpack.c.l.bf16 %v30
  %v95 = vunpack.c.l.bf16 %v31
  %v96 = vunpack.c.l.bf16 %v32
  %v97 = vunpack.c.l.bf16 %v33
  %v98 = vunpack.c.l.bf16 %v34
  %v99 = vunpack.c.l.bf16 %v35
  %v100 = vunpack.c.l.bf16 %v36
  %v101 = vunpack.c.l.bf16 %v37
  %v102 = vunpack.c.l.bf16 %v38
  %v103 = vunpack.c.l.bf16 %v39
  %v104 = vunpack.c.l.bf16 %v40
  %v105 = vunpack.c.l.bf16 %v41
  %v106 = vunpack.c.l.bf16 %v42
  %v107 = vunpack.c.l.bf16 %v43
  %v108 = vunpack.c.l.bf16 %v44
  %v109 = vunpack.c.l.bf16 %v45
  %v110 = vunpack.c.l.bf16 %v46
  %v111 = vunpack.c.l.bf16 %v47
  %v112 = vunpack.c.l.bf16 %v48
  %v113 = vunpack.c.l.bf16 %v49
  %v114 = vunpack.c.l.bf16 %v50
  %v115 = vunpack.c.l.bf16 %v51
  %v116 = vunpack.c.l.bf16 %v52
  %v117 = vunpack.c.l.bf16 %v53
  %v118 = vunpack.c.l.bf16 %v54
  %v119 = vunpack.c.l.bf16 %v55
  %v120 = vunpack.c.l.bf16 %v56
  %v121 = vunpack.c.l.bf16 %v57
  %v122 = vunpack.c.l.bf16 %v58
  %v123 = vunpack.c.l.bf16 %v59
  %v124 = vunpack.c.l.bf16 %v60
  %v125 = vunpack.c.l.bf16 %v61
  %v126 = vunpack.c.l.bf16 %v62
  %v127 = vunpack.c.l.bf16 %v63
  %v128 = vunpack.c.l.bf16 %v64
  %v129 = vunpack.c.l.bf16 %v65
  %v130 = vunpack.c.l.bf16 %v66
  %v131 = vunpack.c.l.bf16 %v67
  %v132 = vunpack.c.l.bf16 %v68
  %v133 = vunpack.c.l.bf16 %v69
  %v134 = vunpack.c.l.bf16 %v70
  %v135 = vunpack.c.l.bf16 %v71
  %v136 = vunpack.c.l.bf16 %v72
  %v137 = vunpack.c.l.bf16 %v73
  %v138 = vunpack.c.l.bf16 %v74
  %v139 = vunpack.c.l.bf16 %v75
  %v140 = vunpack.c.l.bf16 %v76
  %v141 = vunpack.c.l.bf16 %v77
  %v142 = vld [vmem:[%s1] sm:$0x1]
  %v144 = vlaneseq
  %v145 = vshrl.u32 %v144, 7
  %v146 = vsub.s32 0, %v145
  %v147 = vrot.slane %v142, %v146
  %v149 = vmul.f32 %v78, %v147
  %v150 = vmul.f32 %v79, %v147
  %v151 = vmul.f32 %v80, %v147
  %v152 = vmul.f32 %v81, %v147
  %v153 = vmul.f32 %v82, %v147
  %v154 = vmul.f32 %v83, %v147
  %v155 = vmul.f32 %v84, %v147
  %v156 = vmul.f32 %v85, %v147
  %v157 = vmul.f32 %v86, %v147
  %v158 = vmul.f32 %v87, %v147
  %v159 = vmul.f32 %v88, %v147
  %v160 = vmul.f32 %v89, %v147
  %v161 = vmul.f32 %v90, %v147
  %v162 = vmul.f32 %v91, %v147
  %v163 = vmul.f32 %v92, %v147
  %v164 = vmul.f32 %v93, %v147
  %v165 = vmul.f32 %v94, %v147
  %v166 = vmul.f32 %v95, %v147
  %v167 = vmul.f32 %v96, %v147
  %v168 = vmul.f32 %v97, %v147
  %v169 = vmul.f32 %v98, %v147
  %v170 = vmul.f32 %v99, %v147
  %v171 = vmul.f32 %v100, %v147
  %v172 = vmul.f32 %v101, %v147
  %v173 = vmul.f32 %v102, %v147
  %v174 = vmul.f32 %v103, %v147
  %v175 = vmul.f32 %v104, %v147
  %v176 = vmul.f32 %v105, %v147
  %v177 = vmul.f32 %v106, %v147
  %v178 = vmul.f32 %v107, %v147
  %v179 = vmul.f32 %v108, %v147
  %v180 = vmul.f32 %v109, %v147
  %v181 = vmul.f32 %v110, %v147
  %v182 = vmul.f32 %v111, %v147
  %v183 = vmul.f32 %v112, %v147
  %v184 = vmul.f32 %v113, %v147
  %v185 = vmul.f32 %v114, %v147
  %v186 = vmul.f32 %v115, %v147
  %v187 = vmul.f32 %v116, %v147
  %v188 = vmul.f32 %v117, %v147
  %v189 = vmul.f32 %v118, %v147
  %v190 = vmul.f32 %v119, %v147
  %v191 = vmul.f32 %v120, %v147
  %v192 = vmul.f32 %v121, %v147
  %v193 = vmul.f32 %v122, %v147
  %v194 = vmul.f32 %v123, %v147
  %v195 = vmul.f32 %v124, %v147
  %v196 = vmul.f32 %v125, %v147
  %v197 = vmul.f32 %v126, %v147
  %v198 = vmul.f32 %v127, %v147
  %v199 = vmul.f32 %v128, %v147
  %v200 = vmul.f32 %v129, %v147
  %v201 = vmul.f32 %v130, %v147
  %v202 = vmul.f32 %v131, %v147
  %v203 = vmul.f32 %v132, %v147
  %v204 = vmul.f32 %v133, %v147
  %v205 = vmul.f32 %v134, %v147
  %v206 = vmul.f32 %v135, %v147
  %v207 = vmul.f32 %v136, %v147
  %v208 = vmul.f32 %v137, %v147
  %v209 = vmul.f32 %v138, %v147
  %v210 = vmul.f32 %v139, %v147
  %v211 = vmul.f32 %v140, %v147
  %v212 = vmul.f32 %v141, %v147
  %v213 = vld [vmem:[%s2] sm:$0x1]
  %v215 = vlaneseq
  %v216 = vshrl.u32 %v215, 7
  %v217 = vsub.s32 0, %v216
  %v218 = vrot.slane %v213, %v217
  %v220 = vadd.f32 %v149, %v218
  %v221 = vadd.f32 %v150, %v218
  %v222 = vadd.f32 %v151, %v218
  %v223 = vadd.f32 %v152, %v218
  %v224 = vadd.f32 %v153, %v218
  %v225 = vadd.f32 %v154, %v218
  %v226 = vadd.f32 %v155, %v218
  %v227 = vadd.f32 %v156, %v218
  %v228 = vadd.f32 %v157, %v218
  %v229 = vadd.f32 %v158, %v218
  %v230 = vadd.f32 %v159, %v218
  %v231 = vadd.f32 %v160, %v218
  %v232 = vadd.f32 %v161, %v218
  %v233 = vadd.f32 %v162, %v218
  %v234 = vadd.f32 %v163, %v218
  %v235 = vadd.f32 %v164, %v218
  %v236 = vadd.f32 %v165, %v218
  %v237 = vadd.f32 %v166, %v218
  %v238 = vadd.f32 %v167, %v218
  %v239 = vadd.f32 %v168, %v218
  %v240 = vadd.f32 %v169, %v218
  %v241 = vadd.f32 %v170, %v218
  %v242 = vadd.f32 %v171, %v218
  %v243 = vadd.f32 %v172, %v218
  %v244 = vadd.f32 %v173, %v218
  %v245 = vadd.f32 %v174, %v218
  %v246 = vadd.f32 %v175, %v218
  %v247 = vadd.f32 %v176, %v218
  %v248 = vadd.f32 %v177, %v218
  %v249 = vadd.f32 %v178, %v218
  %v250 = vadd.f32 %v179, %v218
  %v251 = vadd.f32 %v180, %v218
  %v252 = vadd.f32 %v181, %v218
  %v253 = vadd.f32 %v182, %v218
  %v254 = vadd.f32 %v183, %v218
  %v255 = vadd.f32 %v184, %v218
  %v256 = vadd.f32 %v185, %v218
  %v257 = vadd.f32 %v186, %v218
  %v258 = vadd.f32 %v187, %v218
  %v259 = vadd.f32 %v188, %v218
  %v260 = vadd.f32 %v189, %v218
  %v261 = vadd.f32 %v190, %v218
  %v262 = vadd.f32 %v191, %v218
  %v263 = vadd.f32 %v192, %v218
  %v264 = vadd.f32 %v193, %v218
  %v265 = vadd.f32 %v194, %v218
  %v266 = vadd.f32 %v195, %v218
  %v267 = vadd.f32 %v196, %v218
  %v268 = vadd.f32 %v197, %v218
  %v269 = vadd.f32 %v198, %v218
  %v270 = vadd.f32 %v199, %v218
  %v271 = vadd.f32 %v200, %v218
  %v272 = vadd.f32 %v201, %v218
  %v273 = vadd.f32 %v202, %v218
  %v274 = vadd.f32 %v203, %v218
  %v275 = vadd.f32 %v204, %v218
  %v276 = vadd.f32 %v205, %v218
  %v277 = vadd.f32 %v206, %v218
  %v278 = vadd.f32 %v207, %v218
  %v279 = vadd.f32 %v208, %v218
  %v280 = vadd.f32 %v209, %v218
  %v281 = vadd.f32 %v210, %v218
  %v282 = vadd.f32 %v211, %v218
  %v283 = vadd.f32 %v212, %v218
  %v284 = vmax.f32 %v220, 0.0
  %v285 = vmax.f32 %v221, 0.0
  %v286 = vmax.f32 %v222, 0.0
  %v287 = vmax.f32 %v223, 0.0
  %v288 = vmax.f32 %v224, 0.0
  %v289 = vmax.f32 %v225, 0.0
  %v290 = vmax.f32 %v226, 0.0
  %v291 = vmax.f32 %v227, 0.0
  %v292 = vmax.f32 %v228, 0.0
  %v293 = vmax.f32 %v229, 0.0
  %v294 = vmax.f32 %v230, 0.0
  %v295 = vmax.f32 %v231, 0.0
  %v296 = vmax.f32 %v232, 0.0
  %v297 = vmax.f32 %v233, 0.0
  %v298 = vmax.f32 %v234, 0.0
  %v299 = vmax.f32 %v235, 0.0
  %v300 = vmax.f32 %v236, 0.0
  %v301 = vmax.f32 %v237, 0.0
  %v302 = vmax.f32 %v238, 0.0
  %v303 = vmax.f32 %v239, 0.0
  %v304 = vmax.f32 %v240, 0.0
  %v305 = vmax.f32 %v241, 0.0
  %v306 = vmax.f32 %v242, 0.0
  %v307 = vmax.f32 %v243, 0.0
  %v308 = vmax.f32 %v244, 0.0
  %v309 = vmax.f32 %v245, 0.0
  %v310 = vmax.f32 %v246, 0.0
  %v311 = vmax.f32 %v247, 0.0
  %v312 = vmax.f32 %v248, 0.0
  %v313 = vmax.f32 %v249, 0.0
  %v314 = vmax.f32 %v250, 0.0
  %v315 = vmax.f32 %v251, 0.0
  %v316 = vmax.f32 %v252, 0.0
  %v317 = vmax.f32 %v253, 0.0
  %v318 = vmax.f32 %v254, 0.0
  %v319 = vmax.f32 %v255, 0.0
  %v320 = vmax.f32 %v256, 0.0
  %v321 = vmax.f32 %v257, 0.0
  %v322 = vmax.f32 %v258, 0.0
  %v323 = vmax.f32 %v259, 0.0
  %v324 = vmax.f32 %v260, 0.0
  %v325 = vmax.f32 %v261, 0.0
  %v326 = vmax.f32 %v262, 0.0
  %v327 = vmax.f32 %v263, 0.0
  %v328 = vmax.f32 %v264, 0.0
  %v329 = vmax.f32 %v265, 0.0
  %v330 = vmax.f32 %v266, 0.0
  %v331 = vmax.f32 %v267, 0.0
  %v332 = vmax.f32 %v268, 0.0
  %v333 = vmax.f32 %v269, 0.0
  %v334 = vmax.f32 %v270, 0.0
  %v335 = vmax.f32 %v271, 0.0
  %v336 = vmax.f32 %v272, 0.0
  %v337 = vmax.f32 %v273, 0.0
  %v338 = vmax.f32 %v274, 0.0
  %v339 = vmax.f32 %v275, 0.0
  %v340 = vmax.f32 %v276, 0.0
  %v341 = vmax.f32 %v277, 0.0
  %v342 = vmax.f32 %v278, 0.0
  %v343 = vmax.f32 %v279, 0.0
  %v344 = vmax.f32 %v280, 0.0
  %v345 = vmax.f32 %v281, 0.0
  %v346 = vmax.f32 %v282, 0.0
  %v347 = vmax.f32 %v283, 0.0
  %v348 = vpack.c.bf16 %v285, %v284
  %v349 = vpack.c.bf16 %v287, %v286
  %v350 = vpack.c.bf16 %v289, %v288
  %v351 = vpack.c.bf16 %v291, %v290
  %v352 = vpack.c.bf16 %v293, %v292
  %v353 = vpack.c.bf16 %v295, %v294
  %v354 = vpack.c.bf16 %v297, %v296
  %v355 = vpack.c.bf16 %v299, %v298
  %v356 = vpack.c.bf16 %v301, %v300
  %v357 = vpack.c.bf16 %v303, %v302
  %v358 = vpack.c.bf16 %v305, %v304
  %v359 = vpack.c.bf16 %v307, %v306
  %v360 = vpack.c.bf16 %v309, %v308
  %v361 = vpack.c.bf16 %v311, %v310
  %v362 = vpack.c.bf16 %v313, %v312
  %v363 = vpack.c.bf16 %v315, %v314
  %v364 = vpack.c.bf16 %v317, %v316
  %v365 = vpack.c.bf16 %v319, %v318
  %v366 = vpack.c.bf16 %v321, %v320
  %v367 = vpack.c.bf16 %v323, %v322
  %v368 = vpack.c.bf16 %v325, %v324
  %v369 = vpack.c.bf16 %v327, %v326
  %v370 = vpack.c.bf16 %v329, %v328
  %v371 = vpack.c.bf16 %v331, %v330
  %v372 = vpack.c.bf16 %v333, %v332
  %v373 = vpack.c.bf16 %v335, %v334
  %v374 = vpack.c.bf16 %v337, %v336
  %v375 = vpack.c.bf16 %v339, %v338
  %v376 = vpack.c.bf16 %v341, %v340
  %v377 = vpack.c.bf16 %v343, %v342
  %v378 = vpack.c.bf16 %v345, %v344
  %v379 = vpack.c.bf16 %v347, %v346
  %v412 = vunpack.c.l.b16 %v348
  %v413 = vunpack.c.h.b16 %v348
  %v414 = vunpack.c.l.b16 %v349
  %v415 = vunpack.c.h.b16 %v349
  %v416 = vunpack.c.l.b16 %v350
  %v417 = vunpack.c.h.b16 %v350
  %v418 = vunpack.c.l.b16 %v351
  %v419 = vunpack.c.h.b16 %v351
  %v420 = vunpack.c.l.b16 %v352
  %v421 = vunpack.c.h.b16 %v352
  %v422 = vunpack.c.l.b16 %v353
  %v423 = vunpack.c.h.b16 %v353
  %v424 = vunpack.c.l.b16 %v354
  %v425 = vunpack.c.h.b16 %v354
  %v426 = vunpack.c.l.b16 %v355
  %v427 = vunpack.c.h.b16 %v355
  %v428 = vunpack.c.l.b16 %v356
  %v429 = vunpack.c.h.b16 %v356
  %v430 = vunpack.c.l.b16 %v357
  %v431 = vunpack.c.h.b16 %v357
  %v432 = vunpack.c.l.b16 %v358
  %v433 = vunpack.c.h.b16 %v358
  %v434 = vunpack.c.l.b16 %v359
  %v435 = vunpack.c.h.b16 %v359
  %v436 = vunpack.c.l.b16 %v360
  %v437 = vunpack.c.h.b16 %v360
  %v438 = vunpack.c.l.b16 %v361
  %v439 = vunpack.c.h.b16 %v361
  %v440 = vunpack.c.l.b16 %v362
  %v441 = vunpack.c.h.b16 %v362
  %v442 = vunpack.c.l.b16 %v363
  %v443 = vunpack.c.h.b16 %v363
  %v444 = vunpack.c.l.b16 %v364
  %v445 = vunpack.c.h.b16 %v364
  %v446 = vunpack.c.l.b16 %v365
  %v447 = vunpack.c.h.b16 %v365
  %v448 = vunpack.c.l.b16 %v366
  %v449 = vunpack.c.h.b16 %v366
  %v450 = vunpack.c.l.b16 %v367
  %v451 = vunpack.c.h.b16 %v367
  %v452 = vunpack.c.l.b16 %v368
  %v453 = vunpack.c.h.b16 %v368
  %v454 = vunpack.c.l.b16 %v369
  %v455 = vunpack.c.h.b16 %v369
  %v456 = vunpack.c.l.b16 %v370
  %v457 = vunpack.c.h.b16 %v370
  %v458 = vunpack.c.l.b16 %v371
  %v459 = vunpack.c.h.b16 %v371
  %v460 = vunpack.c.l.b16 %v372
  %v461 = vunpack.c.h.b16 %v372
  %v462 = vunpack.c.l.b16 %v373
  %v463 = vunpack.c.h.b16 %v373
  %v464 = vunpack.c.l.b16 %v374
  %v465 = vunpack.c.h.b16 %v374
  %v466 = vunpack.c.l.b16 %v375
  %v467 = vunpack.c.h.b16 %v375
  %v468 = vunpack.c.l.b16 %v376
  %v469 = vunpack.c.h.b16 %v376
  %v470 = vunpack.c.l.b16 %v377
  %v471 = vunpack.c.h.b16 %v377
  %v472 = vunpack.c.l.b16 %v378
  %v473 = vunpack.c.h.b16 %v378
  %v474 = vunpack.c.l.b16 %v379
  %v475 = vunpack.c.h.b16 %v379
  %v476 = vpack.c.b16 %v412, %v412
  %v477 = vpack.c.b16 %v413, %v413
  %v478 = vpack.c.b16 %v414, %v414
  %v479 = vpack.c.b16 %v415, %v415
  %v480 = vpack.c.b16 %v416, %v416
  %v481 = vpack.c.b16 %v417, %v417
  %v482 = vpack.c.b16 %v418, %v418
  %v483 = vpack.c.b16 %v419, %v419
  %v484 = vpack.c.b16 %v420, %v420
  %v485 = vpack.c.b16 %v421, %v421
  %v486 = vpack.c.b16 %v422, %v422
  %v487 = vpack.c.b16 %v423, %v423
  %v488 = vpack.c.b16 %v424, %v424
  %v489 = vpack.c.b16 %v425, %v425
  %v490 = vpack.c.b16 %v426, %v426
  %v491 = vpack.c.b16 %v427, %v427
  %v492 = vpack.c.b16 %v428, %v428
  %v493 = vpack.c.b16 %v429, %v429
  %v494 = vpack.c.b16 %v430, %v430
  %v495 = vpack.c.b16 %v431, %v431
  %v496 = vpack.c.b16 %v432, %v432
  %v497 = vpack.c.b16 %v433, %v433
  %v498 = vpack.c.b16 %v434, %v434
  %v499 = vpack.c.b16 %v435, %v435
  %v500 = vpack.c.b16 %v436, %v436
  %v501 = vpack.c.b16 %v437, %v437
  %v502 = vpack.c.b16 %v438, %v438
  %v503 = vpack.c.b16 %v439, %v439
  %v504 = vpack.c.b16 %v440, %v440
  %v505 = vpack.c.b16 %v441, %v441
  %v506 = vpack.c.b16 %v442, %v442
  %v507 = vpack.c.b16 %v443, %v443
  %v508 = vpack.c.b16 %v444, %v444
  %v509 = vpack.c.b16 %v445, %v445
  %v510 = vpack.c.b16 %v446, %v446
  %v511 = vpack.c.b16 %v447, %v447
  %v512 = vpack.c.b16 %v448, %v448
  %v513 = vpack.c.b16 %v449, %v449
  %v514 = vpack.c.b16 %v450, %v450
  %v515 = vpack.c.b16 %v451, %v451
  %v516 = vpack.c.b16 %v452, %v452
  %v517 = vpack.c.b16 %v453, %v453
  %v518 = vpack.c.b16 %v454, %v454
  %v519 = vpack.c.b16 %v455, %v455
  %v520 = vpack.c.b16 %v456, %v456
  %v521 = vpack.c.b16 %v457, %v457
  %v522 = vpack.c.b16 %v458, %v458
  %v523 = vpack.c.b16 %v459, %v459
  %v524 = vpack.c.b16 %v460, %v460
  %v525 = vpack.c.b16 %v461, %v461
  %v526 = vpack.c.b16 %v462, %v462
  %v527 = vpack.c.b16 %v463, %v463
  %v528 = vpack.c.b16 %v464, %v464
  %v529 = vpack.c.b16 %v465, %v465
  %v530 = vpack.c.b16 %v466, %v466
  %v531 = vpack.c.b16 %v467, %v467
  %v532 = vpack.c.b16 %v468, %v468
  %v533 = vpack.c.b16 %v469, %v469
  %v534 = vpack.c.b16 %v470, %v470
  %v535 = vpack.c.b16 %v471, %v471
  %v536 = vpack.c.b16 %v472, %v472
  %v537 = vpack.c.b16 %v473, %v473
  %v538 = vpack.c.b16 %v474, %v474
  %v539 = vpack.c.b16 %v475, %v475
  %604 = vst [vmem:[%s3] sm:$0xf] %v476
  %605 = vst [vmem:[%s3 + $0x4] sm:$0xf] %v477
  %606 = vst [vmem:[%s3 + $0x8] sm:$0xf] %v478
  %607 = vst [vmem:[%s3 + $0xc] sm:$0xf] %v479
  %608 = vst [vmem:[%s3 + $0x10] sm:$0xf] %v480
  %609 = vst [vmem:[%s3 + $0x14] sm:$0xf] %v481
  %610 = vst [vmem:[%s3 + $0x18] sm:$0xf] %v482
  %611 = vst [vmem:[%s3 + $0x1c] sm:$0xf] %v483
  %612 = vst [vmem:[%s3 + $0x20] sm:$0xf] %v484
  %613 = vst [vmem:[%s3 + $0x24] sm:$0xf] %v485
  %614 = vst [vmem:[%s3 + $0x28] sm:$0xf] %v486
  %615 = vst [vmem:[%s3 + $0x2c] sm:$0xf] %v487
  %616 = vst [vmem:[%s3 + $0x30] sm:$0xf] %v488
  %617 = vst [vmem:[%s3 + $0x34] sm:$0xf] %v489
  %618 = vst [vmem:[%s3 + $0x38] sm:$0xf] %v490
  %619 = vst [vmem:[%s3 + $0x3c] sm:$0xf] %v491
  %620 = vst [vmem:[%s3 + $0x40] sm:$0xf] %v492
  %621 = vst [vmem:[%s3 + $0x44] sm:$0xf] %v493
  %622 = vst [vmem:[%s3 + $0x48] sm:$0xf] %v494
  %623 = vst [vmem:[%s3 + $0x4c] sm:$0xf] %v495
  %624 = vst [vmem:[%s3 + $0x50] sm:$0xf] %v496
  %625 = vst [vmem:[%s3 + $0x54] sm:$0xf] %v497
  %626 = vst [vmem:[%s3 + $0x58] sm:$0xf] %v498
  %627 = vst [vmem:[%s3 + $0x5c] sm:$0xf] %v499
  %628 = vst [vmem:[%s3 + $0x60] sm:$0xf] %v500
  %629 = vst [vmem:[%s3 + $0x64] sm:$0xf] %v501
  %630 = vst [vmem:[%s3 + $0x68] sm:$0xf] %v502
  %631 = vst [vmem:[%s3 + $0x6c] sm:$0xf] %v503
  %632 = vst [vmem:[%s3 + $0x70] sm:$0xf] %v504
  %633 = vst [vmem:[%s3 + $0x74] sm:$0xf] %v505
  %634 = vst [vmem:[%s3 + $0x78] sm:$0xf] %v506
  %635 = vst [vmem:[%s3 + $0x7c] sm:$0xf] %v507
  %636 = vst [vmem:[%s3 + $0x80] sm:$0xf] %v508
  %637 = vst [vmem:[%s3 + $0x84] sm:$0xf] %v509
  %638 = vst [vmem:[%s3 + $0x88] sm:$0xf] %v510
  %639 = vst [vmem:[%s3 + $0x8c] sm:$0xf] %v511
  %640 = vst [vmem:[%s3 + $0x90] sm:$0xf] %v512
  %641 = vst [vmem:[%s3 + $0x94] sm:$0xf] %v513
  %642 = vst [vmem:[%s3 + $0x98] sm:$0xf] %v514
  %643 = vst [vmem:[%s3 + $0x9c] sm:$0xf] %v515
  %644 = vst [vmem:[%s3 + $0xa0] sm:$0xf] %v516
  %645 = vst [vmem:[%s3 + $0xa4] sm:$0xf] %v517
  %646 = vst [vmem:[%s3 + $0xa8] sm:$0xf] %v518
  %647 = vst [vmem:[%s3 + $0xac] sm:$0xf] %v519
  %648 = vst [vmem:[%s3 + $0xb0] sm:$0xf] %v520
  %649 = vst [vmem:[%s3 + $0xb4] sm:$0xf] %v521
  %650 = vst [vmem:[%s3 + $0xb8] sm:$0xf] %v522
  %651 = vst [vmem:[%s3 + $0xbc] sm:$0xf] %v523
  %652 = vst [vmem:[%s3 + $0xc0] sm:$0xf] %v524
  %653 = vst [vmem:[%s3 + $0xc4] sm:$0xf] %v525
  %654 = vst [vmem:[%s3 + $0xc8] sm:$0xf] %v526
  %655 = vst [vmem:[%s3 + $0xcc] sm:$0xf] %v527
  %656 = vst [vmem:[%s3 + $0xd0] sm:$0xf] %v528
  %657 = vst [vmem:[%s3 + $0xd4] sm:$0xf] %v529
  %658 = vst [vmem:[%s3 + $0xd8] sm:$0xf] %v530
  %659 = vst [vmem:[%s3 + $0xdc] sm:$0xf] %v531
  %660 = vst [vmem:[%s3 + $0xe0] sm:$0xf] %v532
  %661 = vst [vmem:[%s3 + $0xe4] sm:$0xf] %v533
  %662 = vst [vmem:[%s3 + $0xe8] sm:$0xf] %v534
  %663 = vst [vmem:[%s3 + $0xec] sm:$0xf] %v535
  %664 = vst [vmem:[%s3 + $0xf0] sm:$0xf] %v536
  %665 = vst [vmem:[%s3 + $0xf4] sm:$0xf] %v537
  %666 = vst [vmem:[%s3 + $0xf8] sm:$0xf] %v538
  %667 = vst [vmem:[%s3 + $0xfc] sm:$0xf] %v539
  // Predicated region
  $region14: #{restnet_basic_block.5} parent=0 // pred_check
    _
  $region15: #{restnet_basic_block.5} parent=0 // pred_check_branch
    %669 = sbr.rel (0) target = $region17
  $region16: #{restnet_basic_block.5} parent=0 // pred_region
    _
  $region17: #{restnet_basic_block.5} parent=0 // pred_fallthru
    _
  // Predicated region
  $region18: #{restnet_basic_block.5} parent=0 // pred_check
    _
  $region19: #{restnet_basic_block.5} parent=0 // pred_check_branch
    %671 = sbr.rel (0) target = $region21
  $region20: #{restnet_basic_block.5} parent=0 // pred_region
    _
  $region21: #{restnet_basic_block.5} parent=0 // pred_fallthru
    _

// kernel: restnet_basic_block.4
$region0: #{restnet_basic_block.4}
  #allocation0 [shape = 'u32[]', space=smem, size = 0x4, offset = 0x4, fixed_abs, tag = 'smem constant byte address 0x4 - core index']
  #allocation1 [shape = 'u32[144,128]{1,0:T(1,128)}', space=vmem, size = 0x12000, scoped, tag = 'internal scratch']
  %s0 = inlined_call_operand.vmem [shape: bf16[2,288,384], index: 0, kind: input, shape index: {}]
  %s1 = inlined_call_operand.vmem [shape: bf16[3,384,128], index: 1, kind: input, shape index: {}]
  %s2 = inlined_call_operand.vmem [shape: bf16[2,256,128], index: 2, kind: output, shape index: {0}]
  %s3 = inlined_call_operand.vmem [shape: f32[2,2,128], index: 3, kind: output, shape index: {1}]
  %4 = xla_tuple %s2, %s3
  %s5 = sld [smem:[#allocation0]]
  $region49: #{restnet_basic_block.4} parent=0
    _
  %s7 = ssub.s32 1, %s5
  %s8 = scalar_select 0, %s7, %s5
  loop: start=0, step=1, limit=4
  $region2: #{restnet_basic_block.4} parent=0 // loop_pre_header
    _
  $region3: #{restnet_basic_block.4} parent=0 // loop_header
    %s10 = sphi 0, %s14
    %p11 = scmp.ge.s32.totalorder %s10, 4
    %s20 = sphi 0, %s22
    %s23 = sphi 0, %s20
    %s24 = sphi 0, %s23
    %s40 = sphi 0, %s24
    %s44 = sphi 0, %s44
    %s46 = sphi 0, %s44
    %s47 = sphi 0, %s46
    %s61 = sphi 0, %s47
    %s67 = sphi 0, %s69
    %s70 = sphi 0, %s67
    %s71 = sphi 0, %s70
    %s87 = sphi 0, %s71
    %s93 = sphi 0, %s95
    %s96 = sphi 0, %s93
    %s97 = sphi 0, %s96
    %s113 = sphi 0, %s97
  $region4: #{restnet_basic_block.4} parent=0 // loop_header_branch
    %13 = sbr.rel (%p11) target = $region8
  $region5: #{restnet_basic_block.4} parent=0 // loop_body
    %s15 = ssub.s32 %s10, 1
    %s16 = ssub.s32 %s10, 2
    %s17 = sadd.s32 %s10, 1
    %s18 = ssub.s32 %s10, %s17
    %p19 = scmp.eq.s32.totalorder %s18, 0
    %s21 = sadd.s32 %s20, 1
    %s22 = scalar_select %p19, %s20, %s21
    %p25 = pneg %p19
    %p26 = scmp.eq.s32.totalorder %s10, 1
    %p27 = por %p25, %p26
    %p28 = scmp.ne.s32.totalorder %s20, %s23
    %p29 = scmp.eq.s32.totalorder %s10, 0
    %p30 = por %p28, %p29
    %p31 = scmp.ne.s32.totalorder %s20, %s23
    %p32 = scmp.eq.s32.totalorder %s15, 1
    %p33 = por %p31, %p32
    %p34 = scmp.ne.s32.totalorder %s23, %s24
    %p35 = scmp.eq.s32.totalorder %s15, 0
    %p36 = por %p34, %p35
    %p37 = scmp.ne.s32.totalorder %s23, %s24
    %p38 = scmp.eq.s32.totalorder %s16, 1
    %p39 = por %p37, %p38
    %p41 = scmp.ne.s32.totalorder %s24, %s40
    %p42 = scmp.eq.s32.totalorder %s16, 0
    %p43 = por %p41, %p42
    %s45 = sadd.s32 %s44, 1
    %p48 = scmp.eq.s32.totalorder %s10, 1
    %p49 = scmp.ne.s32.totalorder %s44, %s46
    %p50 = scmp.eq.s32.totalorder %s10, 0
    %p51 = por %p49, %p50
    %p52 = scmp.ne.s32.totalorder %s44, %s46
    %p53 = scmp.eq.s32.totalorder %s15, 1
    %p54 = por %p52, %p53
    %p55 = scmp.ne.s32.totalorder %s46, %s47
    %p56 = scmp.eq.s32.totalorder %s15, 0
    %p57 = por %p55, %p56
    %p58 = scmp.ne.s32.totalorder %s46, %s47
    %p59 = scmp.eq.s32.totalorder %s16, 1
    %p60 = por %p58, %p59
    %p62 = scmp.ne.s32.totalorder %s47, %s61
    %p63 = scmp.eq.s32.totalorder %s16, 0
    %p64 = por %p62, %p63
    %s65 = ssub.s32 %s10, %s17
    %p66 = scmp.eq.s32.totalorder %s65, 0
    %s68 = sadd.s32 %s67, 1
    %s69 = scalar_select %p66, %s67, %s68
    %p72 = pneg %p66
    %p73 = scmp.eq.s32.totalorder %s10, 1
    %p74 = por %p72, %p73
    %p75 = scmp.ne.s32.totalorder %s67, %s70
    %p76 = scmp.eq.s32.totalorder %s10, 0
    %p77 = por %p75, %p76
    %p78 = scmp.ne.s32.totalorder %s67, %s70
    %p79 = scmp.eq.s32.totalorder %s15, 1
    %p80 = por %p78, %p79
    %p81 = scmp.ne.s32.totalorder %s70, %s71
    %p82 = scmp.eq.s32.totalorder %s15, 0
    %p83 = por %p81, %p82
    %p84 = scmp.ne.s32.totalorder %s70, %s71
    %p85 = scmp.eq.s32.totalorder %s16, 1
    %p86 = por %p84, %p85
    %p88 = scmp.ne.s32.totalorder %s71, %s87
    %p89 = scmp.eq.s32.totalorder %s16, 0
    %p90 = por %p88, %p89
    %s91 = ssub.s32 %s10, %s17
    %p92 = scmp.eq.s32.totalorder %s91, 0
    %s94 = sadd.s32 %s93, 1
    %s95 = scalar_select %p92, %s93, %s94
    %p98 = pneg %p92
    %p99 = scmp.eq.s32.totalorder %s10, 1
    %p100 = por %p98, %p99
    %p101 = scmp.ne.s32.totalorder %s93, %s96
    %p102 = scmp.eq.s32.totalorder %s10, 0
    %p103 = por %p101, %p102
    %p104 = scmp.ne.s32.totalorder %s93, %s96
    %p105 = scmp.eq.s32.totalorder %s15, 1
    %p106 = por %p104, %p105
    %p107 = scmp.ne.s32.totalorder %s96, %s97
    %p108 = scmp.eq.s32.totalorder %s15, 0
    %p109 = por %p107, %p108
    %p110 = scmp.ne.s32.totalorder %s96, %s97
    %p111 = scmp.eq.s32.totalorder %s16, 1
    %p112 = por %p110, %p111
    %p114 = scmp.ne.s32.totalorder %s97, %s113
    %p115 = scmp.eq.s32.totalorder %s16, 0
    %p116 = por %p114, %p115
    %p117 = scmp.le.s32.totalorder 1, %s10
    %p118 = scmp.lt.s32.totalorder %s10, 3
    %p119 = pnand %p117, %p118
    %p120 = pneg %p119
    // Predicated region
    $region9: #{restnet_basic_block.4} parent=5 // pred_check
      _
    $region10: #{restnet_basic_block.4} parent=5 // pred_check_branch
      %122 = sbr.rel (%p119) target = $region12
    $region11: #{restnet_basic_block.4} parent=5 // pred_region
      %s123 = ssub.s32 %s10, 1
      // Predicated region
      $region13: #{restnet_basic_block.4} parent=11 // pred_check
        %p124 = pneg %p57
      $region14: #{restnet_basic_block.4} parent=11 // pred_check_branch
        %126 = sbr.rel (%p124) target = $region16
      $region15: #{restnet_basic_block.4} parent=11 // pred_region
        _
      $region16: #{restnet_basic_block.4} parent=11 // pred_fallthru
        _
    $region12: #{restnet_basic_block.4} parent=5 // pred_fallthru
      _
    %p127 = scmp.lt.s32.totalorder %s10, 2
    // Predicated region
    $region17: #{restnet_basic_block.4} parent=5 // pred_check
      %p128 = pneg %p127
    $region18: #{restnet_basic_block.4} parent=5 // pred_check_branch
      %130 = sbr.rel (%p128) target = $region20
    $region19: #{restnet_basic_block.4} parent=5 // pred_region
      // Predicated region
      $region21: #{restnet_basic_block.4} parent=19 // pred_check
        %p131 = pneg %p30
      $region22: #{restnet_basic_block.4} parent=19 // pred_check_branch
        %133 = sbr.rel (%p131) target = $region24
      $region23: #{restnet_basic_block.4} parent=19 // pred_region
        %p134 = scmp.lt.s32.totalorder %s10, 1
        %s135 = scalar_select %p134, %s10, 1
        %s136 = smul.addr %s135, 108
        %s137 = smul.addr %s136, 4
        %s138 = scalar_lea.vmem %s0, %s137
      $region24: #{restnet_basic_block.4} parent=19 // pred_fallthru
        _
    $region20: #{restnet_basic_block.4} parent=5 // pred_fallthru
      _
    %p139 = scmp.le.s32.totalorder 1, %s10
    %p140 = scmp.lt.s32.totalorder %s10, 3
    %p141 = pnand %p139, %p140
    %p142 = pneg %p141
    // Predicated region
    $region25: #{restnet_basic_block.4} parent=5 // pred_check
      _
    $region26: #{restnet_basic_block.4} parent=5 // pred_check_branch
      %144 = sbr.rel (%p141) target = $region28
    $region27: #{restnet_basic_block.4} parent=5 // pred_region
      %s145 = ssub.s32 %s10, 1
      %p146 = scmp.lt.s32.totalorder %s15, 1
      %s147 = scalar_select %p146, %s15, 1
      %s148 = smul.addr %s147, 108
      %s149 = smul.addr %s148, 4
      %s150 = scalar_lea.vmem %s0, %s149
      %p151 = pneg %p36
      %p152 = pneg %p33
      %p153 = pneg %p57
      %p154 = pneg %p54
      %p155 = pneg %p83
      %p156 = pneg %p80
      %p157 = scmp.lt.s32.totalorder %s15, 1
      %s158 = scalar_select %p157, %s15, 1
      %s159 = smul.addr %s158, 32
      %s160 = smul.addr %s159, 4
      %s161 = scalar_lea.vmem %s2, %s160
      %p162 = pneg %p109
      %p163 = pneg %p106
      %p164 = scmp.lt.s32.totalorder %s15, 1
      %s165 = scalar_select %p164, %s15, 1
      %s166 = smul.addr %s165, 2
      %s167 = scalar_lea.vmem %s3, %s166
      %p168 = scmp.lt.s32.totalorder %s15, 1
      %s169 = scalar_select %p168, %s15, 1
      %s170 = smul.addr %s169, 108
      %s171 = smul.addr %s170, 4
      %s172 = scalar_lea.vmem %s0, %s171
      %p173 = scmp.lt.s32.totalorder %s15, 1
      %s174 = scalar_select %p173, %s15, 1
      %s175 = smul.addr %s174, 32
      %s176 = smul.addr %s175, 4
      %s177 = scalar_lea.vmem %s2, %s176
      %p178 = scmp.lt.s32.totalorder %s15, 1
      %s179 = scalar_select %p178, %s15, 1
      %s180 = smul.addr %s179, 2
      %s181 = scalar_lea.vmem %s3, %s180
      %v183 = vld [vmem:[%s172] sm:$0xff]
      %v184 = vld [vmem:[%s172 + $0x8] sm:$0xf]
      %v185 = vld [vmem:[%s172 + $0xc] sm:$0xff]
      %v186 = vld [vmem:[%s172 + $0x14] sm:$0xf]
      %v187 = vld [vmem:[%s172 + $0x18] sm:$0xff]
      %v188 = vld [vmem:[%s172 + $0x20] sm:$0xf]
      %v189 = vld [vmem:[%s172 + $0x24] sm:$0xff]
      %v190 = vld [vmem:[%s172 + $0x2c] sm:$0xf]
      %v191 = vld [vmem:[%s172 + $0x30] sm:$0xff]
      %v192 = vld [vmem:[%s172 + $0x38] sm:$0xf]
      %v193 = vld [vmem:[%s172 + $0x3c] sm:$0xff]
      %v194 = vld [vmem:[%s172 + $0x44] sm:$0xf]
      %v195 = vld [vmem:[%s172 + $0x48] sm:$0xff]
      %v196 = vld [vmem:[%s172 + $0x50] sm:$0xf]
      %v197 = vld [vmem:[%s172 + $0x54] sm:$0xff]
      %v198 = vld [vmem:[%s172 + $0x5c] sm:$0xf]
      %v199 = vld [vmem:[%s172 + $0x60] sm:$0xff]
      %v200 = vld [vmem:[%s172 + $0x68] sm:$0xf]
      %v201 = vld [vmem:[%s172 + $0x6c] sm:$0xff]
      %v202 = vld [vmem:[%s172 + $0x74] sm:$0xf]
      %v203 = vld [vmem:[%s172 + $0x78] sm:$0xff]
      %v204 = vld [vmem:[%s172 + $0x80] sm:$0xf]
      %v205 = vld [vmem:[%s172 + $0x84] sm:$0xff]
      %v206 = vld [vmem:[%s172 + $0x8c] sm:$0xf]
      %v207 = vld [vmem:[%s172 + $0x90] sm:$0xff]
      %v208 = vld [vmem:[%s172 + $0x98] sm:$0xf]
      %v209 = vld [vmem:[%s172 + $0x9c] sm:$0xff]
      %v210 = vld [vmem:[%s172 + $0xa4] sm:$0xf]
      %v211 = vld [vmem:[%s172 + $0xa8] sm:$0xff]
      %v212 = vld [vmem:[%s172 + $0xb0] sm:$0xf]
      %v213 = vld [vmem:[%s172 + $0xb4] sm:$0xff]
      %v214 = vld [vmem:[%s172 + $0xbc] sm:$0xf]
      %v215 = vld [vmem:[%s172 + $0xc0] sm:$0xff]
      %v216 = vld [vmem:[%s172 + $0xc8] sm:$0xf]
      %v217 = vld [vmem:[%s172 + $0xcc] sm:$0xff]
      %v218 = vld [vmem:[%s172 + $0xd4] sm:$0xf]
      %v219 = vld [vmem:[%s172 + $0xd8] sm:$0xff]
      %v220 = vld [vmem:[%s172 + $0xe0] sm:$0xf]
      %v221 = vld [vmem:[%s172 + $0xe4] sm:$0xff]
      %v222 = vld [vmem:[%s172 + $0xec] sm:$0xf]
      %v223 = vld [vmem:[%s172 + $0xf0] sm:$0xff]
      %v224 = vld [vmem:[%s172 + $0xf8] sm:$0xf]
      %v225 = vld [vmem:[%s172 + $0xfc] sm:$0xff]
      %v226 = vld [vmem:[%s172 + $0x104] sm:$0xf]
      %v227 = vld [vmem:[%s172 + $0x108] sm:$0xff]
      %v228 = vld [vmem:[%s172 + $0x110] sm:$0xf]
      %v229 = vld [vmem:[%s172 + $0x114] sm:$0xff]
      %v230 = vld [vmem:[%s172 + $0x11c] sm:$0xf]
      %v231 = vld [vmem:[%s172 + $0x120] sm:$0xff]
      %v232 = vld [vmem:[%s172 + $0x128] sm:$0xf]
      %v233 = vld [vmem:[%s172 + $0x12c] sm:$0xff]
      %v234 = vld [vmem:[%s172 + $0x134] sm:$0xf]
      %v235 = vld [vmem:[%s172 + $0x138] sm:$0xff]
      %v236 = vld [vmem:[%s172 + $0x140] sm:$0xf]
      %v237 = vld [vmem:[%s172 + $0x144] sm:$0xff]
      %v238 = vld [vmem:[%s172 + $0x14c] sm:$0xf]
      %v239 = vld [vmem:[%s172 + $0x150] sm:$0xff]
      %v240 = vld [vmem:[%s172 + $0x158] sm:$0xf]
      %v241 = vld [vmem:[%s172 + $0x15c] sm:$0xff]
      %v242 = vld [vmem:[%s172 + $0x164] sm:$0xf]
      %v243 = vld [vmem:[%s172 + $0x168] sm:$0xff]
      %v244 = vld [vmem:[%s172 + $0x170] sm:$0xf]
      %v245 = vld [vmem:[%s172 + $0x174] sm:$0xff]
      %v246 = vld [vmem:[%s172 + $0x17c] sm:$0xf]
      %v247 = vld [vmem:[%s1] sm:$0xf]
      %v248 = vld [vmem:[%s1 + $0x4] sm:$0xf]
      %v249 = vld [vmem:[%s1 + $0x8] sm:$0xf]
      %v250 = vld [vmem:[%s1 + $0xc] sm:$0xf]
      %v251 = vld [vmem:[%s1 + $0x10] sm:$0xf]
      %v252 = vld [vmem:[%s1 + $0x14] sm:$0xf]
      %v253 = vld [vmem:[%s1 + $0x18] sm:$0xf]
      %v254 = vld [vmem:[%s1 + $0x1c] sm:$0xf]
      %v255 = vld [vmem:[%s1 + $0x20] sm:$0xf]
      %v256 = vld [vmem:[%s1 + $0x24] sm:$0xf]
      %v257 = vld [vmem:[%s1 + $0x28] sm:$0xf]
      %v258 = vld [vmem:[%s1 + $0x2c] sm:$0xf]
      %v259 = vld [vmem:[%s1 + $0x30] sm:$0xf]
      %v260 = vld [vmem:[%s1 + $0x34] sm:$0xf]
      %v261 = vld [vmem:[%s1 + $0x38] sm:$0xf]
      %v262 = vld [vmem:[%s1 + $0x3c] sm:$0xf]
      %v263 = vld [vmem:[%s1 + $0x40] sm:$0xf]
      %v264 = vld [vmem:[%s1 + $0x44] sm:$0xf]
      %v265 = vld [vmem:[%s1 + $0x48] sm:$0xf]
      %v266 = vld [vmem:[%s1 + $0x4c] sm:$0xf]
      %v267 = vld [vmem:[%s1 + $0x50] sm:$0xf]
      %v268 = vld [vmem:[%s1 + $0x54] sm:$0xf]
      %v269 = vld [vmem:[%s1 + $0x58] sm:$0xf]
      %v270 = vld [vmem:[%s1 + $0x5c] sm:$0xf]
      %v271 = vld [vmem:[%s1 + $0x60] sm:$0xf]
      %v272 = vld [vmem:[%s1 + $0x64] sm:$0xf]
      %v273 = vld [vmem:[%s1 + $0x68] sm:$0xf]
      %v274 = vld [vmem:[%s1 + $0x6c] sm:$0xf]
      %v275 = vld [vmem:[%s1 + $0x70] sm:$0xf]
      %v276 = vld [vmem:[%s1 + $0x74] sm:$0xf]
      %v277 = vld [vmem:[%s1 + $0x78] sm:$0xf]
      %v278 = vld [vmem:[%s1 + $0x7c] sm:$0xf]
      %v279 = vld [vmem:[%s1 + $0x80] sm:$0xf]
      %v280 = vld [vmem:[%s1 + $0x84] sm:$0xf]
      %v281 = vld [vmem:[%s1 + $0x88] sm:$0xf]
      %v282 = vld [vmem:[%s1 + $0x8c] sm:$0xf]
      %v283 = vld [vmem:[%s1 + $0x90] sm:$0xf]
      %v284 = vld [vmem:[%s1 + $0x94] sm:$0xf]
      %v285 = vld [vmem:[%s1 + $0x98] sm:$0xf]
      %v286 = vld [vmem:[%s1 + $0x9c] sm:$0xf]
      %v287 = vld [vmem:[%s1 + $0xa0] sm:$0xf]
      %v288 = vld [vmem:[%s1 + $0xa4] sm:$0xf]
      %v289 = vld [vmem:[%s1 + $0xa8] sm:$0xf]
      %v290 = vld [vmem:[%s1 + $0xac] sm:$0xf]
      %v291 = vld [vmem:[%s1 + $0xb0] sm:$0xf]
      %v292 = vld [vmem:[%s1 + $0xb4] sm:$0xf]
      %v293 = vld [vmem:[%s1 + $0xb8] sm:$0xf]
      %v294 = vld [vmem:[%s1 + $0xbc] sm:$0xf]
      %v295 = vld [vmem:[%s172 + $0x180] sm:$0xff]
      %v296 = vld [vmem:[%s172 + $0x188] sm:$0xf]
      %v297 = vld [vmem:[%s172 + $0x18c] sm:$0xff]
      %v298 = vld [vmem:[%s172 + $0x194] sm:$0xf]
      %s299 = scalar_lea.vmem %s1, 192
      %v300 = vld [vmem:[%s299] sm:$0xf]
      %v301 = vld [vmem:[%s299 + $0x4] sm:$0xf]
      %v302 = vld [vmem:[%s299 + $0x8] sm:$0xf]
      %v303 = vld [vmem:[%s299 + $0xc] sm:$0xf]
      %v304 = vld [vmem:[%s299 + $0x10] sm:$0xf]
      %v305 = vld [vmem:[%s299 + $0x14] sm:$0xf]
      %v306 = vld [vmem:[%s299 + $0x18] sm:$0xf]
      %v307 = vld [vmem:[%s299 + $0x1c] sm:$0xf]
      %v308 = vld [vmem:[%s299 + $0x20] sm:$0xf]
      %v309 = vld [vmem:[%s299 + $0x24] sm:$0xf]
      %v310 = vld [vmem:[%s299 + $0x28] sm:$0xf]
      %v311 = vld [vmem:[%s299 + $0x2c] sm:$0xf]
      %v312 = vld [vmem:[%s299 + $0x30] sm:$0xf]
      %v313 = vld [vmem:[%s299 + $0x34] sm:$0xf]
      %v314 = vld [vmem:[%s299 + $0x38] sm:$0xf]
      %v315 = vld [vmem:[%s299 + $0x3c] sm:$0xf]
      %v316 = vld [vmem:[%s299 + $0x40] sm:$0xf]
      %v317 = vld [vmem:[%s299 + $0x44] sm:$0xf]
      %v318 = vld [vmem:[%s299 + $0x48] sm:$0xf]
      %v319 = vld [vmem:[%s299 + $0x4c] sm:$0xf]
      %v320 = vld [vmem:[%s299 + $0x50] sm:$0xf]
      %v321 = vld [vmem:[%s299 + $0x54] sm:$0xf]
      %v322 = vld [vmem:[%s299 + $0x58] sm:$0xf]
      %v323 = vld [vmem:[%s299 + $0x5c] sm:$0xf]
      %v324 = vld [vmem:[%s299 + $0x60] sm:$0xf]
      %v325 = vld [vmem:[%s299 + $0x64] sm:$0xf]
      %v326 = vld [vmem:[%s299 + $0x68] sm:$0xf]
      %v327 = vld [vmem:[%s299 + $0x6c] sm:$0xf]
      %v328 = vld [vmem:[%s299 + $0x70] sm:$0xf]
      %v329 = vld [vmem:[%s299 + $0x74] sm:$0xf]
      %v330 = vld [vmem:[%s299 + $0x78] sm:$0xf]
      %v331 = vld [vmem:[%s299 + $0x7c] sm:$0xf]
      %v332 = vld [vmem:[%s299 + $0x80] sm:$0xf]
      %v333 = vld [vmem:[%s299 + $0x84] sm:$0xf]
      %v334 = vld [vmem:[%s299 + $0x88] sm:$0xf]
      %v335 = vld [vmem:[%s299 + $0x8c] sm:$0xf]
      %v336 = vld [vmem:[%s299 + $0x90] sm:$0xf]
      %v337 = vld [vmem:[%s299 + $0x94] sm:$0xf]
      %v338 = vld [vmem:[%s299 + $0x98] sm:$0xf]
      %v339 = vld [vmem:[%s299 + $0x9c] sm:$0xf]
      %v340 = vld [vmem:[%s299 + $0xa0] sm:$0xf]
      %v341 = vld [vmem:[%s299 + $0xa4] sm:$0xf]
      %v342 = vld [vmem:[%s299 + $0xa8] sm:$0xf]
      %v343 = vld [vmem:[%s299 + $0xac] sm:$0xf]
      %v344 = vld [vmem:[%s299 + $0xb0] sm:$0xf]
      %v345 = vld [vmem:[%s299 + $0xb4] sm:$0xf]
      %v346 = vld [vmem:[%s299 + $0xb8] sm:$0xf]
      %v347 = vld [vmem:[%s299 + $0xbc] sm:$0xf]
      %v412 = vunpack.c.l.b16 %v187
      %v413 = vunpack.c.h.b16 %v187
      %v414 = vunpack.c.l.b16 %v188
      %v415 = vunpack.c.l.b16 %v189
      %v416 = vunpack.c.h.b16 %v189
      %v417 = vunpack.c.l.b16 %v190
      %v418 = vunpack.c.l.b16 %v191
      %v419 = vunpack.c.h.b16 %v191
      %v420 = vunpack.c.l.b16 %v192
      %v421 = vunpack.c.l.b16 %v193
      %v422 = vunpack.c.h.b16 %v193
      %v423 = vunpack.c.l.b16 %v194
      %v424 = vunpack.c.l.b16 %v195
      %v425 = vunpack.c.h.b16 %v195
      %v426 = vunpack.c.l.b16 %v196
      %v427 = vunpack.c.l.b16 %v197
      %v428 = vunpack.c.h.b16 %v197
      %v429 = vunpack.c.l.b16 %v198
      %v430 = vunpack.c.l.b16 %v199
      %v431 = vunpack.c.h.b16 %v199
      %v432 = vunpack.c.l.b16 %v200
      %v433 = vunpack.c.l.b16 %v201
      %v434 = vunpack.c.h.b16 %v201
      %v435 = vunpack.c.l.b16 %v202
      %v436 = vunpack.c.l.b16 %v203
      %v437 = vunpack.c.h.b16 %v203
      %v438 = vunpack.c.l.b16 %v204
      %v439 = vunpack.c.l.b16 %v205
      %v440 = vunpack.c.h.b16 %v205
      %v441 = vunpack.c.l.b16 %v206
      %v442 = vunpack.c.l.b16 %v207
      %v443 = vunpack.c.h.b16 %v207
      %v444 = vunpack.c.l.b16 %v208
      %v445 = vunpack.c.l.b16 %v209
      %v446 = vunpack.c.h.b16 %v209
      %v447 = vunpack.c.l.b16 %v210
      %v448 = vunpack.c.l.b16 %v211
      %v449 = vunpack.c.h.b16 %v211
      %v450 = vunpack.c.l.b16 %v212
      %v451 = vunpack.c.l.b16 %v213
      %v452 = vunpack.c.h.b16 %v213
      %v453 = vunpack.c.l.b16 %v214
      %v454 = vunpack.c.l.b16 %v215
      %v455 = vunpack.c.h.b16 %v215
      %v456 = vunpack.c.l.b16 %v216
      %v457 = vunpack.c.l.b16 %v217
      %v458 = vunpack.c.h.b16 %v217
      %v459 = vunpack.c.l.b16 %v218
      %v460 = vunpack.c.l.b16 %v219
      %v461 = vunpack.c.h.b16 %v219
      %v462 = vunpack.c.l.b16 %v220
      %v463 = vunpack.c.l.b16 %v221
      %v464 = vunpack.c.h.b16 %v221
      %v465 = vunpack.c.l.b16 %v222
      %v466 = vunpack.c.l.b16 %v223
      %v467 = vunpack.c.h.b16 %v223
      %v468 = vunpack.c.l.b16 %v224
      %v469 = vunpack.c.l.b16 %v225
      %v470 = vunpack.c.h.b16 %v225
      %v471 = vunpack.c.l.b16 %v226
      %v472 = vunpack.c.l.b16 %v227
      %v473 = vunpack.c.h.b16 %v227
      %v474 = vunpack.c.l.b16 %v228
      %v475 = vunpack.c.l.b16 %v229
      %v476 = vunpack.c.h.b16 %v229
      %v477 = vunpack.c.l.b16 %v230
      %v478 = vunpack.c.l.b16 %v231
      %v479 = vunpack.c.h.b16 %v231
      %v480 = vunpack.c.l.b16 %v232
      %v481 = vunpack.c.l.b16 %v233
      %v482 = vunpack.c.h.b16 %v233
      %v483 = vunpack.c.l.b16 %v234
      %v484 = vunpack.c.l.b16 %v235
      %v485 = vunpack.c.h.b16 %v235
      %v486 = vunpack.c.l.b16 %v236
      %v487 = vunpack.c.l.b16 %v237
      %v488 = vunpack.c.h.b16 %v237
      %v489 = vunpack.c.l.b16 %v238
      %v490 = vunpack.c.l.b16 %v239
      %v491 = vunpack.c.h.b16 %v239
      %v492 = vunpack.c.l.b16 %v240
      %v493 = vunpack.c.l.b16 %v241
      %v494 = vunpack.c.h.b16 %v241
      %v495 = vunpack.c.l.b16 %v242
      %v496 = vunpack.c.l.b16 %v243
      %v497 = vunpack.c.h.b16 %v243
      %v498 = vunpack.c.l.b16 %v244
      %v499 = vunpack.c.l.b16 %v245
      %v500 = vunpack.c.h.b16 %v245
      %v501 = vunpack.c.l.b16 %v246
      %v502 = vunpack.c.l.b16 %v295
      %v503 = vunpack.c.h.b16 %v295
      %v504 = vunpack.c.l.b16 %v296
      %v505 = vunpack.c.l.b16 %v297
      %v506 = vunpack.c.h.b16 %v297
      %v507 = vunpack.c.l.b16 %v298
      %v508 = vpack.c.b16 %v415, %v412
      %v509 = vpack.c.b16 %v416, %v413
      %v510 = vpack.c.b16 %v417, %v414
      %v511 = vpack.c.b16 %v421, %v418
      %v512 = vpack.c.b16 %v422, %v419
      %v513 = vpack.c.b16 %v423, %v420
      %v514 = vpack.c.b16 %v427, %v424
      %v515 = vpack.c.b16 %v428, %v425
      %v516 = vpack.c.b16 %v429, %v426
      %v517 = vpack.c.b16 %v433, %v430
      %v518 = vpack.c.b16 %v434, %v431
      %v519 = vpack.c.b16 %v435, %v432
      %v520 = vpack.c.b16 %v439, %v436
      %v521 = vpack.c.b16 %v440, %v437
      %v522 = vpack.c.b16 %v441, %v438
      %v523 = vpack.c.b16 %v445, %v442
      %v524 = vpack.c.b16 %v446, %v443
      %v525 = vpack.c.b16 %v447, %v444
      %v526 = vpack.c.b16 %v451, %v448
      %v527 = vpack.c.b16 %v452, %v449
      %v528 = vpack.c.b16 %v453, %v450
      %v529 = vpack.c.b16 %v457, %v454
      %v530 = vpack.c.b16 %v458, %v455
      %v531 = vpack.c.b16 %v459, %v456
      %v532 = vpack.c.b16 %v463, %v460
      %v533 = vpack.c.b16 %v464, %v461
      %v534 = vpack.c.b16 %v465, %v462
      %v535 = vpack.c.b16 %v469, %v466
      %v536 = vpack.c.b16 %v470, %v467
      %v537 = vpack.c.b16 %v471, %v468
      %v538 = vpack.c.b16 %v475, %v472
      %v539 = vpack.c.b16 %v476, %v473
      %v540 = vpack.c.b16 %v477, %v474
      %v541 = vpack.c.b16 %v481, %v478
      %v542 = vpack.c.b16 %v482, %v479
      %v543 = vpack.c.b16 %v483, %v480
      %v544 = vpack.c.b16 %v487, %v484
      %v545 = vpack.c.b16 %v488, %v485
      %v546 = vpack.c.b16 %v489, %v486
      %v547 = vpack.c.b16 %v493, %v490
      %v548 = vpack.c.b16 %v494, %v491
      %v549 = vpack.c.b16 %v495, %v492
      %v550 = vpack.c.b16 %v499, %v496
      %v551 = vpack.c.b16 %v500, %v497
      %v552 = vpack.c.b16 %v501, %v498
      %v553 = vpack.c.b16 %v505, %v502
      %v554 = vpack.c.b16 %v506, %v503
      %v555 = vpack.c.b16 %v507, %v504
      %v652 = vunpack.c.l.b16 %v300
      %v653 = vunpack.c.l.b16 %v301
      %v654 = vunpack.c.l.b16 %v302
      %v655 = vunpack.c.l.b16 %v303
      %v656 = vunpack.c.l.b16 %v304
      %v657 = vunpack.c.l.b16 %v305
      %v658 = vunpack.c.l.b16 %v306
      %v659 = vunpack.c.l.b16 %v307
      %v660 = vunpack.c.l.b16 %v308
      %v661 = vunpack.c.l.b16 %v309
      %v662 = vunpack.c.l.b16 %v310
      %v663 = vunpack.c.l.b16 %v311
      %v664 = vunpack.c.l.b16 %v312
      %v665 = vunpack.c.l.b16 %v313
      %v666 = vunpack.c.l.b16 %v314
      %v667 = vunpack.c.l.b16 %v315
      %v668 = vunpack.c.l.b16 %v316
      %v669 = vunpack.c.l.b16 %v317
      %v670 = vunpack.c.l.b16 %v318
      %v671 = vunpack.c.l.b16 %v319
      %v672 = vunpack.c.l.b16 %v320
      %v673 = vunpack.c.l.b16 %v321
      %v674 = vunpack.c.l.b16 %v322
      %v675 = vunpack.c.l.b16 %v323
      %v676 = vunpack.c.l.b16 %v324
      %v677 = vunpack.c.l.b16 %v325
      %v678 = vunpack.c.l.b16 %v326
      %v679 = vunpack.c.l.b16 %v327
      %v680 = vunpack.c.l.b16 %v328
      %v681 = vunpack.c.l.b16 %v329
      %v682 = vunpack.c.l.b16 %v330
      %v683 = vunpack.c.l.b16 %v331
      %v684 = vunpack.c.l.b16 %v332
      %v685 = vunpack.c.l.b16 %v333
      %v686 = vunpack.c.l.b16 %v334
      %v687 = vunpack.c.l.b16 %v335
      %v688 = vunpack.c.l.b16 %v336
      %v689 = vunpack.c.l.b16 %v337
      %v690 = vunpack.c.l.b16 %v338
      %v691 = vunpack.c.l.b16 %v339
      %v692 = vunpack.c.l.b16 %v340
      %v693 = vunpack.c.l.b16 %v341
      %v694 = vunpack.c.l.b16 %v342
      %v695 = vunpack.c.l.b16 %v343
      %v696 = vunpack.c.l.b16 %v344
      %v697 = vunpack.c.l.b16 %v345
      %v698 = vunpack.c.l.b16 %v346
      %v699 = vunpack.c.l.b16 %v347
      %v700 = vpack.c.b16 %v653, %v652
      %v701 = vpack.c.b16 %v655, %v654
      %v702 = vpack.c.b16 %v657, %v656
      %v703 = vpack.c.b16 %v659, %v658
      %v704 = vpack.c.b16 %v661, %v660
      %v705 = vpack.c.b16 %v663, %v662
      %v706 = vpack.c.b16 %v665, %v664
      %v707 = vpack.c.b16 %v667, %v666
      %v708 = vpack.c.b16 %v669, %v668
      %v709 = vpack.c.b16 %v671, %v670
      %v710 = vpack.c.b16 %v673, %v672
      %v711 = vpack.c.b16 %v675, %v674
      %v712 = vpack.c.b16 %v677, %v676
      %v713 = vpack.c.b16 %v679, %v678
      %v714 = vpack.c.b16 %v681, %v680
      %v715 = vpack.c.b16 %v683, %v682
      %v716 = vpack.c.b16 %v685, %v684
      %v717 = vpack.c.b16 %v687, %v686
      %v718 = vpack.c.b16 %v689, %v688
      %v719 = vpack.c.b16 %v691, %v690
      %v720 = vpack.c.b16 %v693, %v692
      %v721 = vpack.c.b16 %v695, %v694
      %v722 = vpack.c.b16 %v697, %v696
      %v723 = vpack.c.b16 %v699, %v698
      %748 = vmatprep.subr.bf16.mxu0 0
      %749 = vmatpush1.bf16.msra.mxu0 %v700
      %750 = vmatprep.subr.bf16.mxu0 0
      %751 = vmatpush1.bf16.msra.mxu0 %v701
      %752 = vmatprep.subr.bf16.mxu0 0
      %753 = vmatpush1.bf16.msra.mxu0 %v702
      %754 = vmatprep.subr.bf16.mxu0 0
      %755 = vmatpush1.bf16.msra.mxu0 %v703
      %756 = vmatprep.subr.bf16.mxu0 0
      %757 = vmatpush1.bf16.msra.mxu0 %v704
      %758 = vmatprep.subr.bf16.mxu0 0
      %759 = vmatpush1.bf16.msra.mxu0 %v705
      %760 = vmatprep.subr.bf16.mxu0 0
      %761 = vmatpush1.bf16.msra.mxu0 %v706
      %762 = vmatprep.subr.bf16.mxu0 0
      %763 = vmatpush1.bf16.msra.mxu0 %v707
      %764 = vmatprep.subr.bf16.mxu0 0
      %765 = vmatpush1.bf16.msra.mxu0 %v708
      %766 = vmatprep.subr.bf16.mxu0 0
      %767 = vmatpush1.bf16.msra.mxu0 %v709
      %768 = vmatprep.subr.bf16.mxu0 0
      %769 = vmatpush1.bf16.msra.mxu0 %v710
      %770 = vmatprep.subr.bf16.mxu0 0
      %771 = vmatpush1.bf16.msra.mxu0 %v711
      %772 = vmatprep.subr.bf16.mxu0 0
      %773 = vmatpush1.bf16.msra.mxu0 %v712
      %774 = vmatprep.subr.bf16.mxu0 0
      %775 = vmatpush1.bf16.msra.mxu0 %v713
      %776 = vmatprep.subr.bf16.mxu0 0
      %777 = vmatpush1.bf16.msra.mxu0 %v714
      %778 = vmatprep.subr.bf16.mxu0 0
      %779 = vmatpush1.bf16.msra.mxu0 %v715
      %780 = vmatprep.mubr.bf16.mxu0 %v509
      %781 = vmatmul.mubr.bf16.gmra.mrb[0].mxu0 %v508
      %v782 = vpop.f32.mrb[0].mxu0
      %v783 = vadd.f32 0.0, %v782
      %v784 = vpop.f32.mrb[0].mxu0
      %v785 = vpop.f32.mrb[0].mxu0
      %v786 = vadd.f32 0.0, %v785
      %v787 = vpop.f32.mrb[0].mxu0
      %788 = vmatprep.mubr.bf16.mxu0 %v512
      %789 = vmatmul.mubr.bf16.gmra.mrb[0].mxu0 %v511
      %v790 = vpop.f32.mrb[0].mxu0
      %v791 = vadd.f32 0.0, %v790
      %v792 = vpop.f32.mrb[0].mxu0
      %v793 = vpop.f32.mrb[0].mxu0
      %v794 = vadd.f32 0.0, %v793
      %v795 = vpop.f32.mrb[0].mxu0
      %796 = vmatprep.mubr.bf16.mxu0 %v515
      %797 = vmatmul.mubr.bf16.gmra.mrb[0].mxu0 %v514
      %v798 = vpop.f32.mrb[0].mxu0
      %v799 = vadd.f32 0.0, %v798
      %v800 = vpop.f32.mrb[0].mxu0
      %v801 = vpop.f32.mrb[0].mxu0
      %v802 = vadd.f32 0.0, %v801
      %v803 = vpop.f32.mrb[0].mxu0
      %804 = vmatprep.mubr.bf16.mxu0 %v518
      %805 = vmatmul.mubr.bf16.gmra.mrb[0].mxu0 %v517
      %v806 = vpop.f32.mrb[0].mxu0
      %v807 = vadd.f32 0.0, %v806
      %v808 = vpop.f32.mrb[0].mxu0
      %v809 = vpop.f32.mrb[0].mxu0
      %v810 = vadd.f32 0.0, %v809
      %v811 = vpop.f32.mrb[0].mxu0
      %812 = vmatprep.mubr.bf16.mxu0 %v521
      %813 = vmatmul.mubr.bf16.gmra.mrb[0].mxu0 %v520
      %v814 = vpop.f32.mrb[0].mxu0
      %v815 = vadd.f32 0.0, %v814
      %v816 = vpop.f32.mrb[0].mxu0
      %v817 = vpop.f32.mrb[0].mxu0
      %v818 = vadd.f32 0.0, %v817
      %v819 = vpop.f32.mrb[0].mxu0
      %820 = vmatprep.mubr.bf16.mxu0 %v524
      %821 = vmatmul.mubr.bf16.gmra.mrb[0].mxu0 %v523
      %v822 = vpop.f32.mrb[0].mxu0
      %v823 = vadd.f32 0.0, %v822
      %v824 = vpop.f32.mrb[0].mxu0
      %v825 = vpop.f32.mrb[0].mxu0
      %v826 = vadd.f32 0.0, %v825
      %v827 = vpop.f32.mrb[0].mxu0
      %828 = vmatprep.mubr.bf16.mxu0 %v527
      %829 = vmatmul.mubr.bf16.gmra.mrb[0].mxu0 %v526
      %v830 = vpop.f32.mrb[0].mxu0
      %v831 = vadd.f32 0.0, %v830
      %v832 = vpop.f32.mrb[0].mxu0
      %v833 = vpop.f32.mrb[0].mxu0
      %v834 = vadd.f32 0.0, %v833
      %v835 = vpop.f32.mrb[0].mxu0
      %836 = vmatprep.mubr.bf16.mxu0 %v530
      %837 = vmatmul.mubr.bf16.gmra.mrb[0].mxu0 %v529
      %v838 = vpop.f32.mrb[0].mxu0
      %v839 = vadd.f32 0.0, %v838
      %v840 = vpop.f32.mrb[0].mxu0
      %v841 = vpop.f32.mrb[0].mxu0
      %v842 = vadd.f32 0.0, %v841
      %v843 = vpop.f32.mrb[0].mxu0
      %844 = vmatprep.mubr.bf16.mxu0 %v533
      %845 = vmatmul.mubr.bf16.gmra.mrb[0].mxu0 %v532
      %v846 = vpop.f32.mrb[0].mxu0
      %v847 = vadd.f32 0.0, %v846
      %v848 = vpop.f32.mrb[0].mxu0
      %v849 = vpop.f32.mrb[0].mxu0
      %v850 = vadd.f32 0.0, %v849
      %v851 = vpop.f32.mrb[0].mxu0
      %852 = vmatprep.mubr.bf16.mxu0 %v536
      %853 = vmatmul.mubr.bf16.gmra.mrb[0].mxu0 %v535
      %v854 = vpop.f32.mrb[0].mxu0
      %v855 = vadd.f32 0.0, %v854
      %v856 = vpop.f32.mrb[0].mxu0
      %v857 = vpop.f32.mrb[0].mxu0
      %v858 = vadd.f32 0.0, %v857
      %v859 = vpop.f32.mrb[0].mxu0
      %860 = vmatprep.mubr.bf16.mxu0 %v539
      %861 = vmatmul.mubr.bf16.gmra.mrb[0].mxu0 %v538
      %v862 = vpop.f32.mrb[0].mxu0
      %v863 = vadd.f32 0.0, %v862
      %v864 = vpop.f32.mrb[0].mxu0
      %v865 = vpop.f32.mrb[0].mxu0
      %v866 = vadd.f32 0.0, %v865
      %v867 = vpop.f32.mrb[0].mxu0
      %868 = vmatprep.mubr.bf16.mxu0 %v542
      %869 = vmatmul.mubr.bf16.gmra.mrb[0].mxu0 %v541
      %v870 = vpop.f32.mrb[0].mxu0
      %v871 = vadd.f32 0.0, %v870
      %v872 = vpop.f32.mrb[0].mxu0
      %v873 = vpop.f32.mrb[0].mxu0
      %v874 = vadd.f32 0.0, %v873
      %v875 = vpop.f32.mrb[0].mxu0
      %876 = vmatprep.mubr.bf16.mxu0 %v545
      %877 = vmatmul.mubr.bf16.gmra.mrb[0].mxu0 %v544
      %v878 = vpop.f32.mrb[0].mxu0
      %v879 = vadd.f32 0.0, %v878
      %v880 = vpop.f32.mrb[0].mxu0
      %v881 = vpop.f32.mrb[0].mxu0
      %v882 = vadd.f32 0.0, %v881
      %v883 = vpop.f32.mrb[0].mxu0
      %884 = vmatprep.mubr.bf16.mxu0 %v548
      %885 = vmatmul.mubr.bf16.gmra.mrb[0].mxu0 %v547
      %v886 = vpop.f32.mrb[0].mxu0
      %v887 = vadd.f32 0.0, %v886
      %v888 = vpop.f32.mrb[0].mxu0
      %v889 = vpop.f32.mrb[0].mxu0
      %v890 = vadd.f32 0.0, %v889
      %v891 = vpop.f32.mrb[0].mxu0
      %892 = vmatprep.mubr.bf16.mxu0 %v551
      %893 = vmatmul.mubr.bf16.gmra.mrb[0].mxu0 %v550
      %v894 = vpop.f32.mrb[0].mxu0
      %v895 = vadd.f32 0.0, %v894
      %v896 = vpop.f32.mrb[0].mxu0
      %v897 = vpop.f32.mrb[0].mxu0
      %v898 = vadd.f32 0.0, %v897
      %v899 = vpop.f32.mrb[0].mxu0
      %900 = vmatprep.mubr.bf16.mxu0 %v554
      %901 = vmatmul.mubr.bf16.gmra.mrb[0].mxu0 %v553
      %v902 = vpop.f32.mrb[0].mxu0
      %v903 = vadd.f32 0.0, %v902
      %v904 = vpop.f32.mrb[0].mxu0
      %v905 = vpop.f32.mrb[0].mxu0
      %v906 = vadd.f32 0.0, %v905
      %v907 = vpop.f32.mrb[0].mxu0
      %908 = vdwg.mxu0
      %909 = vmatprep.subr.bf16.mxu0 0
      %910 = vmatpush1.bf16.msra.mxu0 %v716
      %911 = vmatprep.subr.bf16.mxu0 0
      %912 = vmatpush1.bf16.msra.mxu0 %v717
      %913 = vmatprep.subr.bf16.mxu0 0
      %914 = vmatpush1.bf16.msra.mxu0 %v718
      %915 = vmatprep.subr.bf16.mxu0 0
      %916 = vmatpush1.bf16.msra.mxu0 %v719
      %917 = vmatprep.subr.bf16.mxu0 0
      %918 = vmatpush1.bf16.msra.mxu0 %v720
      %919 = vmatprep.subr.bf16.mxu0 0
      %920 = vmatpush1.bf16.msra.mxu0 %v721
      %921 = vmatprep.subr.bf16.mxu0 0
      %922 = vmatpush1.bf16.msra.mxu0 %v722
      %923 = vmatprep.subr.bf16.mxu0 0
      %924 = vmatpush1.bf16.msra.mxu0 %v723
      %925 = vmatprep.subr.bf16.mxu0 0
      %926 = vmatpush1.bf16.msra.mxu0 0
      %927 = vmatprep.subr.bf16.mxu0 0
      %928 = vmatpush1.bf16.msra.mxu0 0
      %929 = vmatprep.subr.bf16.mxu0 0
      %930 = vmatpush1.bf16.msra.mxu0 0
      %931 = vmatprep.subr.bf16.mxu0 0
      %932 = vmatpush1.bf16.msra.mxu0 0
      %933 = vmatprep.subr.bf16.mxu0 0
      %934 = vmatpush1.bf16.msra.mxu0 0
      %935 = vmatprep.subr.bf16.mxu0 0
      %936 = vmatpush1.bf16.msra.mxu0 0
      %937 = vmatprep.subr.bf16.mxu0 0
      %938 = vmatpush1.bf16.msra.mxu0 0
      %939 = vmatprep.subr.bf16.mxu0 0
      %940 = vmatpush1.bf16.msra.mxu0 0
      %941 = vmatprep.mubr.bf16.mxu0 0
      %942 = vmatmul.mubr.bf16.gmra.mrb[0].mxu0 %v510
      %v943 = vpop.f32.mrb[0].mxu0
      %v944 = vadd.f32 %v783, %v943
      %v945 = vpop.f32.mrb[0].mxu0
      %v946 = vpop.f32.mrb[0].mxu0
      %v947 = vadd.f32 %v786, %v946
      %v948 = vpop.f32.mrb[0].mxu0
      %949 = vmatprep.mubr.bf16.mxu0 0
      %950 = vmatmul.mubr.bf16.gmra.mrb[0].mxu0 %v513
      %v951 = vpop.f32.mrb[0].mxu0
      %v952 = vadd.f32 %v791, %v951
      %v953 = vpop.f32.mrb[0].mxu0
      %v954 = vpop.f32.mrb[0].mxu0
      %v955 = vadd.f32 %v794, %v954
      %v956 = vpop.f32.mrb[0].mxu0
      %957 = vmatprep.mubr.bf16.mxu0 0
      %958 = vmatmul.mubr.bf16.gmra.mrb[0].mxu0 %v516
      %v959 = vpop.f32.mrb[0].mxu0
      %v960 = vadd.f32 %v799, %v959
      %v961 = vpop.f32.mrb[0].mxu0
      %v962 = vpop.f32.mrb[0].mxu0
      %v963 = vadd.f32 %v802, %v962
      %v964 = vpop.f32.mrb[0].mxu0
      %965 = vmatprep.mubr.bf16.mxu0 0
      %966 = vmatmul.mubr.bf16.gmra.mrb[0].mxu0 %v519
      %v967 = vpop.f32.mrb[0].mxu0
      %v968 = vadd.f32 %v807, %v967
      %v969 = vpop.f32.mrb[0].mxu0
      %v970 = vpop.f32.mrb[0].mxu0
      %v971 = vadd.f32 %v810, %v970
      %v972 = vpop.f32.mrb[0].mxu0
      %973 = vmatprep.mubr.bf16.mxu0 0
      %974 = vmatmul.mubr.bf16.gmra.mrb[0].mxu0 %v522
      %v975 = vpop.f32.mrb[0].mxu0
      %v976 = vadd.f32 %v815, %v975
      %v977 = vpop.f32.mrb[0].mxu0
      %v978 = vpop.f32.mrb[0].mxu0
      %v979 = vadd.f32 %v818, %v978
      %v980 = vpop.f32.mrb[0].mxu0
      %981 = vmatprep.mubr.bf16.mxu0 0
      %982 = vmatmul.mubr.bf16.gmra.mrb[0].mxu0 %v525
      %v983 = vpop.f32.mrb[0].mxu0
      %v984 = vadd.f32 %v823, %v983
      %v985 = vpop.f32.mrb[0].mxu0
      %v986 = vpop.f32.mrb[0].mxu0
      %v987 = vadd.f32 %v826, %v986
      %v988 = vpop.f32.mrb[0].mxu0
      %989 = vmatprep.mubr.bf16.mxu0 0
      %990 = vmatmul.mubr.bf16.gmra.mrb[0].mxu0 %v528
      %v991 = vpop.f32.mrb[0].mxu0
      %v992 = vadd.f32 %v831, %v991
      %v993 = vpop.f32.mrb[0].mxu0
      %v994 = vpop.f32.mrb[0].mxu0
      %v995 = vadd.f32 %v834, %v994
      %v996 = vpop.f32.mrb[0].mxu0
      %997 = vmatprep.mubr.bf16.mxu0 0
      %998 = vmatmul.mubr.bf16.gmra.mrb[0].mxu0 %v531
      %v999 = vpop.f32.mrb[0].mxu0
      %v1000 = vadd.f32 %v839, %v999
      %v1001 = vpop.f32.mrb[0].mxu0
      %v1002 = vpop.f32.mrb[0].mxu0
      %v1003 = vadd.f32 %v842, %v1002
      %v1004 = vpop.f32.mrb[0].mxu0
      %1005 = vmatprep.mubr.bf16.mxu0 0
      %1006 = vmatmul.mubr.bf16.gmra.mrb[0].mxu0 %v534
      %v1007 = vpop.f32.mrb[0].mxu0
      %v1008 = vadd.f32 %v847, %v1007
      %v1009 = vpop.f32.mrb[0].mxu0
      %v1010 = vpop.f32.mrb[0].mxu0
      %v1011 = vadd.f32 %v850, %v1010
      %v1012 = vpop.f32.mrb[0].mxu0
      %1013 = vmatprep.mubr.bf16.mxu0 0
      %1014 = vmatmul.mubr.bf16.gmra.mrb[0].mxu0 %v537
      %v1015 = vpop.f32.mrb[0].mxu0
      %v1016 = vadd.f32 %v855, %v1015
      %v1017 = vpop.f32.mrb[0].mxu0
      %v1018 = vpop.f32.mrb[0].mxu0
      %v1019 = vadd.f32 %v858, %v1018
      %v1020 = vpop.f32.mrb[0].mxu0
      %1021 = vmatprep.mubr.bf16.mxu0 0
      %1022 = vmatmul.mubr.bf16.gmra.mrb[0].mxu0 %v540
      %v1023 = vpop.f32.mrb[0].mxu0
      %v1024 = vadd.f32 %v863, %v1023
      %v1025 = vpop.f32.mrb[0].mxu0
      %v1026 = vpop.f32.mrb[0].mxu0
      %v1027 = vadd.f32 %v866, %v1026
      %v1028 = vpop.f32.mrb[0].mxu0
      %1029 = vmatprep.mubr.bf16.mxu0 0
      %1030 = vmatmul.mubr.bf16.gmra.mrb[0].mxu0 %v543
      %v1031 = vpop.f32.mrb[0].mxu0
      %v1032 = vadd.f32 %v871, %v1031
      %v1033 = vpop.f32.mrb[0].mxu0
      %v1034 = vpop.f32.mrb[0].mxu0
      %v1035 = vadd.f32 %v874, %v1034
      %v1036 = vpop.f32.mrb[0].mxu0
      %1037 = vmatprep.mubr.bf16.mxu0 0
      %1038 = vmatmul.mubr.bf16.gmra.mrb[0].mxu0 %v546
      %v1039 = vpop.f32.mrb[0].mxu0
      %v1040 = vadd.f32 %v879, %v1039
      %v1041 = vpop.f32.mrb[0].mxu0
      %v1042 = vpop.f32.mrb[0].mxu0
      %v1043 = vadd.f32 %v882, %v1042
      %v1044 = vpop.f32.mrb[0].mxu0
      %1045 = vmatprep.mubr.bf16.mxu0 0
      %1046 = vmatmul.mubr.bf16.gmra.mrb[0].mxu0 %v549
      %v1047 = vpop.f32.mrb[0].mxu0
      %v1048 = vadd.f32 %v887, %v1047
      %v1049 = vpop.f32.mrb[0].mxu0
      %v1050 = vpop.f32.mrb[0].mxu0
      %v1051 = vadd.f32 %v890, %v1050
      %v1052 = vpop.f32.mrb[0].mxu0
      %1053 = vmatprep.mubr.bf16.mxu0 0
      %1054 = vmatmul.mubr.bf16.gmra.mrb[0].mxu0 %v552
      %v1055 = vpop.f32.mrb[0].mxu0
      %v1056 = vadd.f32 %v895, %v1055
      %v1057 = vpop.f32.mrb[0].mxu0
      %v1058 = vpop.f32.mrb[0].mxu0
      %v1059 = vadd.f32 %v898, %v1058
      %v1060 = vpop.f32.mrb[0].mxu0
      %1061 = vmatprep.mubr.bf16.mxu0 0
      %1062 = vmatmul.mubr.bf16.gmra.mrb[0].mxu0 %v555
      %v1063 = vpop.f32.mrb[0].mxu0
      %v1064 = vadd.f32 %v903, %v1063
      %v1065 = vpop.f32.mrb[0].mxu0
      %v1066 = vpop.f32.mrb[0].mxu0
      %v1067 = vadd.f32 %v906, %v1066
      %v1068 = vpop.f32.mrb[0].mxu0
      %1069 = vdwg.mxu0
      %v1074 = vunpack.c.l.b16 %v183
      %v1075 = vunpack.c.h.b16 %v183
      %v1076 = vunpack.c.l.b16 %v184
      %v1077 = vunpack.c.l.b16 %v185
      %v1078 = vunpack.c.h.b16 %v185
      %v1079 = vunpack.c.l.b16 %v186
      %v1080 = vpack.c.b16 %v1077, %v1074
      %v1081 = vpack.c.b16 %v1078, %v1075
      %v1082 = vpack.c.b16 %v1079, %v1076
      %v1134 = vunpack.c.l.b16 %v247
      %v1135 = vunpack.c.l.b16 %v248
      %v1136 = vunpack.c.l.b16 %v249
      %v1137 = vunpack.c.l.b16 %v250
      %v1138 = vunpack.c.l.b16 %v251
      %v1139 = vunpack.c.l.b16 %v252
      %v1140 = vunpack.c.l.b16 %v253
      %v1141 = vunpack.c.l.b16 %v254
      %v1142 = vunpack.c.l.b16 %v255
      %v1143 = vunpack.c.l.b16 %v256
      %v1144 = vunpack.c.l.b16 %v257
      %v1145 = vunpack.c.l.b16 %v258
      %v1146 = vunpack.c.l.b16 %v259
      %v1147 = vunpack.c.l.b16 %v260
      %v1148 = vunpack.c.l.b16 %v261
      %v1149 = vunpack.c.l.b16 %v262
      %v1150 = vunpack.c.l.b16 %v263
      %v1151 = vunpack.c.l.b16 %v264
      %v1152 = vunpack.c.l.b16 %v265
      %v1153 = vunpack.c.l.b16 %v266
      %v1154 = vunpack.c.l.b16 %v267
      %v1155 = vunpack.c.l.b16 %v268
      %v1156 = vunpack.c.l.b16 %v269
      %v1157 = vunpack.c.l.b16 %v270
      %v1158 = vunpack.c.l.b16 %v271
      %v1159 = vunpack.c.l.b16 %v272
      %v1160 = vunpack.c.l.b16 %v273
      %v1161 = vunpack.c.l.b16 %v274
      %v1162 = vunpack.c.l.b16 %v275
      %v1163 = vunpack.c.l.b16 %v276
      %v1164 = vunpack.c.l.b16 %v277
      %v1165 = vunpack.c.l.b16 %v278
      %v1166 = vunpack.c.l.b16 %v279
      %v1167 = vunpack.c.l.b16 %v280
      %v1168 = vunpack.c.l.b16 %v281
      %v1169 = vunpack.c.l.b16 %v282
      %v1170 = vunpack.c.l.b16 %v283
      %v1171 = vunpack.c.l.b16 %v284
      %v1172 = vunpack.c.l.b16 %v285
      %v1173 = vunpack.c.l.b16 %v286
      %v1174 = vunpack.c.l.b16 %v287
      %v1175 = vunpack.c.l.b16 %v288
      %v1176 = vunpack.c.l.b16 %v289
      %v1177 = vunpack.c.l.b16 %v290
      %v1178 = vunpack.c.l.b16 %v291
      %v1179 = vunpack.c.l.b16 %v292
      %v1180 = vunpack.c.l.b16 %v293
      %v1181 = vunpack.c.l.b16 %v294
      %v1182 = vpack.c.b16 %v1135, %v1134
      %v1183 = vpack.c.b16 %v1137, %v1136
      %v1184 = vpack.c.b16 %v1139, %v1138
      %v1185 = vpack.c.b16 %v1141, %v1140
      %v1186 = vpack.c.b16 %v1143, %v1142
      %v1187 = vpack.c.b16 %v1145, %v1144
      %v1188 = vpack.c.b16 %v1147, %v1146
      %v1189 = vpack.c.b16 %v1149, %v1148
      %v1190 = vpack.c.b16 %v1151, %v1150
      %v1191 = vpack.c.b16 %v1153, %v1152
      %v1192 = vpack.c.b16 %v1155, %v1154
      %v1193 = vpack.c.b16 %v1157, %v1156
      %v1194 = vpack.c.b16 %v1159, %v1158
      %v1195 = vpack.c.b16 %v1161, %v1160
      %v1196 = vpack.c.b16 %v1163, %v1162
      %v1197 = vpack.c.b16 %v1165, %v1164
      %v1198 = vpack.c.b16 %v1167, %v1166
      %v1199 = vpack.c.b16 %v1169, %v1168
      %v1200 = vpack.c.b16 %v1171, %v1170
      %v1201 = vpack.c.b16 %v1173, %v1172
      %v1202 = vpack.c.b16 %v1175, %v1174
      %v1203 = vpack.c.b16 %v1177, %v1176
      %v1204 = vpack.c.b16 %v1179, %v1178
      %v1205 = vpack.c.b16 %v1181, %v1180
      %1230 = vmatprep.subr.bf16.mxu0 0
      %1231 = vmatpush1.bf16.msra.mxu0 %v1182
      %1232 = vmatprep.subr.bf16.mxu0 0
      %1233 = vmatpush1.bf16.msra.mxu0 %v1183
      %1234 = vmatprep.subr.bf16.mxu0 0
      %1235 = vmatpush1.bf16.msra.mxu0 %v1184
      %1236 = vmatprep.subr.bf16.mxu0 0
      %1237 = vmatpush1.bf16.msra.mxu0 %v1185
      %1238 = vmatprep.subr.bf16.mxu0 0
      %1239 = vmatpush1.bf16.msra.mxu0 %v1186
      %1240 = vmatprep.subr.bf16.mxu0 0
      %1241 = vmatpush1.bf16.msra.mxu0 %v1187
      %1242 = vmatprep.subr.bf16.mxu0 0
      %1243 = vmatpush1.bf16.msra.mxu0 %v1188
      %1244 = vmatprep.subr.bf16.mxu0 0
      %1245 = vmatpush1.bf16.msra.mxu0 %v1189
      %1246 = vmatprep.subr.bf16.mxu0 0
      %1247 = vmatpush1.bf16.msra.mxu0 %v1190
      %1248 = vmatprep.subr.bf16.mxu0 0
      %1249 = vmatpush1.bf16.msra.mxu0 %v1191
      %1250 = vmatprep.subr.bf16.mxu0 0
      %1251 = vmatpush1.bf16.msra.mxu0 %v1192
      %1252 = vmatprep.subr.bf16.mxu0 0
      %1253 = vmatpush1.bf16.msra.mxu0 %v1193
      %1254 = vmatprep.subr.bf16.mxu0 0
      %1255 = vmatpush1.bf16.msra.mxu0 %v1194
      %1256 = vmatprep.subr.bf16.mxu0 0
      %1257 = vmatpush1.bf16.msra.mxu0 %v1195
      %1258 = vmatprep.subr.bf16.mxu0 0
      %1259 = vmatpush1.bf16.msra.mxu0 %v1196
      %1260 = vmatprep.subr.bf16.mxu0 0
      %1261 = vmatpush1.bf16.msra.mxu0 %v1197
      %1262 = vmatprep.mubr.bf16.mxu0 %v1081
      %1263 = vmatmul.mubr.bf16.gmra.mrb[0].mxu0 %v1080
      %v1264 = vpop.f32.mrb[0].mxu0
      %v1265 = vadd.f32 %v944, %v1264
      %v1266 = vpop.f32.mrb[0].mxu0
      %v1267 = vpop.f32.mrb[0].mxu0
      %v1268 = vadd.f32 %v947, %v1267
      %v1269 = vpop.f32.mrb[0].mxu0
      %1270 = vmatprep.mubr.bf16.mxu0 %v509
      %1271 = vmatmul.mubr.bf16.gmra.mrb[0].mxu0 %v508
      %v1272 = vpop.f32.mrb[0].mxu0
      %v1273 = vadd.f32 %v952, %v1272
      %v1274 = vpop.f32.mrb[0].mxu0
      %v1275 = vpop.f32.mrb[0].mxu0
      %v1276 = vadd.f32 %v955, %v1275
      %v1277 = vpop.f32.mrb[0].mxu0
      %1278 = vmatprep.mubr.bf16.mxu0 %v512
      %1279 = vmatmul.mubr.bf16.gmra.mrb[0].mxu0 %v511
      %v1280 = vpop.f32.mrb[0].mxu0
      %v1281 = vadd.f32 %v960, %v1280
      %v1282 = vpop.f32.mrb[0].mxu0
      %v1283 = vpop.f32.mrb[0].mxu0
      %v1284 = vadd.f32 %v963, %v1283
      %v1285 = vpop.f32.mrb[0].mxu0
      %1286 = vmatprep.mubr.bf16.mxu0 %v515
      %1287 = vmatmul.mubr.bf16.gmra.mrb[0].mxu0 %v514
      %v1288 = vpop.f32.mrb[0].mxu0
      %v1289 = vadd.f32 %v968, %v1288
      %v1290 = vpop.f32.mrb[0].mxu0
      %v1291 = vpop.f32.mrb[0].mxu0
      %v1292 = vadd.f32 %v971, %v1291
      %v1293 = vpop.f32.mrb[0].mxu0
      %1294 = vmatprep.mubr.bf16.mxu0 %v518
      %1295 = vmatmul.mubr.bf16.gmra.mrb[0].mxu0 %v517
      %v1296 = vpop.f32.mrb[0].mxu0
      %v1297 = vadd.f32 %v976, %v1296
      %v1298 = vpop.f32.mrb[0].mxu0
      %v1299 = vpop.f32.mrb[0].mxu0
      %v1300 = vadd.f32 %v979, %v1299
      %v1301 = vpop.f32.mrb[0].mxu0
      %1302 = vmatprep.mubr.bf16.mxu0 %v521
      %1303 = vmatmul.mubr.bf16.gmra.mrb[0].mxu0 %v520
      %v1304 = vpop.f32.mrb[0].mxu0
      %v1305 = vadd.f32 %v984, %v1304
      %v1306 = vpop.f32.mrb[0].mxu0
      %v1307 = vpop.f32.mrb[0].mxu0
      %v1308 = vadd.f32 %v987, %v1307
      %v1309 = vpop.f32.mrb[0].mxu0
      %1310 = vmatprep.mubr.bf16.mxu0 %v524
      %1311 = vmatmul.mubr.bf16.gmra.mrb[0].mxu0 %v523
      %v1312 = vpop.f32.mrb[0].mxu0
      %v1313 = vadd.f32 %v992, %v1312
      %v1314 = vpop.f32.mrb[0].mxu0
      %v1315 = vpop.f32.mrb[0].mxu0
      %v1316 = vadd.f32 %v995, %v1315
      %v1317 = vpop.f32.mrb[0].mxu0
      %1318 = vmatprep.mubr.bf16.mxu0 %v527
      %1319 = vmatmul.mubr.bf16.gmra.mrb[0].mxu0 %v526
      %v1320 = vpop.f32.mrb[0].mxu0
      %v1321 = vadd.f32 %v1000, %v1320
      %v1322 = vpop.f32.mrb[0].mxu0
      %v1323 = vpop.f32.mrb[0].mxu0
      %v1324 = vadd.f32 %v1003, %v1323
      %v1325 = vpop.f32.mrb[0].mxu0
      %1326 = vmatprep.mubr.bf16.mxu0 %v530
      %1327 = vmatmul.mubr.bf16.gmra.mrb[0].mxu0 %v529
      %v1328 = vpop.f32.mrb[0].mxu0
      %v1329 = vadd.f32 %v1008, %v1328
      %v1330 = vpop.f32.mrb[0].mxu0
      %v1331 = vpop.f32.mrb[0].mxu0
      %v1332 = vadd.f32 %v1011, %v1331
      %v1333 = vpop.f32.mrb[0].mxu0
      %1334 = vmatprep.mubr.bf16.mxu0 %v533
      %1335 = vmatmul.mubr.bf16.gmra.mrb[0].mxu0 %v532
      %v1336 = vpop.f32.mrb[0].mxu0
      %v1337 = vadd.f32 %v1016, %v1336
      %v1338 = vpop.f32.mrb[0].mxu0
      %v1339 = vpop.f32.mrb[0].mxu0
      %v1340 = vadd.f32 %v1019, %v1339
      %v1341 = vpop.f32.mrb[0].mxu0
      %1342 = vmatprep.mubr.bf16.mxu0 %v536
      %1343 = vmatmul.mubr.bf16.gmra.mrb[0].mxu0 %v535
      %v1344 = vpop.f32.mrb[0].mxu0
      %v1345 = vadd.f32 %v1024, %v1344
      %v1346 = vpop.f32.mrb[0].mxu0
      %v1347 = vpop.f32.mrb[0].mxu0
      %v1348 = vadd.f32 %v1027, %v1347
      %v1349 = vpop.f32.mrb[0].mxu0
      %1350 = vmatprep.mubr.bf16.mxu0 %v539
      %1351 = vmatmul.mubr.bf16.gmra.mrb[0].mxu0 %v538
      %v1352 = vpop.f32.mrb[0].mxu0
      %v1353 = vadd.f32 %v1032, %v1352
      %v1354 = vpop.f32.mrb[0].mxu0
      %v1355 = vpop.f32.mrb[0].mxu0
      %v1356 = vadd.f32 %v1035, %v1355
      %v1357 = vpop.f32.mrb[0].mxu0
      %1358 = vmatprep.mubr.bf16.mxu0 %v542
      %1359 = vmatmul.mubr.bf16.gmra.mrb[0].mxu0 %v541
      %v1360 = vpop.f32.mrb[0].mxu0
      %v1361 = vadd.f32 %v1040, %v1360
      %v1362 = vpop.f32.mrb[0].mxu0
      %v1363 = vpop.f32.mrb[0].mxu0
      %v1364 = vadd.f32 %v1043, %v1363
      %v1365 = vpop.f32.mrb[0].mxu0
      %1366 = vmatprep.mubr.bf16.mxu0 %v545
      %1367 = vmatmul.mubr.bf16.gmra.mrb[0].mxu0 %v544
      %v1368 = vpop.f32.mrb[0].mxu0
      %v1369 = vadd.f32 %v1048, %v1368
      %v1370 = vpop.f32.mrb[0].mxu0
      %v1371 = vpop.f32.mrb[0].mxu0
      %v1372 = vadd.f32 %v1051, %v1371
      %v1373 = vpop.f32.mrb[0].mxu0
      %1374 = vmatprep.mubr.bf16.mxu0 %v548
      %1375 = vmatmul.mubr.bf16.gmra.mrb[0].mxu0 %v547
      %v1376 = vpop.f32.mrb[0].mxu0
      %v1377 = vadd.f32 %v1056, %v1376
      %v1378 = vpop.f32.mrb[0].mxu0
      %v1379 = vpop.f32.mrb[0].mxu0
      %v1380 = vadd.f32 %v1059, %v1379
      %v1381 = vpop.f32.mrb[0].mxu0
      %1382 = vmatprep.mubr.bf16.mxu0 %v551
      %1383 = vmatmul.mubr.bf16.gmra.mrb[0].mxu0 %v550
      %v1384 = vpop.f32.mrb[0].mxu0
      %v1385 = vadd.f32 %v1064, %v1384
      %v1386 = vpop.f32.mrb[0].mxu0
      %v1387 = vpop.f32.mrb[0].mxu0
      %v1388 = vadd.f32 %v1067, %v1387
      %v1389 = vpop.f32.mrb[0].mxu0
      %1390 = vdwg.mxu0
      %1391 = vmatprep.subr.bf16.mxu0 0
      %1392 = vmatpush1.bf16.msra.mxu0 %v1198
      %1393 = vmatprep.subr.bf16.mxu0 0
      %1394 = vmatpush1.bf16.msra.mxu0 %v1199
      %1395 = vmatprep.subr.bf16.mxu0 0
      %1396 = vmatpush1.bf16.msra.mxu0 %v1200
      %1397 = vmatprep.subr.bf16.mxu0 0
      %1398 = vmatpush1.bf16.msra.mxu0 %v1201
      %1399 = vmatprep.subr.bf16.mxu0 0
      %1400 = vmatpush1.bf16.msra.mxu0 %v1202
      %1401 = vmatprep.subr.bf16.mxu0 0
      %1402 = vmatpush1.bf16.msra.mxu0 %v1203
      %1403 = vmatprep.subr.bf16.mxu0 0
      %1404 = vmatpush1.bf16.msra.mxu0 %v1204
      %1405 = vmatprep.subr.bf16.mxu0 0
      %1406 = vmatpush1.bf16.msra.mxu0 %v1205
      %1407 = vmatprep.subr.bf16.mxu0 0
      %1408 = vmatpush1.bf16.msra.mxu0 0
      %1409 = vmatprep.subr.bf16.mxu0 0
      %1410 = vmatpush1.bf16.msra.mxu0 0
      %1411 = vmatprep.subr.bf16.mxu0 0
      %1412 = vmatpush1.bf16.msra.mxu0 0
      %1413 = vmatprep.subr.bf16.mxu0 0
      %1414 = vmatpush1.bf16.msra.mxu0 0
      %1415 = vmatprep.subr.bf16.mxu0 0
      %1416 = vmatpush1.bf16.msra.mxu0 0
      %1417 = vmatprep.subr.bf16.mxu0 0
      %1418 = vmatpush1.bf16.msra.mxu0 0
      %1419 = vmatprep.subr.bf16.mxu0 0
      %1420 = vmatpush1.bf16.msra.mxu0 0
      %1421 = vmatprep.subr.bf16.mxu0 0
      %1422 = vmatpush1.bf16.msra.mxu0 0
      %1423 = vmatprep.mubr.bf16.mxu0 0
      %1424 = vmatmul.mubr.bf16.gmra.mrb[0].mxu0 %v1082
      %v1425 = vpop.f32.mrb[0].mxu0
      %v1426 = vadd.f32 %v1265, %v1425
      %v1427 = vpop.f32.mrb[0].mxu0
      %v1428 = vpop.f32.mrb[0].mxu0
      %v1429 = vadd.f32 %v1268, %v1428
      %v1430 = vpop.f32.mrb[0].mxu0
      %1431 = vmatprep.mubr.bf16.mxu0 0
      %1432 = vmatmul.mubr.bf16.gmra.mrb[0].mxu0 %v510
      %v1433 = vpop.f32.mrb[0].mxu0
      %v1434 = vadd.f32 %v1273, %v1433
      %v1435 = vpop.f32.mrb[0].mxu0
      %v1436 = vpop.f32.mrb[0].mxu0
      %v1437 = vadd.f32 %v1276, %v1436
      %v1438 = vpop.f32.mrb[0].mxu0
      %1439 = vmatprep.mubr.bf16.mxu0 0
      %1440 = vmatmul.mubr.bf16.gmra.mrb[0].mxu0 %v513
      %v1441 = vpop.f32.mrb[0].mxu0
      %v1442 = vadd.f32 %v1281, %v1441
      %v1443 = vpop.f32.mrb[0].mxu0
      %v1444 = vpop.f32.mrb[0].mxu0
      %v1445 = vadd.f32 %v1284, %v1444
      %v1446 = vpop.f32.mrb[0].mxu0
      %1447 = vmatprep.mubr.bf16.mxu0 0
      %1448 = vmatmul.mubr.bf16.gmra.mrb[0].mxu0 %v516
      %v1449 = vpop.f32.mrb[0].mxu0
      %v1450 = vadd.f32 %v1289, %v1449
      %v1451 = vpop.f32.mrb[0].mxu0
      %v1452 = vpop.f32.mrb[0].mxu0
      %v1453 = vadd.f32 %v1292, %v1452
      %v1454 = vpop.f32.mrb[0].mxu0
      %1455 = vmatprep.mubr.bf16.mxu0 0
      %1456 = vmatmul.mubr.bf16.gmra.mrb[0].mxu0 %v519
      %v1457 = vpop.f32.mrb[0].mxu0
      %v1458 = vadd.f32 %v1297, %v1457
      %v1459 = vpop.f32.mrb[0].mxu0
      %v1460 = vpop.f32.mrb[0].mxu0
      %v1461 = vadd.f32 %v1300, %v1460
      %v1462 = vpop.f32.mrb[0].mxu0
      %1463 = vmatprep.mubr.bf16.mxu0 0
      %1464 = vmatmul.mubr.bf16.gmra.mrb[0].mxu0 %v522
      %v1465 = vpop.f32.mrb[0].mxu0
      %v1466 = vadd.f32 %v1305, %v1465
      %v1467 = vpop.f32.mrb[0].mxu0
      %v1468 = vpop.f32.mrb[0].mxu0
      %v1469 = vadd.f32 %v1308, %v1468
      %v1470 = vpop.f32.mrb[0].mxu0
      %1471 = vmatprep.mubr.bf16.mxu0 0
      %1472 = vmatmul.mubr.bf16.gmra.mrb[0].mxu0 %v525
      %v1473 = vpop.f32.mrb[0].mxu0
      %v1474 = vadd.f32 %v1313, %v1473
      %v1475 = vpop.f32.mrb[0].mxu0
      %v1476 = vpop.f32.mrb[0].mxu0
      %v1477 = vadd.f32 %v1316, %v1476
      %v1478 = vpop.f32.mrb[0].mxu0
      %1479 = vmatprep.mubr.bf16.mxu0 0
      %1480 = vmatmul.mubr.bf16.gmra.mrb[0].mxu0 %v528
      %v1481 = vpop.f32.mrb[0].mxu0
      %v1482 = vadd.f32 %v1321, %v1481
      %v1483 = vpop.f32.mrb[0].mxu0
      %v1484 = vpop.f32.mrb[0].mxu0
      %v1485 = vadd.f32 %v1324, %v1484
      %v1486 = vpop.f32.mrb[0].mxu0
      %1487 = vmatprep.mubr.bf16.mxu0 0
      %1488 = vmatmul.mubr.bf16.gmra.mrb[0].mxu0 %v531
      %v1489 = vpop.f32.mrb[0].mxu0
      %v1490 = vadd.f32 %v1329, %v1489
      %v1491 = vpop.f32.mrb[0].mxu0
      %v1492 = vpop.f32.mrb[0].mxu0
      %v1493 = vadd.f32 %v1332, %v1492
      %v1494 = vpop.f32.mrb[0].mxu0
      %1495 = vmatprep.mubr.bf16.mxu0 0
      %1496 = vmatmul.mubr.bf16.gmra.mrb[0].mxu0 %v534
      %v1497 = vpop.f32.mrb[0].mxu0
      %v1498 = vadd.f32 %v1337, %v1497
      %v1499 = vpop.f32.mrb[0].mxu0
      %v1500 = vpop.f32.mrb[0].mxu0
      %v1501 = vadd.f32 %v1340, %v1500
      %v1502 = vpop.f32.mrb[0].mxu0
      %1503 = vmatprep.mubr.bf16.mxu0 0
      %1504 = vmatmul.mubr.bf16.gmra.mrb[0].mxu0 %v537
      %v1505 = vpop.f32.mrb[0].mxu0
      %v1506 = vadd.f32 %v1345, %v1505
      %v1507 = vpop.f32.mrb[0].mxu0
      %v1508 = vpop.f32.mrb[0].mxu0
      %v1509 = vadd.f32 %v1348, %v1508
      %v1510 = vpop.f32.mrb[0].mxu0
      %1511 = vmatprep.mubr.bf16.mxu0 0
      %1512 = vmatmul.mubr.bf16.gmra.mrb[0].mxu0 %v540
      %v1513 = vpop.f32.mrb[0].mxu0
      %v1514 = vadd.f32 %v1353, %v1513
      %v1515 = vpop.f32.mrb[0].mxu0
      %v1516 = vpop.f32.mrb[0].mxu0
      %v1517 = vadd.f32 %v1356, %v1516
      %v1518 = vpop.f32.mrb[0].mxu0
      %1519 = vmatprep.mubr.bf16.mxu0 0
      %1520 = vmatmul.mubr.bf16.gmra.mrb[0].mxu0 %v543
      %v1521 = vpop.f32.mrb[0].mxu0
      %v1522 = vadd.f32 %v1361, %v1521
      %v1523 = vpop.f32.mrb[0].mxu0
      %v1524 = vpop.f32.mrb[0].mxu0
      %v1525 = vadd.f32 %v1364, %v1524
      %v1526 = vpop.f32.mrb[0].mxu0
      %1527 = vmatprep.mubr.bf16.mxu0 0
      %1528 = vmatmul.mubr.bf16.gmra.mrb[0].mxu0 %v546
      %v1529 = vpop.f32.mrb[0].mxu0
      %v1530 = vadd.f32 %v1369, %v1529
      %v1531 = vpop.f32.mrb[0].mxu0
      %v1532 = vpop.f32.mrb[0].mxu0
      %v1533 = vadd.f32 %v1372, %v1532
      %v1534 = vpop.f32.mrb[0].mxu0
      %1535 = vmatprep.mubr.bf16.mxu0 0
      %1536 = vmatmul.mubr.bf16.gmra.mrb[0].mxu0 %v549
      %v1537 = vpop.f32.mrb[0].mxu0
      %v1538 = vadd.f32 %v1377, %v1537
      %v1539 = vpop.f32.mrb[0].mxu0
      %v1540 = vpop.f32.mrb[0].mxu0
      %v1541 = vadd.f32 %v1380, %v1540
      %v1542 = vpop.f32.mrb[0].mxu0
      %1543 = vmatprep.mubr.bf16.mxu0 0
      %1544 = vmatmul.mubr.bf16.gmra.mrb[0].mxu0 %v552
      %v1545 = vpop.f32.mrb[0].mxu0
      %v1546 = vadd.f32 %v1385, %v1545
      %v1547 = vpop.f32.mrb[0].mxu0
      %v1548 = vpop.f32.mrb[0].mxu0
      %v1549 = vadd.f32 %v1388, %v1548
      %v1550 = vpop.f32.mrb[0].mxu0
      %1551 = vdwg.mxu0
      %v1552 = vld [vmem:[%s172 + $0x30] sm:$0xff]
      %v1553 = vld [vmem:[%s172 + $0x38] sm:$0xf]
      %v1554 = vld [vmem:[%s172 + $0x3c] sm:$0xff]
      %v1555 = vld [vmem:[%s172 + $0x44] sm:$0xf]
      %v1556 = vld [vmem:[%s172 + $0x48] sm:$0xff]
      %v1557 = vld [vmem:[%s172 + $0x50] sm:$0xf]
      %v1558 = vld [vmem:[%s172 + $0x54] sm:$0xff]
      %v1559 = vld [vmem:[%s172 + $0x5c] sm:$0xf]
      %v1560 = vld [vmem:[%s172 + $0x60] sm:$0xff]
      %v1561 = vld [vmem:[%s172 + $0x68] sm:$0xf]
      %v1562 = vld [vmem:[%s172 + $0x6c] sm:$0xff]
      %v1563 = vld [vmem:[%s172 + $0x74] sm:$0xf]
      %v1564 = vld [vmem:[%s172 + $0x78] sm:$0xff]
      %v1565 = vld [vmem:[%s172 + $0x80] sm:$0xf]
      %v1566 = vld [vmem:[%s172 + $0x84] sm:$0xff]
      %v1567 = vld [vmem:[%s172 + $0x8c] sm:$0xf]
      %v1568 = vld [vmem:[%s172 + $0x90] sm:$0xff]
      %v1569 = vld [vmem:[%s172 + $0x98] sm:$0xf]
      %v1570 = vld [vmem:[%s172 + $0x9c] sm:$0xff]
      %v1571 = vld [vmem:[%s172 + $0xa4] sm:$0xf]
      %v1572 = vld [vmem:[%s172 + $0xa8] sm:$0xff]
      %v1573 = vld [vmem:[%s172 + $0xb0] sm:$0xf]
      %v1574 = vld [vmem:[%s172 + $0xb4] sm:$0xff]
      %v1575 = vld [vmem:[%s172 + $0xbc] sm:$0xf]
      %v1576 = vld [vmem:[%s172 + $0xc0] sm:$0xff]
      %v1577 = vld [vmem:[%s172 + $0xc8] sm:$0xf]
      %v1578 = vld [vmem:[%s172 + $0xcc] sm:$0xff]
      %v1579 = vld [vmem:[%s172 + $0xd4] sm:$0xf]
      %v1580 = vld [vmem:[%s172 + $0xd8] sm:$0xff]
      %v1581 = vld [vmem:[%s172 + $0xe0] sm:$0xf]
      %v1582 = vld [vmem:[%s172 + $0xe4] sm:$0xff]
      %v1583 = vld [vmem:[%s172 + $0xec] sm:$0xf]
      %v1584 = vld [vmem:[%s172 + $0xf0] sm:$0xff]
      %v1585 = vld [vmem:[%s172 + $0xf8] sm:$0xf]
      %v1586 = vld [vmem:[%s172 + $0xfc] sm:$0xff]
      %v1587 = vld [vmem:[%s172 + $0x104] sm:$0xf]
      %v1588 = vld [vmem:[%s172 + $0x108] sm:$0xff]
      %v1589 = vld [vmem:[%s172 + $0x110] sm:$0xf]
      %v1590 = vld [vmem:[%s172 + $0x114] sm:$0xff]
      %v1591 = vld [vmem:[%s172 + $0x11c] sm:$0xf]
      %v1592 = vld [vmem:[%s172 + $0x120] sm:$0xff]
      %v1593 = vld [vmem:[%s172 + $0x128] sm:$0xf]
      %v1594 = vld [vmem:[%s172 + $0x12c] sm:$0xff]
      %v1595 = vld [vmem:[%s172 + $0x134] sm:$0xf]
      %v1596 = vld [vmem:[%s172 + $0x138] sm:$0xff]
      %v1597 = vld [vmem:[%s172 + $0x140] sm:$0xf]
      %v1598 = vld [vmem:[%s172 + $0x144] sm:$0xff]
      %v1599 = vld [vmem:[%s172 + $0x14c] sm:$0xf]
      %v1600 = vld [vmem:[%s172 + $0x150] sm:$0xff]
      %v1601 = vld [vmem:[%s172 + $0x158] sm:$0xf]
      %v1602 = vld [vmem:[%s172 + $0x15c] sm:$0xff]
      %v1603 = vld [vmem:[%s172 + $0x164] sm:$0xf]
      %v1604 = vld [vmem:[%s172 + $0x168] sm:$0xff]
      %v1605 = vld [vmem:[%s172 + $0x170] sm:$0xf]
      %v1606 = vld [vmem:[%s172 + $0x174] sm:$0xff]
      %v1607 = vld [vmem:[%s172 + $0x17c] sm:$0xf]
      %v1608 = vld [vmem:[%s172 + $0x180] sm:$0xff]
      %v1609 = vld [vmem:[%s172 + $0x188] sm:$0xf]
      %v1610 = vld [vmem:[%s172 + $0x18c] sm:$0xff]
      %v1611 = vld [vmem:[%s172 + $0x194] sm:$0xf]
      %v1612 = vld [vmem:[%s172 + $0x198] sm:$0xff]
      %v1613 = vld [vmem:[%s172 + $0x1a0] sm:$0xf]
      %v1614 = vld [vmem:[%s172 + $0x1a4] sm:$0xff]
      %v1615 = vld [vmem:[%s172 + $0x1ac] sm:$0xf]
      %s1616 = scalar_lea.vmem %s1, 384
      %v1617 = vld [vmem:[%s1616] sm:$0xf]
      %v1618 = vld [vmem:[%s1616 + $0x4] sm:$0xf]
      %v1619 = vld [vmem:[%s1616 + $0x8] sm:$0xf]
      %v1620 = vld [vmem:[%s1616 + $0xc] sm:$0xf]
      %v1621 = vld [vmem:[%s1616 + $0x10] sm:$0xf]
      %v1622 = vld [vmem:[%s1616 + $0x14] sm:$0xf]
      %v1623 = vld [vmem:[%s1616 + $0x18] sm:$0xf]
      %v1624 = vld [vmem:[%s1616 + $0x1c] sm:$0xf]
      %v1625 = vld [vmem:[%s1616 + $0x20] sm:$0xf]
      %v1626 = vld [vmem:[%s1616 + $0x24] sm:$0xf]
      %v1627 = vld [vmem:[%s1616 + $0x28] sm:$0xf]
      %v1628 = vld [vmem:[%s1616 + $0x2c] sm:$0xf]
      %v1629 = vld [vmem:[%s1616 + $0x30] sm:$0xf]
      %v1630 = vld [vmem:[%s1616 + $0x34] sm:$0xf]
      %v1631 = vld [vmem:[%s1616 + $0x38] sm:$0xf]
      %v1632 = vld [vmem:[%s1616 + $0x3c] sm:$0xf]
      %v1633 = vld [vmem:[%s1616 + $0x40] sm:$0xf]
      %v1634 = vld [vmem:[%s1616 + $0x44] sm:$0xf]
      %v1635 = vld [vmem:[%s1616 + $0x48] sm:$0xf]
      %v1636 = vld [vmem:[%s1616 + $0x4c] sm:$0xf]
      %v1637 = vld [vmem:[%s1616 + $0x50] sm:$0xf]
      %v1638 = vld [vmem:[%s1616 + $0x54] sm:$0xf]
      %v1639 = vld [vmem:[%s1616 + $0x58] sm:$0xf]
      %v1640 = vld [vmem:[%s1616 + $0x5c] sm:$0xf]
      %v1641 = vld [vmem:[%s1616 + $0x60] sm:$0xf]
      %v1642 = vld [vmem:[%s1616 + $0x64] sm:$0xf]
      %v1643 = vld [vmem:[%s1616 + $0x68] sm:$0xf]
      %v1644 = vld [vmem:[%s1616 + $0x6c] sm:$0xf]
      %v1645 = vld [vmem:[%s1616 + $0x70] sm:$0xf]
      %v1646 = vld [vmem:[%s1616 + $0x74] sm:$0xf]
      %v1647 = vld [vmem:[%s1616 + $0x78] sm:$0xf]
      %v1648 = vld [vmem:[%s1616 + $0x7c] sm:$0xf]
      %v1649 = vld [vmem:[%s1616 + $0x80] sm:$0xf]
      %v1650 = vld [vmem:[%s1616 + $0x84] sm:$0xf]
      %v1651 = vld [vmem:[%s1616 + $0x88] sm:$0xf]
      %v1652 = vld [vmem:[%s1616 + $0x8c] sm:$0xf]
      %v1653 = vld [vmem:[%s1616 + $0x90] sm:$0xf]
      %v1654 = vld [vmem:[%s1616 + $0x94] sm:$0xf]
      %v1655 = vld [vmem:[%s1616 + $0x98] sm:$0xf]
      %v1656 = vld [vmem:[%s1616 + $0x9c] sm:$0xf]
      %v1657 = vld [vmem:[%s1616 + $0xa0] sm:$0xf]
      %v1658 = vld [vmem:[%s1616 + $0xa4] sm:$0xf]
      %v1659 = vld [vmem:[%s1616 + $0xa8] sm:$0xf]
      %v1660 = vld [vmem:[%s1616 + $0xac] sm:$0xf]
      %v1661 = vld [vmem:[%s1616 + $0xb0] sm:$0xf]
      %v1662 = vld [vmem:[%s1616 + $0xb4] sm:$0xf]
      %v1663 = vld [vmem:[%s1616 + $0xb8] sm:$0xf]
      %v1664 = vld [vmem:[%s1616 + $0xbc] sm:$0xf]
      %v1729 = vunpack.c.l.b16 %v1552
      %v1730 = vunpack.c.h.b16 %v1552
      %v1731 = vunpack.c.l.b16 %v1553
      %v1732 = vunpack.c.l.b16 %v1554
      %v1733 = vunpack.c.h.b16 %v1554
      %v1734 = vunpack.c.l.b16 %v1555
      %v1735 = vunpack.c.l.b16 %v1556
      %v1736 = vunpack.c.h.b16 %v1556
      %v1737 = vunpack.c.l.b16 %v1557
      %v1738 = vunpack.c.l.b16 %v1558
      %v1739 = vunpack.c.h.b16 %v1558
      %v1740 = vunpack.c.l.b16 %v1559
      %v1741 = vunpack.c.l.b16 %v1560
      %v1742 = vunpack.c.h.b16 %v1560
      %v1743 = vunpack.c.l.b16 %v1561
      %v1744 = vunpack.c.l.b16 %v1562
      %v1745 = vunpack.c.h.b16 %v1562
      %v1746 = vunpack.c.l.b16 %v1563
      %v1747 = vunpack.c.l.b16 %v1564
      %v1748 = vunpack.c.h.b16 %v1564
      %v1749 = vunpack.c.l.b16 %v1565
      %v1750 = vunpack.c.l.b16 %v1566
      %v1751 = vunpack.c.h.b16 %v1566
      %v1752 = vunpack.c.l.b16 %v1567
      %v1753 = vunpack.c.l.b16 %v1568
      %v1754 = vunpack.c.h.b16 %v1568
      %v1755 = vunpack.c.l.b16 %v1569
      %v1756 = vunpack.c.l.b16 %v1570
      %v1757 = vunpack.c.h.b16 %v1570
      %v1758 = vunpack.c.l.b16 %v1571
      %v1759 = vunpack.c.l.b16 %v1572
      %v1760 = vunpack.c.h.b16 %v1572
      %v1761 = vunpack.c.l.b16 %v1573
      %v1762 = vunpack.c.l.b16 %v1574
      %v1763 = vunpack.c.h.b16 %v1574
      %v1764 = vunpack.c.l.b16 %v1575
      %v1765 = vunpack.c.l.b16 %v1576
      %v1766 = vunpack.c.h.b16 %v1576
      %v1767 = vunpack.c.l.b16 %v1577
      %v1768 = vunpack.c.l.b16 %v1578
      %v1769 = vunpack.c.h.b16 %v1578
      %v1770 = vunpack.c.l.b16 %v1579
      %v1771 = vunpack.c.l.b16 %v1580
      %v1772 = vunpack.c.h.b16 %v1580
      %v1773 = vunpack.c.l.b16 %v1581
      %v1774 = vunpack.c.l.b16 %v1582
      %v1775 = vunpack.c.h.b16 %v1582
      %v1776 = vunpack.c.l.b16 %v1583
      %v1777 = vunpack.c.l.b16 %v1584
      %v1778 = vunpack.c.h.b16 %v1584
      %v1779 = vunpack.c.l.b16 %v1585
      %v1780 = vunpack.c.l.b16 %v1586
      %v1781 = vunpack.c.h.b16 %v1586
      %v1782 = vunpack.c.l.b16 %v1587
      %v1783 = vunpack.c.l.b16 %v1588
      %v1784 = vunpack.c.h.b16 %v1588
      %v1785 = vunpack.c.l.b16 %v1589
      %v1786 = vunpack.c.l.b16 %v1590
      %v1787 = vunpack.c.h.b16 %v1590
      %v1788 = vunpack.c.l.b16 %v1591
      %v1789 = vunpack.c.l.b16 %v1592
      %v1790 = vunpack.c.h.b16 %v1592
      %v1791 = vunpack.c.l.b16 %v1593
      %v1792 = vunpack.c.l.b16 %v1594
      %v1793 = vunpack.c.h.b16 %v1594
      %v1794 = vunpack.c.l.b16 %v1595
      %v1795 = vunpack.c.l.b16 %v1596
      %v1796 = vunpack.c.h.b16 %v1596
      %v1797 = vunpack.c.l.b16 %v1597
      %v1798 = vunpack.c.l.b16 %v1598
      %v1799 = vunpack.c.h.b16 %v1598
      %v1800 = vunpack.c.l.b16 %v1599
      %v1801 = vunpack.c.l.b16 %v1600
      %v1802 = vunpack.c.h.b16 %v1600
      %v1803 = vunpack.c.l.b16 %v1601
      %v1804 = vunpack.c.l.b16 %v1602
      %v1805 = vunpack.c.h.b16 %v1602
      %v1806 = vunpack.c.l.b16 %v1603
      %v1807 = vunpack.c.l.b16 %v1604
      %v1808 = vunpack.c.h.b16 %v1604
      %v1809 = vunpack.c.l.b16 %v1605
      %v1810 = vunpack.c.l.b16 %v1606
      %v1811 = vunpack.c.h.b16 %v1606
      %v1812 = vunpack.c.l.b16 %v1607
      %v1813 = vunpack.c.l.b16 %v1608
      %v1814 = vunpack.c.h.b16 %v1608
      %v1815 = vunpack.c.l.b16 %v1609
      %v1816 = vunpack.c.l.b16 %v1610
      %v1817 = vunpack.c.h.b16 %v1610
      %v1818 = vunpack.c.l.b16 %v1611
      %v1819 = vunpack.c.l.b16 %v1612
      %v1820 = vunpack.c.h.b16 %v1612
      %v1821 = vunpack.c.l.b16 %v1613
      %v1822 = vunpack.c.l.b16 %v1614
      %v1823 = vunpack.c.h.b16 %v1614
      %v1824 = vunpack.c.l.b16 %v1615
      %v1825 = vpack.c.b16 %v1732, %v1729
      %v1826 = vpack.c.b16 %v1733, %v1730
      %v1827 = vpack.c.b16 %v1734, %v1731
      %v1828 = vpack.c.b16 %v1738, %v1735
      %v1829 = vpack.c.b16 %v1739, %v1736
      %v1830 = vpack.c.b16 %v1740, %v1737
      %v1831 = vpack.c.b16 %v1744, %v1741
      %v1832 = vpack.c.b16 %v1745, %v1742
      %v1833 = vpack.c.b16 %v1746, %v1743
      %v1834 = vpack.c.b16 %v1750, %v1747
      %v1835 = vpack.c.b16 %v1751, %v1748
      %v1836 = vpack.c.b16 %v1752, %v1749
      %v1837 = vpack.c.b16 %v1756, %v1753
      %v1838 = vpack.c.b16 %v1757, %v1754
      %v1839 = vpack.c.b16 %v1758, %v1755
      %v1840 = vpack.c.b16 %v1762, %v1759
      %v1841 = vpack.c.b16 %v1763, %v1760
      %v1842 = vpack.c.b16 %v1764, %v1761
      %v1843 = vpack.c.b16 %v1768, %v1765
      %v1844 = vpack.c.b16 %v1769, %v1766
      %v1845 = vpack.c.b16 %v1770, %v1767
      %v1846 = vpack.c.b16 %v1774, %v1771
      %v1847 = vpack.c.b16 %v1775, %v1772
      %v1848 = vpack.c.b16 %v1776, %v1773
      %v1849 = vpack.c.b16 %v1780, %v1777
      %v1850 = vpack.c.b16 %v1781, %v1778
      %v1851 = vpack.c.b16 %v1782, %v1779
      %v1852 = vpack.c.b16 %v1786, %v1783
      %v1853 = vpack.c.b16 %v1787, %v1784
      %v1854 = vpack.c.b16 %v1788, %v1785
      %v1855 = vpack.c.b16 %v1792, %v1789
      %v1856 = vpack.c.b16 %v1793, %v1790
      %v1857 = vpack.c.b16 %v1794, %v1791
      %v1858 = vpack.c.b16 %v1798, %v1795
      %v1859 = vpack.c.b16 %v1799, %v1796
      %v1860 = vpack.c.b16 %v1800, %v1797
      %v1861 = vpack.c.b16 %v1804, %v1801
      %v1862 = vpack.c.b16 %v1805, %v1802
      %v1863 = vpack.c.b16 %v1806, %v1803
      %v1864 = vpack.c.b16 %v1810, %v1807
      %v1865 = vpack.c.b16 %v1811, %v1808
      %v1866 = vpack.c.b16 %v1812, %v1809
      %v1867 = vpack.c.b16 %v1816, %v1813
      %v1868 = vpack.c.b16 %v1817, %v1814
      %v1869 = vpack.c.b16 %v1818, %v1815
      %v1870 = vpack.c.b16 %v1822, %v1819
      %v1871 = vpack.c.b16 %v1823, %v1820
      %v1872 = vpack.c.b16 %v1824, %v1821
      %v1969 = vunpack.c.l.b16 %v1617
      %v1970 = vunpack.c.l.b16 %v1618
      %v1971 = vunpack.c.l.b16 %v1619
      %v1972 = vunpack.c.l.b16 %v1620
      %v1973 = vunpack.c.l.b16 %v1621
      %v1974 = vunpack.c.l.b16 %v1622
      %v1975 = vunpack.c.l.b16 %v1623
      %v1976 = vunpack.c.l.b16 %v1624
      %v1977 = vunpack.c.l.b16 %v1625
      %v1978 = vunpack.c.l.b16 %v1626
      %v1979 = vunpack.c.l.b16 %v1627
      %v1980 = vunpack.c.l.b16 %v1628
      %v1981 = vunpack.c.l.b16 %v1629
      %v1982 = vunpack.c.l.b16 %v1630
      %v1983 = vunpack.c.l.b16 %v1631
      %v1984 = vunpack.c.l.b16 %v1632
      %v1985 = vunpack.c.l.b16 %v1633
      %v1986 = vunpack.c.l.b16 %v1634
      %v1987 = vunpack.c.l.b16 %v1635
      %v1988 = vunpack.c.l.b16 %v1636
      %v1989 = vunpack.c.l.b16 %v1637
      %v1990 = vunpack.c.l.b16 %v1638
      %v1991 = vunpack.c.l.b16 %v1639
      %v1992 = vunpack.c.l.b16 %v1640
      %v1993 = vunpack.c.l.b16 %v1641
      %v1994 = vunpack.c.l.b16 %v1642
      %v1995 = vunpack.c.l.b16 %v1643
      %v1996 = vunpack.c.l.b16 %v1644
      %v1997 = vunpack.c.l.b16 %v1645
      %v1998 = vunpack.c.l.b16 %v1646
      %v1999 = vunpack.c.l.b16 %v1647
      %v2000 = vunpack.c.l.b16 %v1648
      %v2001 = vunpack.c.l.b16 %v1649
      %v2002 = vunpack.c.l.b16 %v1650
      %v2003 = vunpack.c.l.b16 %v1651
      %v2004 = vunpack.c.l.b16 %v1652
      %v2005 = vunpack.c.l.b16 %v1653
      %v2006 = vunpack.c.l.b16 %v1654
      %v2007 = vunpack.c.l.b16 %v1655
      %v2008 = vunpack.c.l.b16 %v1656
      %v2009 = vunpack.c.l.b16 %v1657
      %v2010 = vunpack.c.l.b16 %v1658
      %v2011 = vunpack.c.l.b16 %v1659
      %v2012 = vunpack.c.l.b16 %v1660
      %v2013 = vunpack.c.l.b16 %v1661
      %v2014 = vunpack.c.l.b16 %v1662
      %v2015 = vunpack.c.l.b16 %v1663
      %v2016 = vunpack.c.l.b16 %v1664
      %v2017 = vpack.c.b16 %v1970, %v1969
      %v2018 = vpack.c.b16 %v1972, %v1971
      %v2019 = vpack.c.b16 %v1974, %v1973
      %v2020 = vpack.c.b16 %v1976, %v1975
      %v2021 = vpack.c.b16 %v1978, %v1977
      %v2022 = vpack.c.b16 %v1980, %v1979
      %v2023 = vpack.c.b16 %v1982, %v1981
      %v2024 = vpack.c.b16 %v1984, %v1983
      %v2025 = vpack.c.b16 %v1986, %v1985
      %v2026 = vpack.c.b16 %v1988, %v1987
      %v2027 = vpack.c.b16 %v1990, %v1989
      %v2028 = vpack.c.b16 %v1992, %v1991
      %v2029 = vpack.c.b16 %v1994, %v1993
      %v2030 = vpack.c.b16 %v1996, %v1995
      %v2031 = vpack.c.b16 %v1998, %v1997
      %v2032 = vpack.c.b16 %v2000, %v1999
      %v2033 = vpack.c.b16 %v2002, %v2001
      %v2034 = vpack.c.b16 %v2004, %v2003
      %v2035 = vpack.c.b16 %v2006, %v2005
      %v2036 = vpack.c.b16 %v2008, %v2007
      %v2037 = vpack.c.b16 %v2010, %v2009
      %v2038 = vpack.c.b16 %v2012, %v2011
      %v2039 = vpack.c.b16 %v2014, %v2013
      %v2040 = vpack.c.b16 %v2016, %v2015
      %2065 = vmatprep.subr.bf16.mxu0 0
      %2066 = vmatpush1.bf16.msra.mxu0 %v2017
      %2067 = vmatprep.subr.bf16.mxu0 0
      %2068 = vmatpush1.bf16.msra.mxu0 %v2018
      %2069 = vmatprep.subr.bf16.mxu0 0
      %2070 = vmatpush1.bf16.msra.mxu0 %v2019
      %2071 = vmatprep.subr.bf16.mxu0 0
      %2072 = vmatpush1.bf16.msra.mxu0 %v2020
      %2073 = vmatprep.subr.bf16.mxu0 0
      %2074 = vmatpush1.bf16.msra.mxu0 %v2021
      %2075 = vmatprep.subr.bf16.mxu0 0
      %2076 = vmatpush1.bf16.msra.mxu0 %v2022
      %2077 = vmatprep.subr.bf16.mxu0 0
      %2078 = vmatpush1.bf16.msra.mxu0 %v2023
      %2079 = vmatprep.subr.bf16.mxu0 0
      %2080 = vmatpush1.bf16.msra.mxu0 %v2024
      %2081 = vmatprep.subr.bf16.mxu0 0
      %2082 = vmatpush1.bf16.msra.mxu0 %v2025
      %2083 = vmatprep.subr.bf16.mxu0 0
      %2084 = vmatpush1.bf16.msra.mxu0 %v2026
      %2085 = vmatprep.subr.bf16.mxu0 0
      %2086 = vmatpush1.bf16.msra.mxu0 %v2027
      %2087 = vmatprep.subr.bf16.mxu0 0
      %2088 = vmatpush1.bf16.msra.mxu0 %v2028
      %2089 = vmatprep.subr.bf16.mxu0 0
      %2090 = vmatpush1.bf16.msra.mxu0 %v2029
      %2091 = vmatprep.subr.bf16.mxu0 0
      %2092 = vmatpush1.bf16.msra.mxu0 %v2030
      %2093 = vmatprep.subr.bf16.mxu0 0
      %2094 = vmatpush1.bf16.msra.mxu0 %v2031
      %2095 = vmatprep.subr.bf16.mxu0 0
      %2096 = vmatpush1.bf16.msra.mxu0 %v2032
      %2097 = vmatprep.mubr.bf16.mxu0 %v1826
      %2098 = vmatmul.mubr.bf16.gmra.mrb[0].mxu0 %v1825
      %v2099 = vpop.f32.mrb[0].mxu0
      %v2100 = vadd.f32 0.0, %v2099
      %v2101 = vpop.f32.mrb[0].mxu0
      %v2102 = vpop.f32.mrb[0].mxu0
      %v2103 = vadd.f32 0.0, %v2102
      %v2104 = vpop.f32.mrb[0].mxu0
      %2105 = vmatprep.mubr.bf16.mxu0 %v1829
      %2106 = vmatmul.mubr.bf16.gmra.mrb[0].mxu0 %v1828
      %v2107 = vpop.f32.mrb[0].mxu0
      %v2108 = vadd.f32 0.0, %v2107
      %v2109 = vpop.f32.mrb[0].mxu0
      %v2110 = vpop.f32.mrb[0].mxu0
      %v2111 = vadd.f32 0.0, %v2110
      %v2112 = vpop.f32.mrb[0].mxu0
      %2113 = vmatprep.mubr.bf16.mxu0 %v1832
      %2114 = vmatmul.mubr.bf16.gmra.mrb[0].mxu0 %v1831
      %v2115 = vpop.f32.mrb[0].mxu0
      %v2116 = vadd.f32 0.0, %v2115
      %v2117 = vpop.f32.mrb[0].mxu0
      %v2118 = vpop.f32.mrb[0].mxu0
      %v2119 = vadd.f32 0.0, %v2118
      %v2120 = vpop.f32.mrb[0].mxu0
      %2121 = vmatprep.mubr.bf16.mxu0 %v1835
      %2122 = vmatmul.mubr.bf16.gmra.mrb[0].mxu0 %v1834
      %v2123 = vpop.f32.mrb[0].mxu0
      %v2124 = vadd.f32 0.0, %v2123
      %v2125 = vpop.f32.mrb[0].mxu0
      %v2126 = vpop.f32.mrb[0].mxu0
      %v2127 = vadd.f32 0.0, %v2126
      %v2128 = vpop.f32.mrb[0].mxu0
      %2129 = vmatprep.mubr.bf16.mxu0 %v1838
      %2130 = vmatmul.mubr.bf16.gmra.mrb[0].mxu0 %v1837
      %v2131 = vpop.f32.mrb[0].mxu0
      %v2132 = vadd.f32 0.0, %v2131
      %v2133 = vpop.f32.mrb[0].mxu0
      %v2134 = vpop.f32.mrb[0].mxu0
      %v2135 = vadd.f32 0.0, %v2134
      %v2136 = vpop.f32.mrb[0].mxu0
      %2137 = vmatprep.mubr.bf16.mxu0 %v1841
      %2138 = vmatmul.mubr.bf16.gmra.mrb[0].mxu0 %v1840
      %v2139 = vpop.f32.mrb[0].mxu0
      %v2140 = vadd.f32 0.0, %v2139
      %v2141 = vpop.f32.mrb[0].mxu0
      %v2142 = vpop.f32.mrb[0].mxu0
      %v2143 = vadd.f32 0.0, %v2142
      %v2144 = vpop.f32.mrb[0].mxu0
      %2145 = vmatprep.mubr.bf16.mxu0 %v1844
      %2146 = vmatmul.mubr.bf16.gmra.mrb[0].mxu0 %v1843
      %v2147 = vpop.f32.mrb[0].mxu0
      %v2148 = vadd.f32 0.0, %v2147
      %v2149 = vpop.f32.mrb[0].mxu0
      %v2150 = vpop.f32.mrb[0].mxu0
      %v2151 = vadd.f32 0.0, %v2150
      %v2152 = vpop.f32.mrb[0].mxu0
      %2153 = vmatprep.mubr.bf16.mxu0 %v1847
      %2154 = vmatmul.mubr.bf16.gmra.mrb[0].mxu0 %v1846
      %v2155 = vpop.f32.mrb[0].mxu0
      %v2156 = vadd.f32 0.0, %v2155
      %v2157 = vpop.f32.mrb[0].mxu0
      %v2158 = vpop.f32.mrb[0].mxu0
      %v2159 = vadd.f32 0.0, %v2158
      %v2160 = vpop.f32.mrb[0].mxu0
      %2161 = vmatprep.mubr.bf16.mxu0 %v1850
      %2162 = vmatmul.mubr.bf16.gmra.mrb[0].mxu0 %v1849
      %v2163 = vpop.f32.mrb[0].mxu0
      %v2164 = vadd.f32 0.0, %v2163
      %v2165 = vpop.f32.mrb[0].mxu0
      %v2166 = vpop.f32.mrb[0].mxu0
      %v2167 = vadd.f32 0.0, %v2166
      %v2168 = vpop.f32.mrb[0].mxu0
      %2169 = vmatprep.mubr.bf16.mxu0 %v1853
      %2170 = vmatmul.mubr.bf16.gmra.mrb[0].mxu0 %v1852
      %v2171 = vpop.f32.mrb[0].mxu0
      %v2172 = vadd.f32 0.0, %v2171
      %v2173 = vpop.f32.mrb[0].mxu0
      %v2174 = vpop.f32.mrb[0].mxu0
      %v2175 = vadd.f32 0.0, %v2174
      %v2176 = vpop.f32.mrb[0].mxu0
      %2177 = vmatprep.mubr.bf16.mxu0 %v1856
      %2178 = vmatmul.mubr.bf16.gmra.mrb[0].mxu0 %v1855
      %v2179 = vpop.f32.mrb[0].mxu0
      %v2180 = vadd.f32 0.0, %v2179
      %v2181 = vpop.f32.mrb[0].mxu0
      %v2182 = vpop.f32.mrb[0].mxu0
      %v2183 = vadd.f32 0.0, %v2182
      %v2184 = vpop.f32.mrb[0].mxu0
      %2185 = vmatprep.mubr.bf16.mxu0 %v1859
      %2186 = vmatmul.mubr.bf16.gmra.mrb[0].mxu0 %v1858
      %v2187 = vpop.f32.mrb[0].mxu0
      %v2188 = vadd.f32 0.0, %v2187
      %v2189 = vpop.f32.mrb[0].mxu0
      %v2190 = vpop.f32.mrb[0].mxu0
      %v2191 = vadd.f32 0.0, %v2190
      %v2192 = vpop.f32.mrb[0].mxu0
      %2193 = vmatprep.mubr.bf16.mxu0 %v1862
      %2194 = vmatmul.mubr.bf16.gmra.mrb[0].mxu0 %v1861
      %v2195 = vpop.f32.mrb[0].mxu0
      %v2196 = vadd.f32 0.0, %v2195
      %v2197 = vpop.f32.mrb[0].mxu0
      %v2198 = vpop.f32.mrb[0].mxu0
      %v2199 = vadd.f32 0.0, %v2198
      %v2200 = vpop.f32.mrb[0].mxu0
      %2201 = vmatprep.mubr.bf16.mxu0 %v1865
      %2202 = vmatmul.mubr.bf16.gmra.mrb[0].mxu0 %v1864
      %v2203 = vpop.f32.mrb[0].mxu0
      %v2204 = vadd.f32 0.0, %v2203
      %v2205 = vpop.f32.mrb[0].mxu0
      %v2206 = vpop.f32.mrb[0].mxu0
      %v2207 = vadd.f32 0.0, %v2206
      %v2208 = vpop.f32.mrb[0].mxu0
      %2209 = vmatprep.mubr.bf16.mxu0 %v1868
      %2210 = vmatmul.mubr.bf16.gmra.mrb[0].mxu0 %v1867
      %v2211 = vpop.f32.mrb[0].mxu0
      %v2212 = vadd.f32 0.0, %v2211
      %v2213 = vpop.f32.mrb[0].mxu0
      %v2214 = vpop.f32.mrb[0].mxu0
      %v2215 = vadd.f32 0.0, %v2214
      %v2216 = vpop.f32.mrb[0].mxu0
      %2217 = vmatprep.mubr.bf16.mxu0 %v1871
      %2218 = vmatmul.mubr.bf16.gmra.mrb[0].mxu0 %v1870
      %v2219 = vpop.f32.mrb[0].mxu0
      %v2220 = vadd.f32 0.0, %v2219
      %v2221 = vpop.f32.mrb[0].mxu0
      %v2222 = vpop.f32.mrb[0].mxu0
      %v2223 = vadd.f32 0.0, %v2222
      %v2224 = vpop.f32.mrb[0].mxu0
      %2225 = vdwg.mxu0
      %2226 = vmatprep.subr.bf16.mxu0 0
      %2227 = vmatpush1.bf16.msra.mxu0 %v2033
      %2228 = vmatprep.subr.bf16.mxu0 0
      %2229 = vmatpush1.bf16.msra.mxu0 %v2034
      %2230 = vmatprep.subr.bf16.mxu0 0
      %2231 = vmatpush1.bf16.msra.mxu0 %v2035
      %2232 = vmatprep.subr.bf16.mxu0 0
      %2233 = vmatpush1.bf16.msra.mxu0 %v2036
      %2234 = vmatprep.subr.bf16.mxu0 0
      %2235 = vmatpush1.bf16.msra.mxu0 %v2037
      %2236 = vmatprep.subr.bf16.mxu0 0
      %2237 = vmatpush1.bf16.msra.mxu0 %v2038
      %2238 = vmatprep.subr.bf16.mxu0 0
      %2239 = vmatpush1.bf16.msra.mxu0 %v2039
      %2240 = vmatprep.subr.bf16.mxu0 0
      %2241 = vmatpush1.bf16.msra.mxu0 %v2040
      %2242 = vmatprep.subr.bf16.mxu0 0
      %2243 = vmatpush1.bf16.msra.mxu0 0
      %2244 = vmatprep.subr.bf16.mxu0 0
      %2245 = vmatpush1.bf16.msra.mxu0 0
      %2246 = vmatprep.subr.bf16.mxu0 0
      %2247 = vmatpush1.bf16.msra.mxu0 0
      %2248 = vmatprep.subr.bf16.mxu0 0
      %2249 = vmatpush1.bf16.msra.mxu0 0
      %2250 = vmatprep.subr.bf16.mxu0 0
      %2251 = vmatpush1.bf16.msra.mxu0 0
      %2252 = vmatprep.subr.bf16.mxu0 0
      %2253 = vmatpush1.bf16.msra.mxu0 0
      %2254 = vmatprep.subr.bf16.mxu0 0
      %2255 = vmatpush1.bf16.msra.mxu0 0
      %2256 = vmatprep.subr.bf16.mxu0 0
      %2257 = vmatpush1.bf16.msra.mxu0 0
      %2258 = vmatprep.mubr.bf16.mxu0 0
      %2259 = vmatmul.mubr.bf16.gmra.mrb[0].mxu0 %v1827
      %v2260 = vpop.f32.mrb[0].mxu0
      %v2261 = vadd.f32 %v2100, %v2260
      %v2262 = vpop.f32.mrb[0].mxu0
      %v2263 = vpop.f32.mrb[0].mxu0
      %v2264 = vadd.f32 %v2103, %v2263
      %v2265 = vpop.f32.mrb[0].mxu0
      %2266 = vmatprep.mubr.bf16.mxu0 0
      %2267 = vmatmul.mubr.bf16.gmra.mrb[0].mxu0 %v1830
      %v2268 = vpop.f32.mrb[0].mxu0
      %v2269 = vadd.f32 %v2108, %v2268
      %v2270 = vpop.f32.mrb[0].mxu0
      %v2271 = vpop.f32.mrb[0].mxu0
      %v2272 = vadd.f32 %v2111, %v2271
      %v2273 = vpop.f32.mrb[0].mxu0
      %2274 = vmatprep.mubr.bf16.mxu0 0
      %2275 = vmatmul.mubr.bf16.gmra.mrb[0].mxu0 %v1833
      %v2276 = vpop.f32.mrb[0].mxu0
      %v2277 = vadd.f32 %v2116, %v2276
      %v2278 = vpop.f32.mrb[0].mxu0
      %v2279 = vpop.f32.mrb[0].mxu0
      %v2280 = vadd.f32 %v2119, %v2279
      %v2281 = vpop.f32.mrb[0].mxu0
      %2282 = vmatprep.mubr.bf16.mxu0 0
      %2283 = vmatmul.mubr.bf16.gmra.mrb[0].mxu0 %v1836
      %v2284 = vpop.f32.mrb[0].mxu0
      %v2285 = vadd.f32 %v2124, %v2284
      %v2286 = vpop.f32.mrb[0].mxu0
      %v2287 = vpop.f32.mrb[0].mxu0
      %v2288 = vadd.f32 %v2127, %v2287
      %v2289 = vpop.f32.mrb[0].mxu0
      %2290 = vmatprep.mubr.bf16.mxu0 0
      %2291 = vmatmul.mubr.bf16.gmra.mrb[0].mxu0 %v1839
      %v2292 = vpop.f32.mrb[0].mxu0
      %v2293 = vadd.f32 %v2132, %v2292
      %v2294 = vpop.f32.mrb[0].mxu0
      %v2295 = vpop.f32.mrb[0].mxu0
      %v2296 = vadd.f32 %v2135, %v2295
      %v2297 = vpop.f32.mrb[0].mxu0
      %2298 = vmatprep.mubr.bf16.mxu0 0
      %2299 = vmatmul.mubr.bf16.gmra.mrb[0].mxu0 %v1842
      %v2300 = vpop.f32.mrb[0].mxu0
      %v2301 = vadd.f32 %v2140, %v2300
      %v2302 = vpop.f32.mrb[0].mxu0
      %v2303 = vpop.f32.mrb[0].mxu0
      %v2304 = vadd.f32 %v2143, %v2303
      %v2305 = vpop.f32.mrb[0].mxu0
      %2306 = vmatprep.mubr.bf16.mxu0 0
      %2307 = vmatmul.mubr.bf16.gmra.mrb[0].mxu0 %v1845
      %v2308 = vpop.f32.mrb[0].mxu0
      %v2309 = vadd.f32 %v2148, %v2308
      %v2310 = vpop.f32.mrb[0].mxu0
      %v2311 = vpop.f32.mrb[0].mxu0
      %v2312 = vadd.f32 %v2151, %v2311
      %v2313 = vpop.f32.mrb[0].mxu0
      %2314 = vmatprep.mubr.bf16.mxu0 0
      %2315 = vmatmul.mubr.bf16.gmra.mrb[0].mxu0 %v1848
      %v2316 = vpop.f32.mrb[0].mxu0
      %v2317 = vadd.f32 %v2156, %v2316
      %v2318 = vpop.f32.mrb[0].mxu0
      %v2319 = vpop.f32.mrb[0].mxu0
      %v2320 = vadd.f32 %v2159, %v2319
      %v2321 = vpop.f32.mrb[0].mxu0
      %2322 = vmatprep.mubr.bf16.mxu0 0
      %2323 = vmatmul.mubr.bf16.gmra.mrb[0].mxu0 %v1851
      %v2324 = vpop.f32.mrb[0].mxu0
      %v2325 = vadd.f32 %v2164, %v2324
      %v2326 = vpop.f32.mrb[0].mxu0
      %v2327 = vpop.f32.mrb[0].mxu0
      %v2328 = vadd.f32 %v2167, %v2327
      %v2329 = vpop.f32.mrb[0].mxu0
      %2330 = vmatprep.mubr.bf16.mxu0 0
      %2331 = vmatmul.mubr.bf16.gmra.mrb[0].mxu0 %v1854
      %v2332 = vpop.f32.mrb[0].mxu0
      %v2333 = vadd.f32 %v2172, %v2332
      %v2334 = vpop.f32.mrb[0].mxu0
      %v2335 = vpop.f32.mrb[0].mxu0
      %v2336 = vadd.f32 %v2175, %v2335
      %v2337 = vpop.f32.mrb[0].mxu0
      %2338 = vmatprep.mubr.bf16.mxu0 0
      %2339 = vmatmul.mubr.bf16.gmra.mrb[0].mxu0 %v1857
      %v2340 = vpop.f32.mrb[0].mxu0
      %v2341 = vadd.f32 %v2180, %v2340
      %v2342 = vpop.f32.mrb[0].mxu0
      %v2343 = vpop.f32.mrb[0].mxu0
      %v2344 = vadd.f32 %v2183, %v2343
      %v2345 = vpop.f32.mrb[0].mxu0
      %2346 = vmatprep.mubr.bf16.mxu0 0
      %2347 = vmatmul.mubr.bf16.gmra.mrb[0].mxu0 %v1860
      %v2348 = vpop.f32.mrb[0].mxu0
      %v2349 = vadd.f32 %v2188, %v2348
      %v2350 = vpop.f32.mrb[0].mxu0
      %v2351 = vpop.f32.mrb[0].mxu0
      %v2352 = vadd.f32 %v2191, %v2351
      %v2353 = vpop.f32.mrb[0].mxu0
      %2354 = vmatprep.mubr.bf16.mxu0 0
      %2355 = vmatmul.mubr.bf16.gmra.mrb[0].mxu0 %v1863
      %v2356 = vpop.f32.mrb[0].mxu0
      %v2357 = vadd.f32 %v2196, %v2356
      %v2358 = vpop.f32.mrb[0].mxu0
      %v2359 = vpop.f32.mrb[0].mxu0
      %v2360 = vadd.f32 %v2199, %v2359
      %v2361 = vpop.f32.mrb[0].mxu0
      %2362 = vmatprep.mubr.bf16.mxu0 0
      %2363 = vmatmul.mubr.bf16.gmra.mrb[0].mxu0 %v1866
      %v2364 = vpop.f32.mrb[0].mxu0
      %v2365 = vadd.f32 %v2204, %v2364
      %v2366 = vpop.f32.mrb[0].mxu0
      %v2367 = vpop.f32.mrb[0].mxu0
      %v2368 = vadd.f32 %v2207, %v2367
      %v2369 = vpop.f32.mrb[0].mxu0
      %2370 = vmatprep.mubr.bf16.mxu0 0
      %2371 = vmatmul.mubr.bf16.gmra.mrb[0].mxu0 %v1869
      %v2372 = vpop.f32.mrb[0].mxu0
      %v2373 = vadd.f32 %v2212, %v2372
      %v2374 = vpop.f32.mrb[0].mxu0
      %v2375 = vpop.f32.mrb[0].mxu0
      %v2376 = vadd.f32 %v2215, %v2375
      %v2377 = vpop.f32.mrb[0].mxu0
      %2378 = vmatprep.mubr.bf16.mxu0 0
      %2379 = vmatmul.mubr.bf16.gmra.mrb[0].mxu0 %v1872
      %v2380 = vpop.f32.mrb[0].mxu0
      %v2381 = vadd.f32 %v2220, %v2380
      %v2382 = vpop.f32.mrb[0].mxu0
      %v2383 = vpop.f32.mrb[0].mxu0
      %v2384 = vadd.f32 %v2223, %v2383
      %v2385 = vpop.f32.mrb[0].mxu0
      %2386 = vdwg.mxu0
      %v2387 = vadd.f32 %v1426, %v2261
      %v2388 = vadd.f32 %v1429, %v2264
      %v2389 = vadd.f32 %v1434, %v2269
      %v2390 = vadd.f32 %v1437, %v2272
      %v2391 = vadd.f32 %v1442, %v2277
      %v2392 = vadd.f32 %v1445, %v2280
      %v2393 = vadd.f32 %v1450, %v2285
      %v2394 = vadd.f32 %v1453, %v2288
      %v2395 = vadd.f32 %v1458, %v2293
      %v2396 = vadd.f32 %v1461, %v2296
      %v2397 = vadd.f32 %v1466, %v2301
      %v2398 = vadd.f32 %v1469, %v2304
      %v2399 = vadd.f32 %v1474, %v2309
      %v2400 = vadd.f32 %v1477, %v2312
      %v2401 = vadd.f32 %v1482, %v2317
      %v2402 = vadd.f32 %v1485, %v2320
      %v2403 = vadd.f32 %v1490, %v2325
      %v2404 = vadd.f32 %v1493, %v2328
      %v2405 = vadd.f32 %v1498, %v2333
      %v2406 = vadd.f32 %v1501, %v2336
      %v2407 = vadd.f32 %v1506, %v2341
      %v2408 = vadd.f32 %v1509, %v2344
      %v2409 = vadd.f32 %v1514, %v2349
      %v2410 = vadd.f32 %v1517, %v2352
      %v2411 = vadd.f32 %v1522, %v2357
      %v2412 = vadd.f32 %v1525, %v2360
      %v2413 = vadd.f32 %v1530, %v2365
      %v2414 = vadd.f32 %v1533, %v2368
      %v2415 = vadd.f32 %v1538, %v2373
      %v2416 = vadd.f32 %v1541, %v2376
      %v2417 = vadd.f32 %v1546, %v2381
      %v2418 = vadd.f32 %v1549, %v2384
      %v2419 = vpack.c.bf16 %v2388, %v2387
      %v2420 = vpack.c.bf16 %v2390, %v2389
      %v2421 = vpack.c.bf16 %v2392, %v2391
      %v2422 = vpack.c.bf16 %v2394, %v2393
      %v2423 = vpack.c.bf16 %v2396, %v2395
      %v2424 = vpack.c.bf16 %v2398, %v2397
      %v2425 = vpack.c.bf16 %v2400, %v2399
      %v2426 = vpack.c.bf16 %v2402, %v2401
      %v2427 = vpack.c.bf16 %v2404, %v2403
      %v2428 = vpack.c.bf16 %v2406, %v2405
      %v2429 = vpack.c.bf16 %v2408, %v2407
      %v2430 = vpack.c.bf16 %v2410, %v2409
      %v2431 = vpack.c.bf16 %v2412, %v2411
      %v2432 = vpack.c.bf16 %v2414, %v2413
      %v2433 = vpack.c.bf16 %v2416, %v2415
      %v2434 = vpack.c.bf16 %v2418, %v2417
      %v2451 = vunpack.c.l.b16 %v2419
      %v2452 = vunpack.c.h.b16 %v2419
      %v2453 = vunpack.c.l.b16 %v2420
      %v2454 = vunpack.c.h.b16 %v2420
      %v2455 = vunpack.c.l.b16 %v2421
      %v2456 = vunpack.c.h.b16 %v2421
      %v2457 = vunpack.c.l.b16 %v2422
      %v2458 = vunpack.c.h.b16 %v2422
      %v2459 = vunpack.c.l.b16 %v2423
      %v2460 = vunpack.c.h.b16 %v2423
      %v2461 = vunpack.c.l.b16 %v2424
      %v2462 = vunpack.c.h.b16 %v2424
      %v2463 = vunpack.c.l.b16 %v2425
      %v2464 = vunpack.c.h.b16 %v2425
      %v2465 = vunpack.c.l.b16 %v2426
      %v2466 = vunpack.c.h.b16 %v2426
      %v2467 = vunpack.c.l.b16 %v2427
      %v2468 = vunpack.c.h.b16 %v2427
      %v2469 = vunpack.c.l.b16 %v2428
      %v2470 = vunpack.c.h.b16 %v2428
      %v2471 = vunpack.c.l.b16 %v2429
      %v2472 = vunpack.c.h.b16 %v2429
      %v2473 = vunpack.c.l.b16 %v2430
      %v2474 = vunpack.c.h.b16 %v2430
      %v2475 = vunpack.c.l.b16 %v2431
      %v2476 = vunpack.c.h.b16 %v2431
      %v2477 = vunpack.c.l.b16 %v2432
      %v2478 = vunpack.c.h.b16 %v2432
      %v2479 = vunpack.c.l.b16 %v2433
      %v2480 = vunpack.c.h.b16 %v2433
      %v2481 = vunpack.c.l.b16 %v2434
      %v2482 = vunpack.c.h.b16 %v2434
      %v2483 = vpack.c.b16 %v2451, %v2451
      %v2484 = vpack.c.b16 %v2452, %v2452
      %v2485 = vpack.c.b16 %v2453, %v2453
      %v2486 = vpack.c.b16 %v2454, %v2454
      %v2487 = vpack.c.b16 %v2455, %v2455
      %v2488 = vpack.c.b16 %v2456, %v2456
      %v2489 = vpack.c.b16 %v2457, %v2457
      %v2490 = vpack.c.b16 %v2458, %v2458
      %v2491 = vpack.c.b16 %v2459, %v2459
      %v2492 = vpack.c.b16 %v2460, %v2460
      %v2493 = vpack.c.b16 %v2461, %v2461
      %v2494 = vpack.c.b16 %v2462, %v2462
      %v2495 = vpack.c.b16 %v2463, %v2463
      %v2496 = vpack.c.b16 %v2464, %v2464
      %v2497 = vpack.c.b16 %v2465, %v2465
      %v2498 = vpack.c.b16 %v2466, %v2466
      %v2499 = vpack.c.b16 %v2467, %v2467
      %v2500 = vpack.c.b16 %v2468, %v2468
      %v2501 = vpack.c.b16 %v2469, %v2469
      %v2502 = vpack.c.b16 %v2470, %v2470
      %v2503 = vpack.c.b16 %v2471, %v2471
      %v2504 = vpack.c.b16 %v2472, %v2472
      %v2505 = vpack.c.b16 %v2473, %v2473
      %v2506 = vpack.c.b16 %v2474, %v2474
      %v2507 = vpack.c.b16 %v2475, %v2475
      %v2508 = vpack.c.b16 %v2476, %v2476
      %v2509 = vpack.c.b16 %v2477, %v2477
      %v2510 = vpack.c.b16 %v2478, %v2478
      %v2511 = vpack.c.b16 %v2479, %v2479
      %v2512 = vpack.c.b16 %v2480, %v2480
      %v2513 = vpack.c.b16 %v2481, %v2481
      %v2514 = vpack.c.b16 %v2482, %v2482
      %2547 = vst [vmem:[%s177] sm:$0xf] %v2483
      %2548 = vst [vmem:[%s177 + $0x4] sm:$0xf] %v2484
      %2549 = vst [vmem:[%s177 + $0x8] sm:$0xf] %v2485
      %2550 = vst [vmem:[%s177 + $0xc] sm:$0xf] %v2486
      %2551 = vst [vmem:[%s177 + $0x10] sm:$0xf] %v2487
      %2552 = vst [vmem:[%s177 + $0x14] sm:$0xf] %v2488
      %2553 = vst [vmem:[%s177 + $0x18] sm:$0xf] %v2489
      %2554 = vst [vmem:[%s177 + $0x1c] sm:$0xf] %v2490
      %2555 = vst [vmem:[%s177 + $0x20] sm:$0xf] %v2491
      %2556 = vst [vmem:[%s177 + $0x24] sm:$0xf] %v2492
      %2557 = vst [vmem:[%s177 + $0x28] sm:$0xf] %v2493
      %2558 = vst [vmem:[%s177 + $0x2c] sm:$0xf] %v2494
      %2559 = vst [vmem:[%s177 + $0x30] sm:$0xf] %v2495
      %2560 = vst [vmem:[%s177 + $0x34] sm:$0xf] %v2496
      %2561 = vst [vmem:[%s177 + $0x38] sm:$0xf] %v2497
      %2562 = vst [vmem:[%s177 + $0x3c] sm:$0xf] %v2498
      %2563 = vst [vmem:[%s177 + $0x40] sm:$0xf] %v2499
      %2564 = vst [vmem:[%s177 + $0x44] sm:$0xf] %v2500
      %2565 = vst [vmem:[%s177 + $0x48] sm:$0xf] %v2501
      %2566 = vst [vmem:[%s177 + $0x4c] sm:$0xf] %v2502
      %2567 = vst [vmem:[%s177 + $0x50] sm:$0xf] %v2503
      %2568 = vst [vmem:[%s177 + $0x54] sm:$0xf] %v2504
      %2569 = vst [vmem:[%s177 + $0x58] sm:$0xf] %v2505
      %2570 = vst [vmem:[%s177 + $0x5c] sm:$0xf] %v2506
      %2571 = vst [vmem:[%s177 + $0x60] sm:$0xf] %v2507
      %2572 = vst [vmem:[%s177 + $0x64] sm:$0xf] %v2508
      %2573 = vst [vmem:[%s177 + $0x68] sm:$0xf] %v2509
      %2574 = vst [vmem:[%s177 + $0x6c] sm:$0xf] %v2510
      %2575 = vst [vmem:[%s177 + $0x70] sm:$0xf] %v2511
      %2576 = vst [vmem:[%s177 + $0x74] sm:$0xf] %v2512
      %2577 = vst [vmem:[%s177 + $0x78] sm:$0xf] %v2513
      %2578 = vst [vmem:[%s177 + $0x7c] sm:$0xf] %v2514
      %v2579 = vadd.f32 %v2387, %v2388
      %v2580 = vadd.f32 %v2579, %v2389
      %v2581 = vadd.f32 %v2580, %v2390
      %v2582 = vadd.f32 %v2581, %v2391
      %v2583 = vadd.f32 %v2582, %v2392
      %v2584 = vadd.f32 %v2583, %v2393
      %v2585 = vadd.f32 %v2584, %v2394
      %v2586 = vadd.f32 %v2585, %v2395
      %v2587 = vadd.f32 %v2586, %v2396
      %v2588 = vadd.f32 %v2587, %v2397
      %v2589 = vadd.f32 %v2588, %v2398
      %v2590 = vadd.f32 %v2589, %v2399
      %v2591 = vadd.f32 %v2590, %v2400
      %v2592 = vadd.f32 %v2591, %v2401
      %v2593 = vadd.f32 %v2592, %v2402
      %v2594 = vadd.f32 %v2593, %v2403
      %v2595 = vadd.f32 %v2594, %v2404
      %v2596 = vadd.f32 %v2595, %v2405
      %v2597 = vadd.f32 %v2596, %v2406
      %v2598 = vadd.f32 %v2597, %v2407
      %v2599 = vadd.f32 %v2598, %v2408
      %v2600 = vadd.f32 %v2599, %v2409
      %v2601 = vadd.f32 %v2600, %v2410
      %v2602 = vadd.f32 %v2601, %v2411
      %v2603 = vadd.f32 %v2602, %v2412
      %v2604 = vadd.f32 %v2603, %v2413
      %v2605 = vadd.f32 %v2604, %v2414
      %v2606 = vadd.f32 %v2605, %v2415
      %v2607 = vadd.f32 %v2606, %v2416
      %v2608 = vadd.f32 %v2607, %v2417
      %v2609 = vadd.f32 %v2608, %v2418
      %v2610 = vrot.slane %v2609, 4
      %v2611 = vadd.f32 %v2609, %v2610
      %v2612 = vrot.slane %v2611, 2
      %v2613 = vadd.f32 %v2611, %v2612
      %v2614 = vrot.slane %v2613, 1
      %v2615 = vadd.f32 %v2613, %v2614
      %v2616 = vmul.f32 %v2615, 0.00390625
      %v2617 = vsub.f32 %v2387, %v2616
      %v2618 = vsub.f32 %v2388, %v2616
      %v2619 = vsub.f32 %v2389, %v2616
      %v2620 = vsub.f32 %v2390, %v2616
      %v2621 = vsub.f32 %v2391, %v2616
      %v2622 = vsub.f32 %v2392, %v2616
      %v2623 = vsub.f32 %v2393, %v2616
      %v2624 = vsub.f32 %v2394, %v2616
      %v2625 = vsub.f32 %v2395, %v2616
      %v2626 = vsub.f32 %v2396, %v2616
      %v2627 = vsub.f32 %v2397, %v2616
      %v2628 = vsub.f32 %v2398, %v2616
      %v2629 = vsub.f32 %v2399, %v2616
      %v2630 = vsub.f32 %v2400, %v2616
      %v2631 = vsub.f32 %v2401, %v2616
      %v2632 = vsub.f32 %v2402, %v2616
      %v2633 = vsub.f32 %v2403, %v2616
      %v2634 = vsub.f32 %v2404, %v2616
      %v2635 = vsub.f32 %v2405, %v2616
      %v2636 = vsub.f32 %v2406, %v2616
      %v2637 = vsub.f32 %v2407, %v2616
      %v2638 = vsub.f32 %v2408, %v2616
      %v2639 = vsub.f32 %v2409, %v2616
      %v2640 = vsub.f32 %v2410, %v2616
      %v2641 = vsub.f32 %v2411, %v2616
      %v2642 = vsub.f32 %v2412, %v2616
      %v2643 = vsub.f32 %v2413, %v2616
      %v2644 = vsub.f32 %v2414, %v2616
      %v2645 = vsub.f32 %v2415, %v2616
      %v2646 = vsub.f32 %v2416, %v2616
      %v2647 = vsub.f32 %v2417, %v2616
      %v2648 = vsub.f32 %v2418, %v2616
      %v2649 = vmul.f32 %v2617, %v2617
      %v2650 = vmul.f32 %v2618, %v2618
      %v2651 = vmul.f32 %v2619, %v2619
      %v2652 = vmul.f32 %v2620, %v2620
      %v2653 = vmul.f32 %v2621, %v2621
      %v2654 = vmul.f32 %v2622, %v2622
      %v2655 = vmul.f32 %v2623, %v2623
      %v2656 = vmul.f32 %v2624, %v2624
      %v2657 = vmul.f32 %v2625, %v2625
      %v2658 = vmul.f32 %v2626, %v2626
      %v2659 = vmul.f32 %v2627, %v2627
      %v2660 = vmul.f32 %v2628, %v2628
      %v2661 = vmul.f32 %v2629, %v2629
      %v2662 = vmul.f32 %v2630, %v2630
      %v2663 = vmul.f32 %v2631, %v2631
      %v2664 = vmul.f32 %v2632, %v2632
      %v2665 = vmul.f32 %v2633, %v2633
      %v2666 = vmul.f32 %v2634, %v2634
      %v2667 = vmul.f32 %v2635, %v2635
      %v2668 = vmul.f32 %v2636, %v2636
      %v2669 = vmul.f32 %v2637, %v2637
      %v2670 = vmul.f32 %v2638, %v2638
      %v2671 = vmul.f32 %v2639, %v2639
      %v2672 = vmul.f32 %v2640, %v2640
      %v2673 = vmul.f32 %v2641, %v2641
      %v2674 = vmul.f32 %v2642, %v2642
      %v2675 = vmul.f32 %v2643, %v2643
      %v2676 = vmul.f32 %v2644, %v2644
      %v2677 = vmul.f32 %v2645, %v2645
      %v2678 = vmul.f32 %v2646, %v2646
      %v2679 = vmul.f32 %v2647, %v2647
      %v2680 = vmul.f32 %v2648, %v2648
      %v2681 = vadd.f32 %v2649, %v2650
      %v2682 = vadd.f32 %v2681, %v2651
      %v2683 = vadd.f32 %v2682, %v2652
      %v2684 = vadd.f32 %v2683, %v2653
      %v2685 = vadd.f32 %v2684, %v2654
      %v2686 = vadd.f32 %v2685, %v2655
      %v2687 = vadd.f32 %v2686, %v2656
      %v2688 = vadd.f32 %v2687, %v2657
      %v2689 = vadd.f32 %v2688, %v2658
      %v2690 = vadd.f32 %v2689, %v2659
      %v2691 = vadd.f32 %v2690, %v2660
      %v2692 = vadd.f32 %v2691, %v2661
      %v2693 = vadd.f32 %v2692, %v2662
      %v2694 = vadd.f32 %v2693, %v2663
      %v2695 = vadd.f32 %v2694, %v2664
      %v2696 = vadd.f32 %v2695, %v2665
      %v2697 = vadd.f32 %v2696, %v2666
      %v2698 = vadd.f32 %v2697, %v2667
      %v2699 = vadd.f32 %v2698, %v2668
      %v2700 = vadd.f32 %v2699, %v2669
      %v2701 = vadd.f32 %v2700, %v2670
      %v2702 = vadd.f32 %v2701, %v2671
      %v2703 = vadd.f32 %v2702, %v2672
      %v2704 = vadd.f32 %v2703, %v2673
      %v2705 = vadd.f32 %v2704, %v2674
      %v2706 = vadd.f32 %v2705, %v2675
      %v2707 = vadd.f32 %v2706, %v2676
      %v2708 = vadd.f32 %v2707, %v2677
      %v2709 = vadd.f32 %v2708, %v2678
      %v2710 = vadd.f32 %v2709, %v2679
      %v2711 = vadd.f32 %v2710, %v2680
      %v2712 = vrot.slane %v2711, 4
      %v2713 = vadd.f32 %v2711, %v2712
      %v2714 = vrot.slane %v2713, 2
      %v2715 = vadd.f32 %v2713, %v2714
      %v2716 = vrot.slane %v2715, 1
      %v2717 = vadd.f32 %v2715, %v2716
      %vm2718 = vcmask 1040384
      %v2719 = vsel %vm2718, %v2615, %v2717
      %2720 = vst [vmem:[%s181] sm:$0x3] %v2719
      %p2721 = scmp.lt.s32.totalorder %s15, 1
      %s2722 = scalar_select %p2721, %s15, 1
      %s2723 = smul.addr %s2722, 32
      %s2724 = smul.addr %s2723, 4
      %s2725 = scalar_lea.vmem %s2, %s2724
      %p2726 = scmp.lt.s32.totalorder %s15, 1
      %s2727 = scalar_select %p2726, %s15, 1
      %s2728 = smul.addr %s2727, 2
      %s2729 = scalar_lea.vmem %s3, %s2728
      // Predicated region
      $region29: #{restnet_basic_block.4} parent=27 // pred_check
        %p2730 = pneg %p80
      $region30: #{restnet_basic_block.4} parent=27 // pred_check_branch
        %2732 = sbr.rel (%p2730) target = $region32
      $region31: #{restnet_basic_block.4} parent=27 // pred_region
        _
      $region32: #{restnet_basic_block.4} parent=27 // pred_fallthru
        _
      // Predicated region
      $region33: #{restnet_basic_block.4} parent=27 // pred_check
        %p2733 = pneg %p106
      $region34: #{restnet_basic_block.4} parent=27 // pred_check_branch
        %2735 = sbr.rel (%p2733) target = $region36
      $region35: #{restnet_basic_block.4} parent=27 // pred_region
        _
      $region36: #{restnet_basic_block.4} parent=27 // pred_fallthru
        _
    $region28: #{restnet_basic_block.4} parent=5 // pred_fallthru
      _
    %p2736 = scmp.le.s32.totalorder 2, %s10
    // Predicated region
    $region37: #{restnet_basic_block.4} parent=5 // pred_check
      %p2737 = pneg %p2736
    $region38: #{restnet_basic_block.4} parent=5 // pred_check_branch
      %2739 = sbr.rel (%p2737) target = $region40
    $region39: #{restnet_basic_block.4} parent=5 // pred_region
      %s2740 = ssub.s32 %s10, 2
      // Predicated region
      $region41: #{restnet_basic_block.4} parent=39 // pred_check
        %p2741 = pneg %p86
      $region42: #{restnet_basic_block.4} parent=39 // pred_check_branch
        %2743 = sbr.rel (%p2741) target = $region44
      $region43: #{restnet_basic_block.4} parent=39 // pred_region
        %p2744 = scmp.lt.s32.totalorder %s16, 1
        %s2745 = scalar_select %p2744, %s16, 1
        %s2746 = smul.addr %s2745, 32
        %s2747 = smul.addr %s2746, 4
        %s2748 = scalar_lea.vmem %s2, %s2747
      $region44: #{restnet_basic_block.4} parent=39 // pred_fallthru
        _
      // Predicated region
      $region45: #{restnet_basic_block.4} parent=39 // pred_check
        %p2749 = pneg %p112
      $region46: #{restnet_basic_block.4} parent=39 // pred_check_branch
        %2751 = sbr.rel (%p2749) target = $region48
      $region47: #{restnet_basic_block.4} parent=39 // pred_region
        %p2752 = scmp.lt.s32.totalorder %s16, 1
        %s2753 = scalar_select %p2752, %s16, 1
        %s2754 = smul.addr %s2753, 2
        %s2755 = scalar_lea.vmem %s3, %s2754
      $region48: #{restnet_basic_block.4} parent=39 // pred_fallthru
        _
    $region40: #{restnet_basic_block.4} parent=5 // pred_fallthru
      _
  $region6: #{restnet_basic_block.4} parent=0 // loop_footer
    %s14 = sadd.s32 1, %s10
  $region7: #{restnet_basic_block.4} parent=0 // loop_footer_branch
    %9 = sbr.rel target = $region3
  $region8: #{restnet_basic_block.4} parent=0 // loop_exit
    _

// kernel: restnet_basic_block.7
$region0: #{restnet_basic_block.7}
  #allocation0 [shape = 'u32[]', space=smem, size = 0x4, offset = 0x4, fixed_abs, tag = 'smem constant byte address 0x4 - core index']
  #allocation1 [shape = 'u32[144,128]{1,0:T(1,128)}', space=vmem, size = 0x12000, scoped, tag = 'internal scratch']
  %s0 = inlined_call_operand.vmem [shape: bf16[512,128], index: 0, kind: input, shape index: {}]
  %s1 = inlined_call_operand.vmem [shape: bf16[512,128], index: 1, kind: input, shape index: {}]
  %s2 = inlined_call_operand.vmem [shape: f32[1,128], index: 2, kind: input, shape index: {}]
  %s3 = inlined_call_operand.vmem [shape: f32[1,128], index: 3, kind: input, shape index: {}]
  %s4 = inlined_call_operand.vmem [shape: f32[512,128], index: 4, kind: output, shape index: {}]
  %s5 = sld [smem:[#allocation0]]
  $region26: #{restnet_basic_block.7} parent=0
    _
  %s7 = ssub.s32 1, %s5
  %s8 = scalar_select 0, %s7, %s5
  // Predicated region
  $region2: #{restnet_basic_block.7} parent=0 // pred_check
    _
  $region3: #{restnet_basic_block.7} parent=0 // pred_check_branch
    %10 = sbr.rel (0) target = $region5
  $region4: #{restnet_basic_block.7} parent=0 // pred_region
    _
  $region5: #{restnet_basic_block.7} parent=0 // pred_fallthru
    _
  // Predicated region
  $region6: #{restnet_basic_block.7} parent=0 // pred_check
    _
  $region7: #{restnet_basic_block.7} parent=0 // pred_check_branch
    %12 = sbr.rel (0) target = $region9
  $region8: #{restnet_basic_block.7} parent=0 // pred_region
    _
  $region9: #{restnet_basic_block.7} parent=0 // pred_fallthru
    _
  // Predicated region
  $region10: #{restnet_basic_block.7} parent=0 // pred_check
    _
  $region11: #{restnet_basic_block.7} parent=0 // pred_check_branch
    %14 = sbr.rel (0) target = $region13
  $region12: #{restnet_basic_block.7} parent=0 // pred_region
    _
  $region13: #{restnet_basic_block.7} parent=0 // pred_fallthru
    _
  // Predicated region
  $region14: #{restnet_basic_block.7} parent=0 // pred_check
    _
  $region15: #{restnet_basic_block.7} parent=0 // pred_check_branch
    %16 = sbr.rel (0) target = $region17
  $region16: #{restnet_basic_block.7} parent=0 // pred_region
    _
  $region17: #{restnet_basic_block.7} parent=0 // pred_fallthru
    _
  %v17 = vld [vmem:[%s0] sm:$0xf]
  %v18 = vld [vmem:[%s0 + $0x4] sm:$0xf]
  %v19 = vld [vmem:[%s0 + $0x8] sm:$0xf]
  %v20 = vld [vmem:[%s0 + $0xc] sm:$0xf]
  %v21 = vld [vmem:[%s0 + $0x10] sm:$0xf]
  %v22 = vld [vmem:[%s0 + $0x14] sm:$0xf]
  %v23 = vld [vmem:[%s0 + $0x18] sm:$0xf]
  %v24 = vld [vmem:[%s0 + $0x1c] sm:$0xf]
  %v25 = vld [vmem:[%s0 + $0x20] sm:$0xf]
  %v26 = vld [vmem:[%s0 + $0x24] sm:$0xf]
  %v27 = vld [vmem:[%s0 + $0x28] sm:$0xf]
  %v28 = vld [vmem:[%s0 + $0x2c] sm:$0xf]
  %v29 = vld [vmem:[%s0 + $0x30] sm:$0xf]
  %v30 = vld [vmem:[%s0 + $0x34] sm:$0xf]
  %v31 = vld [vmem:[%s0 + $0x38] sm:$0xf]
  %v32 = vld [vmem:[%s0 + $0x3c] sm:$0xf]
  %v33 = vld [vmem:[%s0 + $0x40] sm:$0xf]
  %v34 = vld [vmem:[%s0 + $0x44] sm:$0xf]
  %v35 = vld [vmem:[%s0 + $0x48] sm:$0xf]
  %v36 = vld [vmem:[%s0 + $0x4c] sm:$0xf]
  %v37 = vld [vmem:[%s0 + $0x50] sm:$0xf]
  %v38 = vld [vmem:[%s0 + $0x54] sm:$0xf]
  %v39 = vld [vmem:[%s0 + $0x58] sm:$0xf]
  %v40 = vld [vmem:[%s0 + $0x5c] sm:$0xf]
  %v41 = vld [vmem:[%s0 + $0x60] sm:$0xf]
  %v42 = vld [vmem:[%s0 + $0x64] sm:$0xf]
  %v43 = vld [vmem:[%s0 + $0x68] sm:$0xf]
  %v44 = vld [vmem:[%s0 + $0x6c] sm:$0xf]
  %v45 = vld [vmem:[%s0 + $0x70] sm:$0xf]
  %v46 = vld [vmem:[%s0 + $0x74] sm:$0xf]
  %v47 = vld [vmem:[%s0 + $0x78] sm:$0xf]
  %v48 = vld [vmem:[%s0 + $0x7c] sm:$0xf]
  %v49 = vld [vmem:[%s0 + $0x80] sm:$0xf]
  %v50 = vld [vmem:[%s0 + $0x84] sm:$0xf]
  %v51 = vld [vmem:[%s0 + $0x88] sm:$0xf]
  %v52 = vld [vmem:[%s0 + $0x8c] sm:$0xf]
  %v53 = vld [vmem:[%s0 + $0x90] sm:$0xf]
  %v54 = vld [vmem:[%s0 + $0x94] sm:$0xf]
  %v55 = vld [vmem:[%s0 + $0x98] sm:$0xf]
  %v56 = vld [vmem:[%s0 + $0x9c] sm:$0xf]
  %v57 = vld [vmem:[%s0 + $0xa0] sm:$0xf]
  %v58 = vld [vmem:[%s0 + $0xa4] sm:$0xf]
  %v59 = vld [vmem:[%s0 + $0xa8] sm:$0xf]
  %v60 = vld [vmem:[%s0 + $0xac] sm:$0xf]
  %v61 = vld [vmem:[%s0 + $0xb0] sm:$0xf]
  %v62 = vld [vmem:[%s0 + $0xb4] sm:$0xf]
  %v63 = vld [vmem:[%s0 + $0xb8] sm:$0xf]
  %v64 = vld [vmem:[%s0 + $0xbc] sm:$0xf]
  %v65 = vld [vmem:[%s0 + $0xc0] sm:$0xf]
  %v66 = vld [vmem:[%s0 + $0xc4] sm:$0xf]
  %v67 = vld [vmem:[%s0 + $0xc8] sm:$0xf]
  %v68 = vld [vmem:[%s0 + $0xcc] sm:$0xf]
  %v69 = vld [vmem:[%s0 + $0xd0] sm:$0xf]
  %v70 = vld [vmem:[%s0 + $0xd4] sm:$0xf]
  %v71 = vld [vmem:[%s0 + $0xd8] sm:$0xf]
  %v72 = vld [vmem:[%s0 + $0xdc] sm:$0xf]
  %v73 = vld [vmem:[%s0 + $0xe0] sm:$0xf]
  %v74 = vld [vmem:[%s0 + $0xe4] sm:$0xf]
  %v75 = vld [vmem:[%s0 + $0xe8] sm:$0xf]
  %v76 = vld [vmem:[%s0 + $0xec] sm:$0xf]
  %v77 = vld [vmem:[%s0 + $0xf0] sm:$0xf]
  %v78 = vld [vmem:[%s0 + $0xf4] sm:$0xf]
  %v79 = vld [vmem:[%s0 + $0xf8] sm:$0xf]
  %v80 = vld [vmem:[%s0 + $0xfc] sm:$0xf]
  %v81 = vunpack.c.l.bf16 %v17
  %v82 = vunpack.c.l.bf16 %v18
  %v83 = vunpack.c.l.bf16 %v19
  %v84 = vunpack.c.l.bf16 %v20
  %v85 = vunpack.c.l.bf16 %v21
  %v86 = vunpack.c.l.bf16 %v22
  %v87 = vunpack.c.l.bf16 %v23
  %v88 = vunpack.c.l.bf16 %v24
  %v89 = vunpack.c.l.bf16 %v25
  %v90 = vunpack.c.l.bf16 %v26
  %v91 = vunpack.c.l.bf16 %v27
  %v92 = vunpack.c.l.bf16 %v28
  %v93 = vunpack.c.l.bf16 %v29
  %v94 = vunpack.c.l.bf16 %v30
  %v95 = vunpack.c.l.bf16 %v31
  %v96 = vunpack.c.l.bf16 %v32
  %v97 = vunpack.c.l.bf16 %v33
  %v98 = vunpack.c.l.bf16 %v34
  %v99 = vunpack.c.l.bf16 %v35
  %v100 = vunpack.c.l.bf16 %v36
  %v101 = vunpack.c.l.bf16 %v37
  %v102 = vunpack.c.l.bf16 %v38
  %v103 = vunpack.c.l.bf16 %v39
  %v104 = vunpack.c.l.bf16 %v40
  %v105 = vunpack.c.l.bf16 %v41
  %v106 = vunpack.c.l.bf16 %v42
  %v107 = vunpack.c.l.bf16 %v43
  %v108 = vunpack.c.l.bf16 %v44
  %v109 = vunpack.c.l.bf16 %v45
  %v110 = vunpack.c.l.bf16 %v46
  %v111 = vunpack.c.l.bf16 %v47
  %v112 = vunpack.c.l.bf16 %v48
  %v113 = vunpack.c.l.bf16 %v49
  %v114 = vunpack.c.l.bf16 %v50
  %v115 = vunpack.c.l.bf16 %v51
  %v116 = vunpack.c.l.bf16 %v52
  %v117 = vunpack.c.l.bf16 %v53
  %v118 = vunpack.c.l.bf16 %v54
  %v119 = vunpack.c.l.bf16 %v55
  %v120 = vunpack.c.l.bf16 %v56
  %v121 = vunpack.c.l.bf16 %v57
  %v122 = vunpack.c.l.bf16 %v58
  %v123 = vunpack.c.l.bf16 %v59
  %v124 = vunpack.c.l.bf16 %v60
  %v125 = vunpack.c.l.bf16 %v61
  %v126 = vunpack.c.l.bf16 %v62
  %v127 = vunpack.c.l.bf16 %v63
  %v128 = vunpack.c.l.bf16 %v64
  %v129 = vunpack.c.l.bf16 %v65
  %v130 = vunpack.c.l.bf16 %v66
  %v131 = vunpack.c.l.bf16 %v67
  %v132 = vunpack.c.l.bf16 %v68
  %v133 = vunpack.c.l.bf16 %v69
  %v134 = vunpack.c.l.bf16 %v70
  %v135 = vunpack.c.l.bf16 %v71
  %v136 = vunpack.c.l.bf16 %v72
  %v137 = vunpack.c.l.bf16 %v73
  %v138 = vunpack.c.l.bf16 %v74
  %v139 = vunpack.c.l.bf16 %v75
  %v140 = vunpack.c.l.bf16 %v76
  %v141 = vunpack.c.l.bf16 %v77
  %v142 = vunpack.c.l.bf16 %v78
  %v143 = vunpack.c.l.bf16 %v79
  %v144 = vunpack.c.l.bf16 %v80
  %v145 = vld [vmem:[%s2] sm:$0x1]
  %v147 = vlaneseq
  %v148 = vshrl.u32 %v147, 7
  %v149 = vsub.s32 0, %v148
  %v150 = vrot.slane %v145, %v149
  %v152 = vmul.f32 %v81, %v150
  %v153 = vmul.f32 %v82, %v150
  %v154 = vmul.f32 %v83, %v150
  %v155 = vmul.f32 %v84, %v150
  %v156 = vmul.f32 %v85, %v150
  %v157 = vmul.f32 %v86, %v150
  %v158 = vmul.f32 %v87, %v150
  %v159 = vmul.f32 %v88, %v150
  %v160 = vmul.f32 %v89, %v150
  %v161 = vmul.f32 %v90, %v150
  %v162 = vmul.f32 %v91, %v150
  %v163 = vmul.f32 %v92, %v150
  %v164 = vmul.f32 %v93, %v150
  %v165 = vmul.f32 %v94, %v150
  %v166 = vmul.f32 %v95, %v150
  %v167 = vmul.f32 %v96, %v150
  %v168 = vmul.f32 %v97, %v150
  %v169 = vmul.f32 %v98, %v150
  %v170 = vmul.f32 %v99, %v150
  %v171 = vmul.f32 %v100, %v150
  %v172 = vmul.f32 %v101, %v150
  %v173 = vmul.f32 %v102, %v150
  %v174 = vmul.f32 %v103, %v150
  %v175 = vmul.f32 %v104, %v150
  %v176 = vmul.f32 %v105, %v150
  %v177 = vmul.f32 %v106, %v150
  %v178 = vmul.f32 %v107, %v150
  %v179 = vmul.f32 %v108, %v150
  %v180 = vmul.f32 %v109, %v150
  %v181 = vmul.f32 %v110, %v150
  %v182 = vmul.f32 %v111, %v150
  %v183 = vmul.f32 %v112, %v150
  %v184 = vmul.f32 %v113, %v150
  %v185 = vmul.f32 %v114, %v150
  %v186 = vmul.f32 %v115, %v150
  %v187 = vmul.f32 %v116, %v150
  %v188 = vmul.f32 %v117, %v150
  %v189 = vmul.f32 %v118, %v150
  %v190 = vmul.f32 %v119, %v150
  %v191 = vmul.f32 %v120, %v150
  %v192 = vmul.f32 %v121, %v150
  %v193 = vmul.f32 %v122, %v150
  %v194 = vmul.f32 %v123, %v150
  %v195 = vmul.f32 %v124, %v150
  %v196 = vmul.f32 %v125, %v150
  %v197 = vmul.f32 %v126, %v150
  %v198 = vmul.f32 %v127, %v150
  %v199 = vmul.f32 %v128, %v150
  %v200 = vmul.f32 %v129, %v150
  %v201 = vmul.f32 %v130, %v150
  %v202 = vmul.f32 %v131, %v150
  %v203 = vmul.f32 %v132, %v150
  %v204 = vmul.f32 %v133, %v150
  %v205 = vmul.f32 %v134, %v150
  %v206 = vmul.f32 %v135, %v150
  %v207 = vmul.f32 %v136, %v150
  %v208 = vmul.f32 %v137, %v150
  %v209 = vmul.f32 %v138, %v150
  %v210 = vmul.f32 %v139, %v150
  %v211 = vmul.f32 %v140, %v150
  %v212 = vmul.f32 %v141, %v150
  %v213 = vmul.f32 %v142, %v150
  %v214 = vmul.f32 %v143, %v150
  %v215 = vmul.f32 %v144, %v150
  %v216 = vld [vmem:[%s3] sm:$0x1]
  %v218 = vlaneseq
  %v219 = vshrl.u32 %v218, 7
  %v220 = vsub.s32 0, %v219
  %v221 = vrot.slane %v216, %v220
  %v223 = vadd.f32 %v152, %v221
  %v224 = vadd.f32 %v153, %v221
  %v225 = vadd.f32 %v154, %v221
  %v226 = vadd.f32 %v155, %v221
  %v227 = vadd.f32 %v156, %v221
  %v228 = vadd.f32 %v157, %v221
  %v229 = vadd.f32 %v158, %v221
  %v230 = vadd.f32 %v159, %v221
  %v231 = vadd.f32 %v160, %v221
  %v232 = vadd.f32 %v161, %v221
  %v233 = vadd.f32 %v162, %v221
  %v234 = vadd.f32 %v163, %v221
  %v235 = vadd.f32 %v164, %v221
  %v236 = vadd.f32 %v165, %v221
  %v237 = vadd.f32 %v166, %v221
  %v238 = vadd.f32 %v167, %v221
  %v239 = vadd.f32 %v168, %v221
  %v240 = vadd.f32 %v169, %v221
  %v241 = vadd.f32 %v170, %v221
  %v242 = vadd.f32 %v171, %v221
  %v243 = vadd.f32 %v172, %v221
  %v244 = vadd.f32 %v173, %v221
  %v245 = vadd.f32 %v174, %v221
  %v246 = vadd.f32 %v175, %v221
  %v247 = vadd.f32 %v176, %v221
  %v248 = vadd.f32 %v177, %v221
  %v249 = vadd.f32 %v178, %v221
  %v250 = vadd.f32 %v179, %v221
  %v251 = vadd.f32 %v180, %v221
  %v252 = vadd.f32 %v181, %v221
  %v253 = vadd.f32 %v182, %v221
  %v254 = vadd.f32 %v183, %v221
  %v255 = vadd.f32 %v184, %v221
  %v256 = vadd.f32 %v185, %v221
  %v257 = vadd.f32 %v186, %v221
  %v258 = vadd.f32 %v187, %v221
  %v259 = vadd.f32 %v188, %v221
  %v260 = vadd.f32 %v189, %v221
  %v261 = vadd.f32 %v190, %v221
  %v262 = vadd.f32 %v191, %v221
  %v263 = vadd.f32 %v192, %v221
  %v264 = vadd.f32 %v193, %v221
  %v265 = vadd.f32 %v194, %v221
  %v266 = vadd.f32 %v195, %v221
  %v267 = vadd.f32 %v196, %v221
  %v268 = vadd.f32 %v197, %v221
  %v269 = vadd.f32 %v198, %v221
  %v270 = vadd.f32 %v199, %v221
  %v271 = vadd.f32 %v200, %v221
  %v272 = vadd.f32 %v201, %v221
  %v273 = vadd.f32 %v202, %v221
  %v274 = vadd.f32 %v203, %v221
  %v275 = vadd.f32 %v204, %v221
  %v276 = vadd.f32 %v205, %v221
  %v277 = vadd.f32 %v206, %v221
  %v278 = vadd.f32 %v207, %v221
  %v279 = vadd.f32 %v208, %v221
  %v280 = vadd.f32 %v209, %v221
  %v281 = vadd.f32 %v210, %v221
  %v282 = vadd.f32 %v211, %v221
  %v283 = vadd.f32 %v212, %v221
  %v284 = vadd.f32 %v213, %v221
  %v285 = vadd.f32 %v214, %v221
  %v286 = vadd.f32 %v215, %v221
  %v287 = vld [vmem:[%s1] sm:$0xf]
  %v288 = vld [vmem:[%s1 + $0x4] sm:$0xf]
  %v289 = vld [vmem:[%s1 + $0x8] sm:$0xf]
  %v290 = vld [vmem:[%s1 + $0xc] sm:$0xf]
  %v291 = vld [vmem:[%s1 + $0x10] sm:$0xf]
  %v292 = vld [vmem:[%s1 + $0x14] sm:$0xf]
  %v293 = vld [vmem:[%s1 + $0x18] sm:$0xf]
  %v294 = vld [vmem:[%s1 + $0x1c] sm:$0xf]
  %v295 = vld [vmem:[%s1 + $0x20] sm:$0xf]
  %v296 = vld [vmem:[%s1 + $0x24] sm:$0xf]
  %v297 = vld [vmem:[%s1 + $0x28] sm:$0xf]
  %v298 = vld [vmem:[%s1 + $0x2c] sm:$0xf]
  %v299 = vld [vmem:[%s1 + $0x30] sm:$0xf]
  %v300 = vld [vmem:[%s1 + $0x34] sm:$0xf]
  %v301 = vld [vmem:[%s1 + $0x38] sm:$0xf]
  %v302 = vld [vmem:[%s1 + $0x3c] sm:$0xf]
  %v303 = vld [vmem:[%s1 + $0x40] sm:$0xf]
  %v304 = vld [vmem:[%s1 + $0x44] sm:$0xf]
  %v305 = vld [vmem:[%s1 + $0x48] sm:$0xf]
  %v306 = vld [vmem:[%s1 + $0x4c] sm:$0xf]
  %v307 = vld [vmem:[%s1 + $0x50] sm:$0xf]
  %v308 = vld [vmem:[%s1 + $0x54] sm:$0xf]
  %v309 = vld [vmem:[%s1 + $0x58] sm:$0xf]
  %v310 = vld [vmem:[%s1 + $0x5c] sm:$0xf]
  %v311 = vld [vmem:[%s1 + $0x60] sm:$0xf]
  %v312 = vld [vmem:[%s1 + $0x64] sm:$0xf]
  %v313 = vld [vmem:[%s1 + $0x68] sm:$0xf]
  %v314 = vld [vmem:[%s1 + $0x6c] sm:$0xf]
  %v315 = vld [vmem:[%s1 + $0x70] sm:$0xf]
  %v316 = vld [vmem:[%s1 + $0x74] sm:$0xf]
  %v317 = vld [vmem:[%s1 + $0x78] sm:$0xf]
  %v318 = vld [vmem:[%s1 + $0x7c] sm:$0xf]
  %v319 = vld [vmem:[%s1 + $0x80] sm:$0xf]
  %v320 = vld [vmem:[%s1 + $0x84] sm:$0xf]
  %v321 = vld [vmem:[%s1 + $0x88] sm:$0xf]
  %v322 = vld [vmem:[%s1 + $0x8c] sm:$0xf]
  %v323 = vld [vmem:[%s1 + $0x90] sm:$0xf]
  %v324 = vld [vmem:[%s1 + $0x94] sm:$0xf]
  %v325 = vld [vmem:[%s1 + $0x98] sm:$0xf]
  %v326 = vld [vmem:[%s1 + $0x9c] sm:$0xf]
  %v327 = vld [vmem:[%s1 + $0xa0] sm:$0xf]
  %v328 = vld [vmem:[%s1 + $0xa4] sm:$0xf]
  %v329 = vld [vmem:[%s1 + $0xa8] sm:$0xf]
  %v330 = vld [vmem:[%s1 + $0xac] sm:$0xf]
  %v331 = vld [vmem:[%s1 + $0xb0] sm:$0xf]
  %v332 = vld [vmem:[%s1 + $0xb4] sm:$0xf]
  %v333 = vld [vmem:[%s1 + $0xb8] sm:$0xf]
  %v334 = vld [vmem:[%s1 + $0xbc] sm:$0xf]
  %v335 = vld [vmem:[%s1 + $0xc0] sm:$0xf]
  %v336 = vld [vmem:[%s1 + $0xc4] sm:$0xf]
  %v337 = vld [vmem:[%s1 + $0xc8] sm:$0xf]
  %v338 = vld [vmem:[%s1 + $0xcc] sm:$0xf]
  %v339 = vld [vmem:[%s1 + $0xd0] sm:$0xf]
  %v340 = vld [vmem:[%s1 + $0xd4] sm:$0xf]
  %v341 = vld [vmem:[%s1 + $0xd8] sm:$0xf]
  %v342 = vld [vmem:[%s1 + $0xdc] sm:$0xf]
  %v343 = vld [vmem:[%s1 + $0xe0] sm:$0xf]
  %v344 = vld [vmem:[%s1 + $0xe4] sm:$0xf]
  %v345 = vld [vmem:[%s1 + $0xe8] sm:$0xf]
  %v346 = vld [vmem:[%s1 + $0xec] sm:$0xf]
  %v347 = vld [vmem:[%s1 + $0xf0] sm:$0xf]
  %v348 = vld [vmem:[%s1 + $0xf4] sm:$0xf]
  %v349 = vld [vmem:[%s1 + $0xf8] sm:$0xf]
  %v350 = vld [vmem:[%s1 + $0xfc] sm:$0xf]
  %v351 = vunpack.c.l.bf16 %v287
  %v352 = vunpack.c.l.bf16 %v288
  %v353 = vunpack.c.l.bf16 %v289
  %v354 = vunpack.c.l.bf16 %v290
  %v355 = vunpack.c.l.bf16 %v291
  %v356 = vunpack.c.l.bf16 %v292
  %v357 = vunpack.c.l.bf16 %v293
  %v358 = vunpack.c.l.bf16 %v294
  %v359 = vunpack.c.l.bf16 %v295
  %v360 = vunpack.c.l.bf16 %v296
  %v361 = vunpack.c.l.bf16 %v297
  %v362 = vunpack.c.l.bf16 %v298
  %v363 = vunpack.c.l.bf16 %v299
  %v364 = vunpack.c.l.bf16 %v300
  %v365 = vunpack.c.l.bf16 %v301
  %v366 = vunpack.c.l.bf16 %v302
  %v367 = vunpack.c.l.bf16 %v303
  %v368 = vunpack.c.l.bf16 %v304
  %v369 = vunpack.c.l.bf16 %v305
  %v370 = vunpack.c.l.bf16 %v306
  %v371 = vunpack.c.l.bf16 %v307
  %v372 = vunpack.c.l.bf16 %v308
  %v373 = vunpack.c.l.bf16 %v309
  %v374 = vunpack.c.l.bf16 %v310
  %v375 = vunpack.c.l.bf16 %v311
  %v376 = vunpack.c.l.bf16 %v312
  %v377 = vunpack.c.l.bf16 %v313
  %v378 = vunpack.c.l.bf16 %v314
  %v379 = vunpack.c.l.bf16 %v315
  %v380 = vunpack.c.l.bf16 %v316
  %v381 = vunpack.c.l.bf16 %v317
  %v382 = vunpack.c.l.bf16 %v318
  %v383 = vunpack.c.l.bf16 %v319
  %v384 = vunpack.c.l.bf16 %v320
  %v385 = vunpack.c.l.bf16 %v321
  %v386 = vunpack.c.l.bf16 %v322
  %v387 = vunpack.c.l.bf16 %v323
  %v388 = vunpack.c.l.bf16 %v324
  %v389 = vunpack.c.l.bf16 %v325
  %v390 = vunpack.c.l.bf16 %v326
  %v391 = vunpack.c.l.bf16 %v327
  %v392 = vunpack.c.l.bf16 %v328
  %v393 = vunpack.c.l.bf16 %v329
  %v394 = vunpack.c.l.bf16 %v330
  %v395 = vunpack.c.l.bf16 %v331
  %v396 = vunpack.c.l.bf16 %v332
  %v397 = vunpack.c.l.bf16 %v333
  %v398 = vunpack.c.l.bf16 %v334
  %v399 = vunpack.c.l.bf16 %v335
  %v400 = vunpack.c.l.bf16 %v336
  %v401 = vunpack.c.l.bf16 %v337
  %v402 = vunpack.c.l.bf16 %v338
  %v403 = vunpack.c.l.bf16 %v339
  %v404 = vunpack.c.l.bf16 %v340
  %v405 = vunpack.c.l.bf16 %v341
  %v406 = vunpack.c.l.bf16 %v342
  %v407 = vunpack.c.l.bf16 %v343
  %v408 = vunpack.c.l.bf16 %v344
  %v409 = vunpack.c.l.bf16 %v345
  %v410 = vunpack.c.l.bf16 %v346
  %v411 = vunpack.c.l.bf16 %v347
  %v412 = vunpack.c.l.bf16 %v348
  %v413 = vunpack.c.l.bf16 %v349
  %v414 = vunpack.c.l.bf16 %v350
  %v415 = vadd.f32 %v351, %v223
  %v416 = vadd.f32 %v352, %v224
  %v417 = vadd.f32 %v353, %v225
  %v418 = vadd.f32 %v354, %v226
  %v419 = vadd.f32 %v355, %v227
  %v420 = vadd.f32 %v356, %v228
  %v421 = vadd.f32 %v357, %v229
  %v422 = vadd.f32 %v358, %v230
  %v423 = vadd.f32 %v359, %v231
  %v424 = vadd.f32 %v360, %v232
  %v425 = vadd.f32 %v361, %v233
  %v426 = vadd.f32 %v362, %v234
  %v427 = vadd.f32 %v363, %v235
  %v428 = vadd.f32 %v364, %v236
  %v429 = vadd.f32 %v365, %v237
  %v430 = vadd.f32 %v366, %v238
  %v431 = vadd.f32 %v367, %v239
  %v432 = vadd.f32 %v368, %v240
  %v433 = vadd.f32 %v369, %v241
  %v434 = vadd.f32 %v370, %v242
  %v435 = vadd.f32 %v371, %v243
  %v436 = vadd.f32 %v372, %v244
  %v437 = vadd.f32 %v373, %v245
  %v438 = vadd.f32 %v374, %v246
  %v439 = vadd.f32 %v375, %v247
  %v440 = vadd.f32 %v376, %v248
  %v441 = vadd.f32 %v377, %v249
  %v442 = vadd.f32 %v378, %v250
  %v443 = vadd.f32 %v379, %v251
  %v444 = vadd.f32 %v380, %v252
  %v445 = vadd.f32 %v381, %v253
  %v446 = vadd.f32 %v382, %v254
  %v447 = vadd.f32 %v383, %v255
  %v448 = vadd.f32 %v384, %v256
  %v449 = vadd.f32 %v385, %v257
  %v450 = vadd.f32 %v386, %v258
  %v451 = vadd.f32 %v387, %v259
  %v452 = vadd.f32 %v388, %v260
  %v453 = vadd.f32 %v389, %v261
  %v454 = vadd.f32 %v390, %v262
  %v455 = vadd.f32 %v391, %v263
  %v456 = vadd.f32 %v392, %v264
  %v457 = vadd.f32 %v393, %v265
  %v458 = vadd.f32 %v394, %v266
  %v459 = vadd.f32 %v395, %v267
  %v460 = vadd.f32 %v396, %v268
  %v461 = vadd.f32 %v397, %v269
  %v462 = vadd.f32 %v398, %v270
  %v463 = vadd.f32 %v399, %v271
  %v464 = vadd.f32 %v400, %v272
  %v465 = vadd.f32 %v401, %v273
  %v466 = vadd.f32 %v402, %v274
  %v467 = vadd.f32 %v403, %v275
  %v468 = vadd.f32 %v404, %v276
  %v469 = vadd.f32 %v405, %v277
  %v470 = vadd.f32 %v406, %v278
  %v471 = vadd.f32 %v407, %v279
  %v472 = vadd.f32 %v408, %v280
  %v473 = vadd.f32 %v409, %v281
  %v474 = vadd.f32 %v410, %v282
  %v475 = vadd.f32 %v411, %v283
  %v476 = vadd.f32 %v412, %v284
  %v477 = vadd.f32 %v413, %v285
  %v478 = vadd.f32 %v414, %v286
  %v479 = vmax.f32 %v415, 0.0
  %v480 = vmax.f32 %v416, 0.0
  %v481 = vmax.f32 %v417, 0.0
  %v482 = vmax.f32 %v418, 0.0
  %v483 = vmax.f32 %v419, 0.0
  %v484 = vmax.f32 %v420, 0.0
  %v485 = vmax.f32 %v421, 0.0
  %v486 = vmax.f32 %v422, 0.0
  %v487 = vmax.f32 %v423, 0.0
  %v488 = vmax.f32 %v424, 0.0
  %v489 = vmax.f32 %v425, 0.0
  %v490 = vmax.f32 %v426, 0.0
  %v491 = vmax.f32 %v427, 0.0
  %v492 = vmax.f32 %v428, 0.0
  %v493 = vmax.f32 %v429, 0.0
  %v494 = vmax.f32 %v430, 0.0
  %v495 = vmax.f32 %v431, 0.0
  %v496 = vmax.f32 %v432, 0.0
  %v497 = vmax.f32 %v433, 0.0
  %v498 = vmax.f32 %v434, 0.0
  %v499 = vmax.f32 %v435, 0.0
  %v500 = vmax.f32 %v436, 0.0
  %v501 = vmax.f32 %v437, 0.0
  %v502 = vmax.f32 %v438, 0.0
  %v503 = vmax.f32 %v439, 0.0
  %v504 = vmax.f32 %v440, 0.0
  %v505 = vmax.f32 %v441, 0.0
  %v506 = vmax.f32 %v442, 0.0
  %v507 = vmax.f32 %v443, 0.0
  %v508 = vmax.f32 %v444, 0.0
  %v509 = vmax.f32 %v445, 0.0
  %v510 = vmax.f32 %v446, 0.0
  %v511 = vmax.f32 %v447, 0.0
  %v512 = vmax.f32 %v448, 0.0
  %v513 = vmax.f32 %v449, 0.0
  %v514 = vmax.f32 %v450, 0.0
  %v515 = vmax.f32 %v451, 0.0
  %v516 = vmax.f32 %v452, 0.0
  %v517 = vmax.f32 %v453, 0.0
  %v518 = vmax.f32 %v454, 0.0
  %v519 = vmax.f32 %v455, 0.0
  %v520 = vmax.f32 %v456, 0.0
  %v521 = vmax.f32 %v457, 0.0
  %v522 = vmax.f32 %v458, 0.0
  %v523 = vmax.f32 %v459, 0.0
  %v524 = vmax.f32 %v460, 0.0
  %v525 = vmax.f32 %v461, 0.0
  %v526 = vmax.f32 %v462, 0.0
  %v527 = vmax.f32 %v463, 0.0
  %v528 = vmax.f32 %v464, 0.0
  %v529 = vmax.f32 %v465, 0.0
  %v530 = vmax.f32 %v466, 0.0
  %v531 = vmax.f32 %v467, 0.0
  %v532 = vmax.f32 %v468, 0.0
  %v533 = vmax.f32 %v469, 0.0
  %v534 = vmax.f32 %v470, 0.0
  %v535 = vmax.f32 %v471, 0.0
  %v536 = vmax.f32 %v472, 0.0
  %v537 = vmax.f32 %v473, 0.0
  %v538 = vmax.f32 %v474, 0.0
  %v539 = vmax.f32 %v475, 0.0
  %v540 = vmax.f32 %v476, 0.0
  %v541 = vmax.f32 %v477, 0.0
  %v542 = vmax.f32 %v478, 0.0
  %543 = vst [vmem:[%s4] sm:$0xff] %v479
  %544 = vst [vmem:[%s4 + $0x8] sm:$0xff] %v480
  %545 = vst [vmem:[%s4 + $0x10] sm:$0xff] %v481
  %546 = vst [vmem:[%s4 + $0x18] sm:$0xff] %v482
  %547 = vst [vmem:[%s4 + $0x20] sm:$0xff] %v483
  %548 = vst [vmem:[%s4 + $0x28] sm:$0xff] %v484
  %549 = vst [vmem:[%s4 + $0x30] sm:$0xff] %v485
  %550 = vst [vmem:[%s4 + $0x38] sm:$0xff] %v486
  %551 = vst [vmem:[%s4 + $0x40] sm:$0xff] %v487
  %552 = vst [vmem:[%s4 + $0x48] sm:$0xff] %v488
  %553 = vst [vmem:[%s4 + $0x50] sm:$0xff] %v489
  %554 = vst [vmem:[%s4 + $0x58] sm:$0xff] %v490
  %555 = vst [vmem:[%s4 + $0x60] sm:$0xff] %v491
  %556 = vst [vmem:[%s4 + $0x68] sm:$0xff] %v492
  %557 = vst [vmem:[%s4 + $0x70] sm:$0xff] %v493
  %558 = vst [vmem:[%s4 + $0x78] sm:$0xff] %v494
  %559 = vst [vmem:[%s4 + $0x80] sm:$0xff] %v495
  %560 = vst [vmem:[%s4 + $0x88] sm:$0xff] %v496
  %561 = vst [vmem:[%s4 + $0x90] sm:$0xff] %v497
  %562 = vst [vmem:[%s4 + $0x98] sm:$0xff] %v498
  %563 = vst [vmem:[%s4 + $0xa0] sm:$0xff] %v499
  %564 = vst [vmem:[%s4 + $0xa8] sm:$0xff] %v500
  %565 = vst [vmem:[%s4 + $0xb0] sm:$0xff] %v501
  %566 = vst [vmem:[%s4 + $0xb8] sm:$0xff] %v502
  %567 = vst [vmem:[%s4 + $0xc0] sm:$0xff] %v503
  %568 = vst [vmem:[%s4 + $0xc8] sm:$0xff] %v504
  %569 = vst [vmem:[%s4 + $0xd0] sm:$0xff] %v505
  %570 = vst [vmem:[%s4 + $0xd8] sm:$0xff] %v506
  %571 = vst [vmem:[%s4 + $0xe0] sm:$0xff] %v507
  %572 = vst [vmem:[%s4 + $0xe8] sm:$0xff] %v508
  %573 = vst [vmem:[%s4 + $0xf0] sm:$0xff] %v509
  %574 = vst [vmem:[%s4 + $0xf8] sm:$0xff] %v510
  %575 = vst [vmem:[%s4 + $0x100] sm:$0xff] %v511
  %576 = vst [vmem:[%s4 + $0x108] sm:$0xff] %v512
  %577 = vst [vmem:[%s4 + $0x110] sm:$0xff] %v513
  %578 = vst [vmem:[%s4 + $0x118] sm:$0xff] %v514
  %579 = vst [vmem:[%s4 + $0x120] sm:$0xff] %v515
  %580 = vst [vmem:[%s4 + $0x128] sm:$0xff] %v516
  %581 = vst [vmem:[%s4 + $0x130] sm:$0xff] %v517
  %582 = vst [vmem:[%s4 + $0x138] sm:$0xff] %v518
  %583 = vst [vmem:[%s4 + $0x140] sm:$0xff] %v519
  %584 = vst [vmem:[%s4 + $0x148] sm:$0xff] %v520
  %585 = vst [vmem:[%s4 + $0x150] sm:$0xff] %v521
  %586 = vst [vmem:[%s4 + $0x158] sm:$0xff] %v522
  %587 = vst [vmem:[%s4 + $0x160] sm:$0xff] %v523
  %588 = vst [vmem:[%s4 + $0x168] sm:$0xff] %v524
  %589 = vst [vmem:[%s4 + $0x170] sm:$0xff] %v525
  %590 = vst [vmem:[%s4 + $0x178] sm:$0xff] %v526
  %591 = vst [vmem:[%s4 + $0x180] sm:$0xff] %v527
  %592 = vst [vmem:[%s4 + $0x188] sm:$0xff] %v528
  %593 = vst [vmem:[%s4 + $0x190] sm:$0xff] %v529
  %594 = vst [vmem:[%s4 + $0x198] sm:$0xff] %v530
  %595 = vst [vmem:[%s4 + $0x1a0] sm:$0xff] %v531
  %596 = vst [vmem:[%s4 + $0x1a8] sm:$0xff] %v532
  %597 = vst [vmem:[%s4 + $0x1b0] sm:$0xff] %v533
  %598 = vst [vmem:[%s4 + $0x1b8] sm:$0xff] %v534
  %599 = vst [vmem:[%s4 + $0x1c0] sm:$0xff] %v535
  %600 = vst [vmem:[%s4 + $0x1c8] sm:$0xff] %v536
  %601 = vst [vmem:[%s4 + $0x1d0] sm:$0xff] %v537
  %602 = vst [vmem:[%s4 + $0x1d8] sm:$0xff] %v538
  %603 = vst [vmem:[%s4 + $0x1e0] sm:$0xff] %v539
  %604 = vst [vmem:[%s4 + $0x1e8] sm:$0xff] %v540
  %605 = vst [vmem:[%s4 + $0x1f0] sm:$0xff] %v541
  %606 = vst [vmem:[%s4 + $0x1f8] sm:$0xff] %v542
  // Predicated region
  $region18: #{restnet_basic_block.7} parent=0 // pred_check
    _
  $region19: #{restnet_basic_block.7} parent=0 // pred_check_branch
    %608 = sbr.rel (0) target = $region21
  $region20: #{restnet_basic_block.7} parent=0 // pred_region
    _
  $region21: #{restnet_basic_block.7} parent=0 // pred_fallthru
    _
  // Predicated region
  $region22: #{restnet_basic_block.7} parent=0 // pred_check
    _
  $region23: #{restnet_basic_block.7} parent=0 // pred_check_branch
    %610 = sbr.rel (0) target = $region25
  $region24: #{restnet_basic_block.7} parent=0 // pred_region
    _
  $region25: #{restnet_basic_block.7} parent=0 // pred_fallthru
    _

</llo_original>
